<compile_context>
chip_gen: v6e
topology: v6e:2x2x1
jax: 0.10.0
libtpu: 0.0.40
codegen_flags: <defaults>
</compile_context>

<pallas_src>
import numpy as np
import jax
import jax.numpy as jnp
from jax import lax
from jax.experimental import pallas as pl
from jax.experimental.pallas import tpu as pltpu

BN_EPS = 1e-5
MXU_DTYPE = jnp.bfloat16      # conv matmul operand dtype (f32 accumulation);
                              # set to jnp.float32 for bit-faithful f32 convs.

# Per layer: (out_channels, kernel_h, kernel_w, pad_h, pad_w, stride_h, stride_w)
_LAYERS = (
    (32, 5, 5, 2, 2, 3, 1),
    (16, 3, 39, 1, 19, 1, 1),
    (8, 3, 3, 1, 1, 1, 1),
    (1, 3, 3, 1, 1, 1, 1),
)
# conv2..conv4 must share (kernel_h, pad_h, strides) so one set of H-shift
# matrices is reused for all of them.
assert all((l[1], l[3], l[5], l[6]) ==
           (_LAYERS[1][1], _LAYERS[1][3], _LAYERS[1][5], _LAYERS[1][6])
           for l in _LAYERS[1:])


# --------------------------- host-side preprocessing ------------------------ #

def _toeplitz(w_oihw, w_in, pad_w):
    """Conv weight (Co,Ci,kh,kw) -> block-Toeplitz (kh, Ci*w_in, Co*w_out).

    T[i, ci*w_in + x, co*w_out + wo] = w[co, ci, i, x + pad_w - wo] (else 0), so
    `act_row(Ci*w_in) @ T[i]` is the kernel-row-i contribution of a stride-1
    convolution along W with the W zero-padding folded into T's zeros.
    """
    w = np.asarray(w_oihw, np.float32)
    co, ci, kh, kw = w.shape
    w_out = w_in + 2 * pad_w - kw + 1
    t = np.zeros((kh, ci, w_in, co, w_out), np.float32)
    for x in range(w_in):
        for o in range(w_out):
            j = x + pad_w - o
            if 0 <= j < kw:
                t[:, :, x, :, o] = np.transpose(w[:, :, :, j], (2, 1, 0))
    return t.reshape(kh, ci * w_in, co * w_out)


def _shift_matrices(n, h, kh, pad_h):
    """0/1 matrices S[i] (n*h, n*h): H-tap shift + H zero-padding, stride 1."""
    s = np.zeros((kh, n * h, n * h), np.float32)
    for i in range(kh):
        for b in range(n):
            for r in range(h):
                src = r + i - pad_h
                if 0 <= src < h:
                    s[i, b * h + r, b * h + src] = 1.0
    return s


def _group_matrices(c, w):
    """G (c*w, c): sums the w lanes of each channel; G.T broadcasts back."""
    g = np.kron(np.eye(c, dtype=np.float32), np.ones((w, 1), np.float32))
    return g, np.ascontiguousarray(g.T)


def prepare_params(params, width):
    """One-time host-side weight preprocessing for the fused kernel."""
    prep = {}
    w_in = width
    w_outs = []
    for idx, (cout, kh, kw, ph, pw, sh, sw) in enumerate(_LAYERS, start=1):
        t = _toeplitz(params[f"w{idx}"], w_in, pw)
        if idx == 1:
            # conv1: the wrapper gathers the kh strided rows, so fold the kh
            # taps into a single (kh*Ci*W, Co*W) contraction.
            t = t.reshape(-1, t.shape[2])
        prep[f"t{idx}"] = jnp.asarray(t, MXU_DTYPE)
        w_out = t.shape[-1] // cout
        w_outs.append(w_out)
        w_in = w_out

    # A conv bias added before training-mode BatchNorm is cancelled by the mean
    # subtraction -> b1..b3 are dropped.  conv4 keeps its bias (expanded to the
    # (Cout*W) column layout).
    b4 = np.asarray(params["b4"], np.float32)
    prep["bias4"] = jnp.asarray(np.repeat(b4, w_outs[3])[None, :])

    for i, (cout, w_out) in enumerate(
            zip([l[0] for l in _LAYERS[:3]], w_outs[:3]), start=1):
        g, gt = _group_matrices(cout, w_out)
        prep[f"gsum{i}"] = jnp.asarray(g)     # (C*W, C)
        prep[f"gexp{i}"] = jnp.asarray(gt)    # (C, C*W)
        gamma = np.asarray(params[f"g{i}"], np.float32)
        beta = np.asarray(params[f"be{i}"], np.float32)
        prep[f"gb{i}"] = jnp.asarray(
            np.stack([np.repeat(gamma, w_out), np.repeat(beta, w_out)]))
    return prep


# ------------------------------ Pallas kernel ------------------------------- #

def _fused_kernel_factory(inv_counts):
    inv1, inv2, inv3 = inv_counts

    def kernel(x1_ref, t1_ref, t2_ref, t3_ref, t4_ref, s_ref,
               gs1_ref, ge1_ref, gb1_ref,
               gs2_ref, ge2_ref, gb2_ref,
               gs3_ref, ge3_ref, gb3_ref,
               b4_ref, out_ref):
        f32 = jnp.float32

        def bn_relu(y, gs_ref, ge_ref, gb_ref, inv_count):
            # Training-mode BatchNorm2d (batch stats, biased var) + ReLU on a
            # (N*H, C*W) activation; per-channel reductions / broadcasts over
            # the C*W lane layout use tiny 0/1 grouping matmuls (f32).
            gs = gs_ref[...]
            ge = ge_ref[...]
            gamma = gb_ref[pl.ds(0, 1), :]
            beta = gb_ref[pl.ds(1, 1), :]
            s1 = jnp.sum(y, axis=0, keepdims=True)                       # (1, C*W)
            mean_c = jnp.dot(s1, gs, preferred_element_type=f32) * inv_count
            mean = jnp.dot(mean_c, ge, preferred_element_type=f32)       # (1, C*W)
            cen = y - mean
            s2 = jnp.sum(cen * cen, axis=0, keepdims=True)
            var_c = jnp.dot(s2, gs, preferred_element_type=f32) * inv_count
            inv_std = lax.rsqrt(var_c + BN_EPS)                          # (1, C)
            scale = jnp.dot(inv_std, ge, preferred_element_type=f32) * gamma
            return jnp.maximum(cen * scale + beta, 0.0)

        def conv_stride1(act, t_ref):
            # sum_i S_i @ (act @ T_i): T_i carries the W taps + W padding,
            # S_i the H taps + H padding.  bf16 operands, f32 accumulation.
            a = act.astype(MXU_DTYPE)
            y = None
            for i in range(t_ref.shape[0]):
                z = jnp.dot(a, t_ref[i], preferred_element_type=f32)
                z = jnp.dot(s_ref[i], z, preferred_element_type=f32)
                y = z if y is None else y + z
            return y

        # conv1 (stride 3 along H): the wrapper pre-gathered the kh strided
        # input rows, so the whole layer is a single lane-dense matmul.
        y1 = jnp.dot(x1_ref[...], t1_ref[...], preferred_element_type=f32)
        a1 = bn_relu(y1, gs1_ref, ge1_ref, gb1_ref, inv1)
        a2 = bn_relu(conv_stride1(a1, t2_ref), gs2_ref, ge2_ref, gb2_ref, inv2)
        a3 = bn_relu(conv_stride1(a2, t3_ref), gs3_ref, ge3_ref, gb3_ref, inv3)
        out_ref[...] = conv_stride1(a3, t4_ref) + b4_ref[...]

    return kernel


# ------------------------------ Forward pass -------------------------------- #

@jax.jit
def cnn_note_forward(x_nchw, prep):
    x = x_nchw.astype(jnp.float32)
    n, c_in, h, w = x.shape
    _, kh1, _, ph1, _, sh1, _ = _LAYERS[0]
    ho = (h + 2 * ph1 - kh1) // sh1 + 1        # height after conv1 (preserved later)
    rows = n * ho

    # conv1 patch rows: gather the kh1 strided (H-padded) input rows per output
    # row; layout (N*Ho, kh1*Ci*W) matching prep["t1"].  (~15 KB of glue.)
    xr = jnp.transpose(x, (0, 2, 1, 3)).reshape(n, h, c_in * w)
    xr = jnp.pad(xr, ((0, 0), (ph1, ph1), (0, 0)))
    idx = (np.arange(kh1)[:, None] + sh1 * np.arange(ho)[None, :]).reshape(-1)
    x1 = jnp.take(xr, jnp.asarray(idx), axis=1)            # (n, kh1*ho, c_in*w)
    x1 = x1.reshape(n, kh1, ho, c_in * w).transpose(0, 2, 1, 3)
    x1 = x1.reshape(rows, kh1 * c_in * w).astype(prep["t1"].dtype)

    # Shared H-shift matrices for conv2..conv4 (trace-time constants).
    s = jnp.asarray(_shift_matrices(n, ho, _LAYERS[1][1], _LAYERS[1][3]))

    widths = [prep[f"gb{i}"].shape[1] // _LAYERS[i - 1][0] for i in (1, 2, 3)]
    inv_counts = tuple(1.0 / float(rows * wd) for wd in widths)
    w_out = prep["bias4"].shape[1]

    vmem = pl.BlockSpec(memory_space=pltpu.MemorySpace.VMEM)
    out2d = pl.pallas_call(
        _fused_kernel_factory(inv_counts),
        out_shape=jax.ShapeDtypeStruct((rows, w_out), jnp.float32),
        in_specs=[vmem] * 16,
        out_specs=vmem,
    )(x1, prep["t1"], prep["t2"], prep["t3"], prep["t4"], s,
      prep["gsum1"], prep["gexp1"], prep["gb1"],
      prep["gsum2"], prep["gexp2"], prep["gb2"],
      prep["gsum3"], prep["gexp3"], prep["gb3"],
      prep["bias4"])
    return out2d.reshape(n, ho, w_out)[:, None, :, :]       # NCHW, C = 1


# --------------------------- Parameter creation ----------------------------- #

def init_params(in_channels, key):
    def conv_init(key, cout, cin, kh, kw):
        kw_, kb_ = jax.random.split(key)
        fan_in = cin * kh * kw
        bound = 1.0 / jnp.sqrt(fan_in)
        w = jax.random.uniform(kw_, (cout, cin, kh, kw), jnp.float32,
                               -bound, bound)
        b = jax.random.uniform(kb_, (cout,), jnp.float32, -bound, bound)
        return w, b

    def bn_init(key, c):
        kg, kb = jax.random.split(key)
        gamma = 1.0 + 0.1 * jax.random.normal(kg, (c,), jnp.float32)
        beta = 0.1 * jax.random.normal(kb, (c,), jnp.float32)
        return gamma, beta

    keys = jax.random.split(key, 7)
    p = {}
    p["w1"], p["b1"] = conv_init(keys[0], 32, in_channels, 5, 5)
    p["g1"], p["be1"] = bn_init(keys[1], 32)
    p["w2"], p["b2"] = conv_init(keys[2], 16, 32, 3, 39)
    p["g2"], p["be2"] = bn_init(keys[3], 16)
    p["w3"], p["b3"] = conv_init(keys[4], 8, 16, 3, 3)
    p["g3"], p["be3"] = bn_init(keys[5], 8)
    p["w4"], p["b4"] = conv_init(keys[6], 1, 8, 3, 3)
    return p


if __name__ == "__main__":
    key = jax.random.PRNGKey(0)
    k_in, k_par = jax.random.split(key)

    N, C, H, W = 2, 4, 16, 16
    x = jax.random.normal(k_in, (N, C, H, W), jnp.float32)
    params = init_params(C, k_par)
    prep = prepare_params(params, width=W)

    out = cnn_note_forward(x, prep)
    out = jax.block_until_ready(out)

    # conv1 (stride 3,1): H 16 -> 6, W -> 16; later layers preserve spatial dims.
    assert out.shape == (N, 1, 6, 16), out.shape
    assert bool(jnp.all(jnp.isfinite(out)))
    print("KERNEL_OK")
</pallas_src>

<mosaic_0001>
module attributes {stable_mosaic.version = 11 : i64} {
  func.func @kernel(%arg0: memref<12x320xbf16, #tpu.memory_space<vmem>>, %arg1: memref<320x512xbf16, #tpu.memory_space<vmem>>, %arg2: memref<3x512x256xbf16, #tpu.memory_space<vmem>>, %arg3: memref<3x256x128xbf16, #tpu.memory_space<vmem>>, %arg4: memref<3x128x16xbf16, #tpu.memory_space<vmem>>, %arg5: memref<3x12x12xf32, #tpu.memory_space<vmem>>, %arg6: memref<512x32xf32, #tpu.memory_space<vmem>>, %arg7: memref<32x512xf32, #tpu.memory_space<vmem>>, %arg8: memref<2x512xf32, #tpu.memory_space<vmem>>, %arg9: memref<256x16xf32, #tpu.memory_space<vmem>>, %arg10: memref<16x256xf32, #tpu.memory_space<vmem>>, %arg11: memref<2x256xf32, #tpu.memory_space<vmem>>, %arg12: memref<128x8xf32, #tpu.memory_space<vmem>>, %arg13: memref<8x128xf32, #tpu.memory_space<vmem>>, %arg14: memref<2x128xf32, #tpu.memory_space<vmem>>, %arg15: memref<1x16xf32, #tpu.memory_space<vmem>>, %arg16: memref<12x16xf32, #tpu.memory_space<vmem>>) attributes {dimension_semantics = [], scalar_prefetch = 0 : i64, scratch_operands = 0 : i64, tpu.core_type = #tpu.core_type<tc>} {
    %c0 = arith.constant 0 : index
    %c0_0 = arith.constant 0 : index
    %0 = vector.load %arg0[%c0, %c0_0] : memref<12x320xbf16, #tpu.memory_space<vmem>>, vector<12x320xbf16>
    %c0_1 = arith.constant 0 : index
    %c0_2 = arith.constant 0 : index
    %1 = vector.load %arg1[%c0_1, %c0_2] : memref<320x512xbf16, #tpu.memory_space<vmem>>, vector<320x512xbf16>
    %cst = arith.constant dense<0.000000e+00> : vector<12x512xf32>
    %2 = tpu.matmul %0, %1, %cst {dimension_numbers = #tpu.dot_dimension_numbers<[1], [0], [0], [1], [0, 0, 1, 1], [], []>} : vector<12x320xbf16>, vector<320x512xbf16>, vector<12x512xf32> -> vector<12x512xf32>
    %c0_3 = arith.constant 0 : index
    %c0_4 = arith.constant 0 : index
    %3 = vector.load %arg6[%c0_3, %c0_4] : memref<512x32xf32, #tpu.memory_space<vmem>>, vector<512x32xf32>
    %c0_5 = arith.constant 0 : index
    %c0_6 = arith.constant 0 : index
    %4 = vector.load %arg7[%c0_5, %c0_6] : memref<32x512xf32, #tpu.memory_space<vmem>>, vector<32x512xf32>
    %c0_7 = arith.constant 0 : index
    %c0_8 = arith.constant 0 : index
    %5 = vector.load %arg8[%c0_7, %c0_8] : memref<2x512xf32, #tpu.memory_space<vmem>>, vector<1x512xf32>
    %c1 = arith.constant 1 : index
    %c0_9 = arith.constant 0 : index
    %6 = vector.load %arg8[%c1, %c0_9] : memref<2x512xf32, #tpu.memory_space<vmem>>, vector<1x512xf32>
    %cst_10 = arith.constant dense<0.000000e+00> : vector<512xf32>
    %7 = vector.multi_reduction <add>, %2, %cst_10 [0] : vector<12x512xf32> to vector<512xf32>
    %8 = vector.shape_cast %7 : vector<512xf32> to vector<1x512xf32>
    %cst_11 = arith.constant dense<0.000000e+00> : vector<1x32xf32>
    %9 = tpu.matmul %8, %3, %cst_11 {dimension_numbers = #tpu.dot_dimension_numbers<[1], [0], [0], [1], [0, 0, 1, 1], [], []>} : vector<1x512xf32>, vector<512x32xf32>, vector<1x32xf32> -> vector<1x32xf32>
    %cst_12 = arith.constant 0.00520833349 : f32
    %10 = vector.broadcast %cst_12 : f32 to vector<1x32xf32>
    %11 = arith.mulf %9, %10 : vector<1x32xf32>
    %cst_13 = arith.constant dense<0.000000e+00> : vector<1x512xf32>
    %12 = tpu.matmul %11, %4, %cst_13 {dimension_numbers = #tpu.dot_dimension_numbers<[1], [0], [0], [1], [0, 0, 1, 1], [], []>} : vector<1x32xf32>, vector<32x512xf32>, vector<1x512xf32> -> vector<1x512xf32>
    %13 = vector.broadcast %12 : vector<1x512xf32> to vector<12x512xf32>
    %14 = arith.subf %2, %13 : vector<12x512xf32>
    %15 = arith.mulf %14, %14 : vector<12x512xf32>
    %cst_14 = arith.constant dense<0.000000e+00> : vector<512xf32>
    %16 = vector.multi_reduction <add>, %15, %cst_14 [0] : vector<12x512xf32> to vector<512xf32>
    %17 = vector.shape_cast %16 : vector<512xf32> to vector<1x512xf32>
    %cst_15 = arith.constant dense<0.000000e+00> : vector<1x32xf32>
    %18 = tpu.matmul %17, %3, %cst_15 {dimension_numbers = #tpu.dot_dimension_numbers<[1], [0], [0], [1], [0, 0, 1, 1], [], []>} : vector<1x512xf32>, vector<512x32xf32>, vector<1x32xf32> -> vector<1x32xf32>
    %cst_16 = arith.constant 0.00520833349 : f32
    %19 = vector.broadcast %cst_16 : f32 to vector<1x32xf32>
    %20 = arith.mulf %18, %19 : vector<1x32xf32>
    %cst_17 = arith.constant 9.99999974E-6 : f32
    %21 = vector.broadcast %cst_17 : f32 to vector<1x32xf32>
    %22 = arith.addf %20, %21 : vector<1x32xf32>
    %23 = math.rsqrt %22 : vector<1x32xf32>
    %cst_18 = arith.constant dense<0.000000e+00> : vector<1x512xf32>
    %24 = tpu.matmul %23, %4, %cst_18 {dimension_numbers = #tpu.dot_dimension_numbers<[1], [0], [0], [1], [0, 0, 1, 1], [], []>} : vector<1x32xf32>, vector<32x512xf32>, vector<1x512xf32> -> vector<1x512xf32>
    %25 = arith.mulf %24, %5 : vector<1x512xf32>
    %26 = vector.broadcast %25 : vector<1x512xf32> to vector<12x512xf32>
    %27 = arith.mulf %14, %26 : vector<12x512xf32>
    %28 = vector.broadcast %6 : vector<1x512xf32> to vector<12x512xf32>
    %29 = arith.addf %27, %28 : vector<12x512xf32>
    %cst_19 = arith.constant 0.000000e+00 : f32
    %30 = vector.broadcast %cst_19 : f32 to vector<12x512xf32>
    %31 = arith.maximumf %29, %30 : vector<12x512xf32>
    %32 = arith.truncf %31 : vector<12x512xf32> to vector<12x512xbf16>
    %c0_20 = arith.constant 0 : index
    %c0_21 = arith.constant 0 : index
    %c0_22 = arith.constant 0 : index
    %33 = vector.load %arg2[%c0_20, %c0_21, %c0_22] : memref<3x512x256xbf16, #tpu.memory_space<vmem>>, vector<1x512x256xbf16>
    %34 = vector.shape_cast %33 : vector<1x512x256xbf16> to vector<512x256xbf16>
    %cst_23 = arith.constant dense<0.000000e+00> : vector<12x256xf32>
    %35 = tpu.matmul %32, %34, %cst_23 {dimension_numbers = #tpu.dot_dimension_numbers<[1], [0], [0], [1], [0, 0, 1, 1], [], []>} : vector<12x512xbf16>, vector<512x256xbf16>, vector<12x256xf32> -> vector<12x256xf32>
    %c0_24 = arith.constant 0 : index
    %c0_25 = arith.constant 0 : index
    %c0_26 = arith.constant 0 : index
    %36 = vector.load %arg5[%c0_24, %c0_25, %c0_26] : memref<3x12x12xf32, #tpu.memory_space<vmem>>, vector<1x12x12xf32>
    %37 = vector.shape_cast %36 : vector<1x12x12xf32> to vector<12x12xf32>
    %cst_27 = arith.constant dense<0.000000e+00> : vector<12x256xf32>
    %38 = tpu.matmul %37, %35, %cst_27 {dimension_numbers = #tpu.dot_dimension_numbers<[1], [0], [0], [1], [0, 0, 1, 1], [], []>} : vector<12x12xf32>, vector<12x256xf32>, vector<12x256xf32> -> vector<12x256xf32>
    %c1_28 = arith.constant 1 : index
    %c0_29 = arith.constant 0 : index
    %c0_30 = arith.constant 0 : index
    %39 = vector.load %arg2[%c1_28, %c0_29, %c0_30] : memref<3x512x256xbf16, #tpu.memory_space<vmem>>, vector<1x512x256xbf16>
    %40 = vector.shape_cast %39 : vector<1x512x256xbf16> to vector<512x256xbf16>
    %cst_31 = arith.constant dense<0.000000e+00> : vector<12x256xf32>
    %41 = tpu.matmul %32, %40, %cst_31 {dimension_numbers = #tpu.dot_dimension_numbers<[1], [0], [0], [1], [0, 0, 1, 1], [], []>} : vector<12x512xbf16>, vector<512x256xbf16>, vector<12x256xf32> -> vector<12x256xf32>
    %c1_32 = arith.constant 1 : index
    %c0_33 = arith.constant 0 : index
    %c0_34 = arith.constant 0 : index
    %42 = vector.load %arg5[%c1_32, %c0_33, %c0_34] : memref<3x12x12xf32, #tpu.memory_space<vmem>>, vector<1x12x12xf32>
    %43 = vector.shape_cast %42 : vector<1x12x12xf32> to vector<12x12xf32>
    %cst_35 = arith.constant dense<0.000000e+00> : vector<12x256xf32>
    %44 = tpu.matmul %43, %41, %cst_35 {dimension_numbers = #tpu.dot_dimension_numbers<[1], [0], [0], [1], [0, 0, 1, 1], [], []>} : vector<12x12xf32>, vector<12x256xf32>, vector<12x256xf32> -> vector<12x256xf32>
    %45 = arith.addf %38, %44 : vector<12x256xf32>
    %c2 = arith.constant 2 : index
    %c0_36 = arith.constant 0 : index
    %c0_37 = arith.constant 0 : index
    %46 = vector.load %arg2[%c2, %c0_36, %c0_37] : memref<3x512x256xbf16, #tpu.memory_space<vmem>>, vector<1x512x256xbf16>
    %47 = vector.shape_cast %46 : vector<1x512x256xbf16> to vector<512x256xbf16>
    %cst_38 = arith.constant dense<0.000000e+00> : vector<12x256xf32>
    %48 = tpu.matmul %32, %47, %cst_38 {dimension_numbers = #tpu.dot_dimension_numbers<[1], [0], [0], [1], [0, 0, 1, 1], [], []>} : vector<12x512xbf16>, vector<512x256xbf16>, vector<12x256xf32> -> vector<12x256xf32>
    %c2_39 = arith.constant 2 : index
    %c0_40 = arith.constant 0 : index
    %c0_41 = arith.constant 0 : index
    %49 = vector.load %arg5[%c2_39, %c0_40, %c0_41] : memref<3x12x12xf32, #tpu.memory_space<vmem>>, vector<1x12x12xf32>
    %50 = vector.shape_cast %49 : vector<1x12x12xf32> to vector<12x12xf32>
    %cst_42 = arith.constant dense<0.000000e+00> : vector<12x256xf32>
    %51 = tpu.matmul %50, %48, %cst_42 {dimension_numbers = #tpu.dot_dimension_numbers<[1], [0], [0], [1], [0, 0, 1, 1], [], []>} : vector<12x12xf32>, vector<12x256xf32>, vector<12x256xf32> -> vector<12x256xf32>
    %52 = arith.addf %45, %51 : vector<12x256xf32>
    %c0_43 = arith.constant 0 : index
    %c0_44 = arith.constant 0 : index
    %53 = vector.load %arg9[%c0_43, %c0_44] : memref<256x16xf32, #tpu.memory_space<vmem>>, vector<256x16xf32>
    %c0_45 = arith.constant 0 : index
    %c0_46 = arith.constant 0 : index
    %54 = vector.load %arg10[%c0_45, %c0_46] : memref<16x256xf32, #tpu.memory_space<vmem>>, vector<16x256xf32>
    %c0_47 = arith.constant 0 : index
    %c0_48 = arith.constant 0 : index
    %55 = vector.load %arg11[%c0_47, %c0_48] : memref<2x256xf32, #tpu.memory_space<vmem>>, vector<1x256xf32>
    %c1_49 = arith.constant 1 : index
    %c0_50 = arith.constant 0 : index
    %56 = vector.load %arg11[%c1_49, %c0_50] : memref<2x256xf32, #tpu.memory_space<vmem>>, vector<1x256xf32>
    %cst_51 = arith.constant dense<0.000000e+00> : vector<256xf32>
    %57 = vector.multi_reduction <add>, %52, %cst_51 [0] : vector<12x256xf32> to vector<256xf32>
    %58 = vector.shape_cast %57 : vector<256xf32> to vector<1x256xf32>
    %cst_52 = arith.constant dense<0.000000e+00> : vector<1x16xf32>
    %59 = tpu.matmul %58, %53, %cst_52 {dimension_numbers = #tpu.dot_dimension_numbers<[1], [0], [0], [1], [0, 0, 1, 1], [], []>} : vector<1x256xf32>, vector<256x16xf32>, vector<1x16xf32> -> vector<1x16xf32>
    %cst_53 = arith.constant 0.00520833349 : f32
    %60 = vector.broadcast %cst_53 : f32 to vector<1x16xf32>
    %61 = arith.mulf %59, %60 : vector<1x16xf32>
    %cst_54 = arith.constant dense<0.000000e+00> : vector<1x256xf32>
    %62 = tpu.matmul %61, %54, %cst_54 {dimension_numbers = #tpu.dot_dimension_numbers<[1], [0], [0], [1], [0, 0, 1, 1], [], []>} : vector<1x16xf32>, vector<16x256xf32>, vector<1x256xf32> -> vector<1x256xf32>
    %63 = vector.broadcast %62 : vector<1x256xf32> to vector<12x256xf32>
    %64 = arith.subf %52, %63 : vector<12x256xf32>
    %65 = arith.mulf %64, %64 : vector<12x256xf32>
    %cst_55 = arith.constant dense<0.000000e+00> : vector<256xf32>
    %66 = vector.multi_reduction <add>, %65, %cst_55 [0] : vector<12x256xf32> to vector<256xf32>
    %67 = vector.shape_cast %66 : vector<256xf32> to vector<1x256xf32>
    %cst_56 = arith.constant dense<0.000000e+00> : vector<1x16xf32>
    %68 = tpu.matmul %67, %53, %cst_56 {dimension_numbers = #tpu.dot_dimension_numbers<[1], [0], [0], [1], [0, 0, 1, 1], [], []>} : vector<1x256xf32>, vector<256x16xf32>, vector<1x16xf32> -> vector<1x16xf32>
    %cst_57 = arith.constant 0.00520833349 : f32
    %69 = vector.broadcast %cst_57 : f32 to vector<1x16xf32>
    %70 = arith.mulf %68, %69 : vector<1x16xf32>
    %cst_58 = arith.constant 9.99999974E-6 : f32
    %71 = vector.broadcast %cst_58 : f32 to vector<1x16xf32>
    %72 = arith.addf %70, %71 : vector<1x16xf32>
    %73 = math.rsqrt %72 : vector<1x16xf32>
    %cst_59 = arith.constant dense<0.000000e+00> : vector<1x256xf32>
    %74 = tpu.matmul %73, %54, %cst_59 {dimension_numbers = #tpu.dot_dimension_numbers<[1], [0], [0], [1], [0, 0, 1, 1], [], []>} : vector<1x16xf32>, vector<16x256xf32>, vector<1x256xf32> -> vector<1x256xf32>
    %75 = arith.mulf %74, %55 : vector<1x256xf32>
    %76 = vector.broadcast %75 : vector<1x256xf32> to vector<12x256xf32>
    %77 = arith.mulf %64, %76 : vector<12x256xf32>
    %78 = vector.broadcast %56 : vector<1x256xf32> to vector<12x256xf32>
    %79 = arith.addf %77, %78 : vector<12x256xf32>
    %cst_60 = arith.constant 0.000000e+00 : f32
    %80 = vector.broadcast %cst_60 : f32 to vector<12x256xf32>
    %81 = arith.maximumf %79, %80 : vector<12x256xf32>
    %82 = arith.truncf %81 : vector<12x256xf32> to vector<12x256xbf16>
    %c0_61 = arith.constant 0 : index
    %c0_62 = arith.constant 0 : index
    %c0_63 = arith.constant 0 : index
    %83 = vector.load %arg3[%c0_61, %c0_62, %c0_63] : memref<3x256x128xbf16, #tpu.memory_space<vmem>>, vector<1x256x128xbf16>
    %84 = vector.shape_cast %83 : vector<1x256x128xbf16> to vector<256x128xbf16>
    %cst_64 = arith.constant dense<0.000000e+00> : vector<12x128xf32>
    %85 = tpu.matmul %82, %84, %cst_64 {dimension_numbers = #tpu.dot_dimension_numbers<[1], [0], [0], [1], [0, 0, 1, 1], [], []>} : vector<12x256xbf16>, vector<256x128xbf16>, vector<12x128xf32> -> vector<12x128xf32>
    %c0_65 = arith.constant 0 : index
    %c0_66 = arith.constant 0 : index
    %c0_67 = arith.constant 0 : index
    %86 = vector.load %arg5[%c0_65, %c0_66, %c0_67] : memref<3x12x12xf32, #tpu.memory_space<vmem>>, vector<1x12x12xf32>
    %87 = vector.shape_cast %86 : vector<1x12x12xf32> to vector<12x12xf32>
    %cst_68 = arith.constant dense<0.000000e+00> : vector<12x128xf32>
    %88 = tpu.matmul %87, %85, %cst_68 {dimension_numbers = #tpu.dot_dimension_numbers<[1], [0], [0], [1], [0, 0, 1, 1], [], []>} : vector<12x12xf32>, vector<12x128xf32>, vector<12x128xf32> -> vector<12x128xf32>
    %c1_69 = arith.constant 1 : index
    %c0_70 = arith.constant 0 : index
    %c0_71 = arith.constant 0 : index
    %89 = vector.load %arg3[%c1_69, %c0_70, %c0_71] : memref<3x256x128xbf16, #tpu.memory_space<vmem>>, vector<1x256x128xbf16>
    %90 = vector.shape_cast %89 : vector<1x256x128xbf16> to vector<256x128xbf16>
    %cst_72 = arith.constant dense<0.000000e+00> : vector<12x128xf32>
    %91 = tpu.matmul %82, %90, %cst_72 {dimension_numbers = #tpu.dot_dimension_numbers<[1], [0], [0], [1], [0, 0, 1, 1], [], []>} : vector<12x256xbf16>, vector<256x128xbf16>, vector<12x128xf32> -> vector<12x128xf32>
    %c1_73 = arith.constant 1 : index
    %c0_74 = arith.constant 0 : index
    %c0_75 = arith.constant 0 : index
    %92 = vector.load %arg5[%c1_73, %c0_74, %c0_75] : memref<3x12x12xf32, #tpu.memory_space<vmem>>, vector<1x12x12xf32>
    %93 = vector.shape_cast %92 : vector<1x12x12xf32> to vector<12x12xf32>
    %cst_76 = arith.constant dense<0.000000e+00> : vector<12x128xf32>
    %94 = tpu.matmul %93, %91, %cst_76 {dimension_numbers = #tpu.dot_dimension_numbers<[1], [0], [0], [1], [0, 0, 1, 1], [], []>} : vector<12x12xf32>, vector<12x128xf32>, vector<12x128xf32> -> vector<12x128xf32>
    %95 = arith.addf %88, %94 : vector<12x128xf32>
    %c2_77 = arith.constant 2 : index
    %c0_78 = arith.constant 0 : index
    %c0_79 = arith.constant 0 : index
    %96 = vector.load %arg3[%c2_77, %c0_78, %c0_79] : memref<3x256x128xbf16, #tpu.memory_space<vmem>>, vector<1x256x128xbf16>
    %97 = vector.shape_cast %96 : vector<1x256x128xbf16> to vector<256x128xbf16>
    %cst_80 = arith.constant dense<0.000000e+00> : vector<12x128xf32>
    %98 = tpu.matmul %82, %97, %cst_80 {dimension_numbers = #tpu.dot_dimension_numbers<[1], [0], [0], [1], [0, 0, 1, 1], [], []>} : vector<12x256xbf16>, vector<256x128xbf16>, vector<12x128xf32> -> vector<12x128xf32>
    %c2_81 = arith.constant 2 : index
    %c0_82 = arith.constant 0 : index
    %c0_83 = arith.constant 0 : index
    %99 = vector.load %arg5[%c2_81, %c0_82, %c0_83] : memref<3x12x12xf32, #tpu.memory_space<vmem>>, vector<1x12x12xf32>
    %100 = vector.shape_cast %99 : vector<1x12x12xf32> to vector<12x12xf32>
    %cst_84 = arith.constant dense<0.000000e+00> : vector<12x128xf32>
    %101 = tpu.matmul %100, %98, %cst_84 {dimension_numbers = #tpu.dot_dimension_numbers<[1], [0], [0], [1], [0, 0, 1, 1], [], []>} : vector<12x12xf32>, vector<12x128xf32>, vector<12x128xf32> -> vector<12x128xf32>
    %102 = arith.addf %95, %101 : vector<12x128xf32>
    %c0_85 = arith.constant 0 : index
    %c0_86 = arith.constant 0 : index
    %103 = vector.load %arg12[%c0_85, %c0_86] : memref<128x8xf32, #tpu.memory_space<vmem>>, vector<128x8xf32>
    %c0_87 = arith.constant 0 : index
    %c0_88 = arith.constant 0 : index
    %104 = vector.load %arg13[%c0_87, %c0_88] : memref<8x128xf32, #tpu.memory_space<vmem>>, vector<8x128xf32>
    %c0_89 = arith.constant 0 : index
    %c0_90 = arith.constant 0 : index
    %105 = vector.load %arg14[%c0_89, %c0_90] : memref<2x128xf32, #tpu.memory_space<vmem>>, vector<1x128xf32>
    %c1_91 = arith.constant 1 : index
    %c0_92 = arith.constant 0 : index
    %106 = vector.load %arg14[%c1_91, %c0_92] : memref<2x128xf32, #tpu.memory_space<vmem>>, vector<1x128xf32>
    %cst_93 = arith.constant dense<0.000000e+00> : vector<128xf32>
    %107 = vector.multi_reduction <add>, %102, %cst_93 [0] : vector<12x128xf32> to vector<128xf32>
    %108 = vector.shape_cast %107 : vector<128xf32> to vector<1x128xf32>
    %cst_94 = arith.constant dense<0.000000e+00> : vector<1x8xf32>
    %109 = tpu.matmul %108, %103, %cst_94 {dimension_numbers = #tpu.dot_dimension_numbers<[1], [0], [0], [1], [0, 0, 1, 1], [], []>} : vector<1x128xf32>, vector<128x8xf32>, vector<1x8xf32> -> vector<1x8xf32>
    %cst_95 = arith.constant 0.00520833349 : f32
    %110 = vector.broadcast %cst_95 : f32 to vector<1x8xf32>
    %111 = arith.mulf %109, %110 : vector<1x8xf32>
    %cst_96 = arith.constant dense<0.000000e+00> : vector<1x128xf32>
    %112 = tpu.matmul %111, %104, %cst_96 {dimension_numbers = #tpu.dot_dimension_numbers<[1], [0], [0], [1], [0, 0, 1, 1], [], []>} : vector<1x8xf32>, vector<8x128xf32>, vector<1x128xf32> -> vector<1x128xf32>
    %113 = vector.broadcast %112 : vector<1x128xf32> to vector<12x128xf32>
    %114 = arith.subf %102, %113 : vector<12x128xf32>
    %115 = arith.mulf %114, %114 : vector<12x128xf32>
    %cst_97 = arith.constant dense<0.000000e+00> : vector<128xf32>
    %116 = vector.multi_reduction <add>, %115, %cst_97 [0] : vector<12x128xf32> to vector<128xf32>
    %117 = vector.shape_cast %116 : vector<128xf32> to vector<1x128xf32>
    %cst_98 = arith.constant dense<0.000000e+00> : vector<1x8xf32>
    %118 = tpu.matmul %117, %103, %cst_98 {dimension_numbers = #tpu.dot_dimension_numbers<[1], [0], [0], [1], [0, 0, 1, 1], [], []>} : vector<1x128xf32>, vector<128x8xf32>, vector<1x8xf32> -> vector<1x8xf32>
    %cst_99 = arith.constant 0.00520833349 : f32
    %119 = vector.broadcast %cst_99 : f32 to vector<1x8xf32>
    %120 = arith.mulf %118, %119 : vector<1x8xf32>
    %cst_100 = arith.constant 9.99999974E-6 : f32
    %121 = vector.broadcast %cst_100 : f32 to vector<1x8xf32>
    %122 = arith.addf %120, %121 : vector<1x8xf32>
    %123 = math.rsqrt %122 : vector<1x8xf32>
    %cst_101 = arith.constant dense<0.000000e+00> : vector<1x128xf32>
    %124 = tpu.matmul %123, %104, %cst_101 {dimension_numbers = #tpu.dot_dimension_numbers<[1], [0], [0], [1], [0, 0, 1, 1], [], []>} : vector<1x8xf32>, vector<8x128xf32>, vector<1x128xf32> -> vector<1x128xf32>
    %125 = arith.mulf %124, %105 : vector<1x128xf32>
    %126 = vector.broadcast %125 : vector<1x128xf32> to vector<12x128xf32>
    %127 = arith.mulf %114, %126 : vector<12x128xf32>
    %128 = vector.broadcast %106 : vector<1x128xf32> to vector<12x128xf32>
    %129 = arith.addf %127, %128 : vector<12x128xf32>
    %cst_102 = arith.constant 0.000000e+00 : f32
    %130 = vector.broadcast %cst_102 : f32 to vector<12x128xf32>
    %131 = arith.maximumf %129, %130 : vector<12x128xf32>
    %132 = arith.truncf %131 : vector<12x128xf32> to vector<12x128xbf16>
    %c0_103 = arith.constant 0 : index
    %c0_104 = arith.constant 0 : index
    %c0_105 = arith.constant 0 : index
    %133 = vector.load %arg4[%c0_103, %c0_104, %c0_105] : memref<3x128x16xbf16, #tpu.memory_space<vmem>>, vector<1x128x16xbf16>
    %134 = vector.shape_cast %133 : vector<1x128x16xbf16> to vector<128x16xbf16>
    %cst_106 = arith.constant dense<0.000000e+00> : vector<12x16xf32>
    %135 = tpu.matmul %132, %134, %cst_106 {dimension_numbers = #tpu.dot_dimension_numbers<[1], [0], [0], [1], [0, 0, 1, 1], [], []>} : vector<12x128xbf16>, vector<128x16xbf16>, vector<12x16xf32> -> vector<12x16xf32>
    %c0_107 = arith.constant 0 : index
    %c0_108 = arith.constant 0 : index
    %c0_109 = arith.constant 0 : index
    %136 = vector.load %arg5[%c0_107, %c0_108, %c0_109] : memref<3x12x12xf32, #tpu.memory_space<vmem>>, vector<1x12x12xf32>
    %137 = vector.shape_cast %136 : vector<1x12x12xf32> to vector<12x12xf32>
    %cst_110 = arith.constant dense<0.000000e+00> : vector<12x16xf32>
    %138 = tpu.matmul %137, %135, %cst_110 {dimension_numbers = #tpu.dot_dimension_numbers<[1], [0], [0], [1], [0, 0, 1, 1], [], []>} : vector<12x12xf32>, vector<12x16xf32>, vector<12x16xf32> -> vector<12x16xf32>
    %c1_111 = arith.constant 1 : index
    %c0_112 = arith.constant 0 : index
    %c0_113 = arith.constant 0 : index
    %139 = vector.load %arg4[%c1_111, %c0_112, %c0_113] : memref<3x128x16xbf16, #tpu.memory_space<vmem>>, vector<1x128x16xbf16>
    %140 = vector.shape_cast %139 : vector<1x128x16xbf16> to vector<128x16xbf16>
    %cst_114 = arith.constant dense<0.000000e+00> : vector<12x16xf32>
    %141 = tpu.matmul %132, %140, %cst_114 {dimension_numbers = #tpu.dot_dimension_numbers<[1], [0], [0], [1], [0, 0, 1, 1], [], []>} : vector<12x128xbf16>, vector<128x16xbf16>, vector<12x16xf32> -> vector<12x16xf32>
    %c1_115 = arith.constant 1 : index
    %c0_116 = arith.constant 0 : index
    %c0_117 = arith.constant 0 : index
    %142 = vector.load %arg5[%c1_115, %c0_116, %c0_117] : memref<3x12x12xf32, #tpu.memory_space<vmem>>, vector<1x12x12xf32>
    %143 = vector.shape_cast %142 : vector<1x12x12xf32> to vector<12x12xf32>
    %cst_118 = arith.constant dense<0.000000e+00> : vector<12x16xf32>
    %144 = tpu.matmul %143, %141, %cst_118 {dimension_numbers = #tpu.dot_dimension_numbers<[1], [0], [0], [1], [0, 0, 1, 1], [], []>} : vector<12x12xf32>, vector<12x16xf32>, vector<12x16xf32> -> vector<12x16xf32>
    %145 = arith.addf %138, %144 : vector<12x16xf32>
    %c2_119 = arith.constant 2 : index
    %c0_120 = arith.constant 0 : index
    %c0_121 = arith.constant 0 : index
    %146 = vector.load %arg4[%c2_119, %c0_120, %c0_121] : memref<3x128x16xbf16, #tpu.memory_space<vmem>>, vector<1x128x16xbf16>
    %147 = vector.shape_cast %146 : vector<1x128x16xbf16> to vector<128x16xbf16>
    %cst_122 = arith.constant dense<0.000000e+00> : vector<12x16xf32>
    %148 = tpu.matmul %132, %147, %cst_122 {dimension_numbers = #tpu.dot_dimension_numbers<[1], [0], [0], [1], [0, 0, 1, 1], [], []>} : vector<12x128xbf16>, vector<128x16xbf16>, vector<12x16xf32> -> vector<12x16xf32>
    %c2_123 = arith.constant 2 : index
    %c0_124 = arith.constant 0 : index
    %c0_125 = arith.constant 0 : index
    %149 = vector.load %arg5[%c2_123, %c0_124, %c0_125] : memref<3x12x12xf32, #tpu.memory_space<vmem>>, vector<1x12x12xf32>
    %150 = vector.shape_cast %149 : vector<1x12x12xf32> to vector<12x12xf32>
    %cst_126 = arith.constant dense<0.000000e+00> : vector<12x16xf32>
    %151 = tpu.matmul %150, %148, %cst_126 {dimension_numbers = #tpu.dot_dimension_numbers<[1], [0], [0], [1], [0, 0, 1, 1], [], []>} : vector<12x12xf32>, vector<12x16xf32>, vector<12x16xf32> -> vector<12x16xf32>
    %152 = arith.addf %145, %151 : vector<12x16xf32>
    %c0_127 = arith.constant 0 : index
    %c0_128 = arith.constant 0 : index
    %153 = vector.load %arg15[%c0_127, %c0_128] : memref<1x16xf32, #tpu.memory_space<vmem>>, vector<1x16xf32>
    %154 = vector.broadcast %153 : vector<1x16xf32> to vector<12x16xf32>
    %155 = arith.addf %152, %154 : vector<12x16xf32>
    %c0_129 = arith.constant 0 : index
    %c0_130 = arith.constant 0 : index
    %156 = vector.load %arg16[%c0_129, %c0_130] : memref<12x16xf32, #tpu.memory_space<vmem>>, vector<12x16xf32>
    tpu.vector_store %arg16[%c0_129, %c0_130], %155 {strides = array<i32>} : memref<12x16xf32, #tpu.memory_space<vmem>>, vector<12x16xf32>,
    return
  }
}

</mosaic_0001>

<llo_original>
// kernel: cnn_note_forward.1
$region0: #{cnn_note_forward.1}
  #allocation0 [shape = 'u32[]', space=smem, size = 0x4, offset = 0x4, fixed_abs, tag = 'smem constant byte address 0x4 - core index']
  #allocation1 [shape = 'u32[144,128]{1,0:T(1,128)}', space=vmem, size = 0x12000, scoped, tag = 'internal scratch']
  %s0 = inlined_call_operand.vmem [shape: bf16[12,320], index: 0, kind: input, shape index: {}]
  %s1 = inlined_call_operand.hbm [shape: bf16[320,512], index: 1, kind: input, shape index: {}]
  %s2 = inlined_call_operand.vmem [shape: bf16[3,512,256], index: 2, kind: input, shape index: {}]
  %s3 = inlined_call_operand.hbm [shape: bf16[3,256,128], index: 3, kind: input, shape index: {}]
  %s4 = inlined_call_operand.vmem [shape: bf16[3,128,16], index: 4, kind: input, shape index: {}]
  %s5 = inlined_call_operand.vmem [shape: f32[3,12,12], index: 5, kind: input, shape index: {}]
  %s6 = inlined_call_operand.vmem [shape: f32[512,32], index: 6, kind: input, shape index: {}]
  %s7 = inlined_call_operand.vmem [shape: f32[32,512], index: 7, kind: input, shape index: {}]
  %s8 = inlined_call_operand.vmem [shape: f32[2,512], index: 8, kind: input, shape index: {}]
  %s9 = inlined_call_operand.vmem [shape: f32[256,16], index: 9, kind: input, shape index: {}]
  %s10 = inlined_call_operand.vmem [shape: f32[16,256], index: 10, kind: input, shape index: {}]
  %s11 = inlined_call_operand.vmem [shape: f32[2,256], index: 11, kind: input, shape index: {}]
  %s12 = inlined_call_operand.vmem [shape: f32[128,8], index: 12, kind: input, shape index: {}]
  %s13 = inlined_call_operand.vmem [shape: f32[8,128], index: 13, kind: input, shape index: {}]
  %s14 = inlined_call_operand.vmem [shape: f32[2,128], index: 14, kind: input, shape index: {}]
  %s15 = inlined_call_operand.vmem [shape: f32[1,16], index: 15, kind: input, shape index: {}]
  %s16 = inlined_call_operand.vmem [shape: f32[12,16], index: 16, kind: output, shape index: {}]
  %s17 = sld [smem:[#allocation0]]
  $region82: #{cnn_note_forward.1} parent=0
    _
  %s19 = ssub.s32 1, %s17
  %s20 = scalar_select 0, %s19, %s17
  $region1: #{cnn_note_forward.1} parent=0
    #allocation2 [shape = 'u8[327680]{0}', space=vmem, size = 0x50000, scoped, tag = 'input window, operand 1, single buffered']
    #allocation3 [shape = 's32[1]{0}', space=sflag, size = 0x4, scoped, tag = 'scoped memory for cnn_note_forward.1']
    #allocation4 [shape = 'u8[196608]{0}', space=vmem, size = 0x30000, scoped, tag = 'input window, operand 3, single buffered']
    #allocation5 [shape = 's32[1]{0}', space=sflag, size = 0x4, scoped, tag = 'scoped memory for cnn_note_forward.1']
    %21 = vsyncpa [#allocation3], 0
    %22 = vsyncpa [#allocation5], 0
    // Predicated region
    $region2: #{cnn_note_forward.1} parent=1 // pred_check
      _
    $region3: #{cnn_note_forward.1} parent=1 // pred_check_branch
      %24 = sbr.rel (0) target = $region5
    $region4: #{cnn_note_forward.1} parent=1 // pred_region
      _
    $region5: #{cnn_note_forward.1} parent=1 // pred_fallthru
      _
    // Predicated region
    $region6: #{cnn_note_forward.1} parent=1 // pred_check
      _
    $region7: #{cnn_note_forward.1} parent=1 // pred_check_branch
      %26 = sbr.rel (0) target = $region9
    $region8: #{cnn_note_forward.1} parent=1 // pred_region
      %s28 = ssub.s32 10240, 10240
      %29 = vsyncadd [#allocation3], %s28
      %s30 = sshll.u32 [#allocation2], 4
      %s31 = int_to_ptr.vmem [resolvable:$true] %s30
      %36 = dma.hbm_to_vmem [thread:$0]  %s1, 10240, %s31, [#allocation3], 256, 256, 16
    $region9: #{cnn_note_forward.1} parent=1 // pred_fallthru
      _
    // Predicated region
    $region10: #{cnn_note_forward.1} parent=1 // pred_check
      _
    $region11: #{cnn_note_forward.1} parent=1 // pred_check_branch
      %38 = sbr.rel (0) target = $region13
    $region12: #{cnn_note_forward.1} parent=1 // pred_region
      _
    $region13: #{cnn_note_forward.1} parent=1 // pred_fallthru
      _
    // Predicated region
    $region14: #{cnn_note_forward.1} parent=1 // pred_check
      _
    $region15: #{cnn_note_forward.1} parent=1 // pred_check_branch
      %40 = sbr.rel (0) target = $region17
    $region16: #{cnn_note_forward.1} parent=1 // pred_region
      %s42 = ssub.s32 6144, 6144
      %43 = vsyncadd [#allocation5], %s42
      %s44 = sshll.u32 [#allocation4], 4
      %s45 = int_to_ptr.vmem [resolvable:$true] %s44
      %50 = dma.hbm_to_vmem [thread:$0]  %s3, 6144, %s45, [#allocation5], 64, 64, 4
    $region17: #{cnn_note_forward.1} parent=1 // pred_fallthru
      _
    // Predicated region
    $region18: #{cnn_note_forward.1} parent=1 // pred_check
      _
    $region19: #{cnn_note_forward.1} parent=1 // pred_check_branch
      %52 = sbr.rel (0) target = $region21
    $region20: #{cnn_note_forward.1} parent=1 // pred_region
      _
    $region21: #{cnn_note_forward.1} parent=1 // pred_fallthru
      _
    // Predicated region
    $region22: #{cnn_note_forward.1} parent=1 // pred_check
      _
    $region23: #{cnn_note_forward.1} parent=1 // pred_check_branch
      %54 = sbr.rel (0) target = $region25
    $region24: #{cnn_note_forward.1} parent=1 // pred_region
      _
    $region25: #{cnn_note_forward.1} parent=1 // pred_fallthru
      _
    // Predicated region
    $region26: #{cnn_note_forward.1} parent=1 // pred_check
      _
    $region27: #{cnn_note_forward.1} parent=1 // pred_check_branch
      %56 = sbr.rel (0) target = $region29
    $region28: #{cnn_note_forward.1} parent=1 // pred_region
      _
    $region29: #{cnn_note_forward.1} parent=1 // pred_fallthru
      _
    // Predicated region
    $region30: #{cnn_note_forward.1} parent=1 // pred_check
      _
    $region31: #{cnn_note_forward.1} parent=1 // pred_check_branch
      %58 = sbr.rel (0) target = $region33
    $region32: #{cnn_note_forward.1} parent=1 // pred_region
      _
    $region33: #{cnn_note_forward.1} parent=1 // pred_fallthru
      _
    // Predicated region
    $region34: #{cnn_note_forward.1} parent=1 // pred_check
      _
    $region35: #{cnn_note_forward.1} parent=1 // pred_check_branch
      %60 = sbr.rel (0) target = $region37
    $region36: #{cnn_note_forward.1} parent=1 // pred_region
      _
    $region37: #{cnn_note_forward.1} parent=1 // pred_fallthru
      _
    // Predicated region
    $region38: #{cnn_note_forward.1} parent=1 // pred_check
      _
    $region39: #{cnn_note_forward.1} parent=1 // pred_check_branch
      %62 = sbr.rel (0) target = $region41
    $region40: #{cnn_note_forward.1} parent=1 // pred_region
      _
    $region41: #{cnn_note_forward.1} parent=1 // pred_fallthru
      _
    // Predicated region
    $region42: #{cnn_note_forward.1} parent=1 // pred_check
      _
    $region43: #{cnn_note_forward.1} parent=1 // pred_check_branch
      %64 = sbr.rel (0) target = $region45
    $region44: #{cnn_note_forward.1} parent=1 // pred_region
      _
    $region45: #{cnn_note_forward.1} parent=1 // pred_fallthru
      _
    // Predicated region
    $region46: #{cnn_note_forward.1} parent=1 // pred_check
      _
    $region47: #{cnn_note_forward.1} parent=1 // pred_check_branch
      %66 = sbr.rel (0) target = $region49
    $region48: #{cnn_note_forward.1} parent=1 // pred_region
      _
    $region49: #{cnn_note_forward.1} parent=1 // pred_fallthru
      _
    // Predicated region
    $region50: #{cnn_note_forward.1} parent=1 // pred_check
      _
    $region51: #{cnn_note_forward.1} parent=1 // pred_check_branch
      %68 = sbr.rel (0) target = $region53
    $region52: #{cnn_note_forward.1} parent=1 // pred_region
      _
    $region53: #{cnn_note_forward.1} parent=1 // pred_fallthru
      _
    // Predicated region
    $region54: #{cnn_note_forward.1} parent=1 // pred_check
      _
    $region55: #{cnn_note_forward.1} parent=1 // pred_check_branch
      %70 = sbr.rel (0) target = $region57
    $region56: #{cnn_note_forward.1} parent=1 // pred_region
      _
    $region57: #{cnn_note_forward.1} parent=1 // pred_fallthru
      _
    // Predicated region
    $region58: #{cnn_note_forward.1} parent=1 // pred_check
      _
    $region59: #{cnn_note_forward.1} parent=1 // pred_check_branch
      %72 = sbr.rel (0) target = $region61
    $region60: #{cnn_note_forward.1} parent=1 // pred_region
      _
    $region61: #{cnn_note_forward.1} parent=1 // pred_fallthru
      _
    // Predicated region
    $region62: #{cnn_note_forward.1} parent=1 // pred_check
      _
    $region63: #{cnn_note_forward.1} parent=1 // pred_check_branch
      %74 = sbr.rel (0) target = $region65
    $region64: #{cnn_note_forward.1} parent=1 // pred_region
      _
    $region65: #{cnn_note_forward.1} parent=1 // pred_fallthru
      _
    // Predicated region
    $region66: #{cnn_note_forward.1} parent=1 // pred_check
      _
    $region67: #{cnn_note_forward.1} parent=1 // pred_check_branch
      %76 = sbr.rel (0) target = $region69
    $region68: #{cnn_note_forward.1} parent=1 // pred_region
      %77 = dma.done [#allocation3], 10240
    $region69: #{cnn_note_forward.1} parent=1 // pred_fallthru
      _
    // Predicated region
    $region70: #{cnn_note_forward.1} parent=1 // pred_check
      _
    $region71: #{cnn_note_forward.1} parent=1 // pred_check_branch
      %79 = sbr.rel (0) target = $region73
    $region72: #{cnn_note_forward.1} parent=1 // pred_region
      %80 = dma.done [#allocation5], 6144
    $region73: #{cnn_note_forward.1} parent=1 // pred_fallthru
      _
    %v82 = vld [vmem:[%s0] sm:$0xff]
    %v83 = vld [vmem:[%s0 + $0x8] sm:$0xf]
    %v84 = vld [vmem:[%s0 + $0xc] sm:$0x33]
    %v85 = vld [vmem:[%s0 + $0x14] sm:$0x3]
    %v86 = vld [vmem:[#allocation2] sm:$0xff]
    %v87 = vld [vmem:[#allocation2 + $0x8] sm:$0xff]
    %v88 = vld [vmem:[#allocation2 + $0x10] sm:$0xff]
    %v89 = vld [vmem:[#allocation2 + $0x18] sm:$0xff]
    %v90 = vld [vmem:[#allocation2 + $0x20] sm:$0xff]
    %v91 = vld [vmem:[#allocation2 + $0x28] sm:$0xff]
    %v92 = vld [vmem:[#allocation2 + $0x30] sm:$0xff]
    %v93 = vld [vmem:[#allocation2 + $0x38] sm:$0xff]
    %v94 = vld [vmem:[#allocation2 + $0x40] sm:$0xff]
    %v95 = vld [vmem:[#allocation2 + $0x48] sm:$0xff]
    %v96 = vld [vmem:[#allocation2 + $0x50] sm:$0xff]
    %v97 = vld [vmem:[#allocation2 + $0x58] sm:$0xff]
    %v98 = vld [vmem:[#allocation2 + $0x60] sm:$0xff]
    %v99 = vld [vmem:[#allocation2 + $0x68] sm:$0xff]
    %v100 = vld [vmem:[#allocation2 + $0x70] sm:$0xff]
    %v101 = vld [vmem:[#allocation2 + $0x78] sm:$0xff]
    %v102 = vld [vmem:[#allocation2 + $0x80] sm:$0xff]
    %v103 = vld [vmem:[#allocation2 + $0x88] sm:$0xff]
    %v104 = vld [vmem:[#allocation2 + $0x90] sm:$0xff]
    %v105 = vld [vmem:[#allocation2 + $0x98] sm:$0xff]
    %v106 = vld [vmem:[#allocation2 + $0xa0] sm:$0xff]
    %v107 = vld [vmem:[#allocation2 + $0xa8] sm:$0xff]
    %v108 = vld [vmem:[#allocation2 + $0xb0] sm:$0xff]
    %v109 = vld [vmem:[#allocation2 + $0xb8] sm:$0xff]
    %v110 = vld [vmem:[#allocation2 + $0xc0] sm:$0xff]
    %v111 = vld [vmem:[#allocation2 + $0xc8] sm:$0xff]
    %v112 = vld [vmem:[#allocation2 + $0xd0] sm:$0xff]
    %v113 = vld [vmem:[#allocation2 + $0xd8] sm:$0xff]
    %v114 = vld [vmem:[#allocation2 + $0xe0] sm:$0xff]
    %v115 = vld [vmem:[#allocation2 + $0xe8] sm:$0xff]
    %v116 = vld [vmem:[#allocation2 + $0xf0] sm:$0xff]
    %v117 = vld [vmem:[#allocation2 + $0xf8] sm:$0xff]
    %v118 = vld [vmem:[#allocation2 + $0x100] sm:$0xff]
    %v119 = vld [vmem:[#allocation2 + $0x108] sm:$0xff]
    %v120 = vld [vmem:[#allocation2 + $0x110] sm:$0xff]
    %v121 = vld [vmem:[#allocation2 + $0x118] sm:$0xff]
    %v122 = vld [vmem:[#allocation2 + $0x120] sm:$0xff]
    %v123 = vld [vmem:[#allocation2 + $0x128] sm:$0xff]
    %v124 = vld [vmem:[#allocation2 + $0x130] sm:$0xff]
    %v125 = vld [vmem:[#allocation2 + $0x138] sm:$0xff]
    %v126 = vld [vmem:[#allocation2 + $0x140] sm:$0xff]
    %v127 = vld [vmem:[#allocation2 + $0x148] sm:$0xff]
    %v128 = vld [vmem:[#allocation2 + $0x150] sm:$0xff]
    %v129 = vld [vmem:[#allocation2 + $0x158] sm:$0xff]
    %v130 = vld [vmem:[#allocation2 + $0x160] sm:$0xff]
    %v131 = vld [vmem:[#allocation2 + $0x168] sm:$0xff]
    %v132 = vld [vmem:[#allocation2 + $0x170] sm:$0xff]
    %v133 = vld [vmem:[#allocation2 + $0x178] sm:$0xff]
    %v134 = vld [vmem:[#allocation2 + $0x180] sm:$0xff]
    %v135 = vld [vmem:[#allocation2 + $0x188] sm:$0xff]
    %v136 = vld [vmem:[#allocation2 + $0x190] sm:$0xff]
    %v137 = vld [vmem:[#allocation2 + $0x198] sm:$0xff]
    %v138 = vld [vmem:[#allocation2 + $0x1a0] sm:$0xff]
    %v139 = vld [vmem:[#allocation2 + $0x1a8] sm:$0xff]
    %v140 = vld [vmem:[#allocation2 + $0x1b0] sm:$0xff]
    %v141 = vld [vmem:[#allocation2 + $0x1b8] sm:$0xff]
    %v142 = vld [vmem:[#allocation2 + $0x1c0] sm:$0xff]
    %v143 = vld [vmem:[#allocation2 + $0x1c8] sm:$0xff]
    %v144 = vld [vmem:[#allocation2 + $0x1d0] sm:$0xff]
    %v145 = vld [vmem:[#allocation2 + $0x1d8] sm:$0xff]
    %v146 = vld [vmem:[#allocation2 + $0x1e0] sm:$0xff]
    %v147 = vld [vmem:[#allocation2 + $0x1e8] sm:$0xff]
    %v148 = vld [vmem:[#allocation2 + $0x1f0] sm:$0xff]
    %v149 = vld [vmem:[#allocation2 + $0x1f8] sm:$0xff]
    %v150 = vld [vmem:[#allocation2 + $0x200] sm:$0xff]
    %v151 = vld [vmem:[#allocation2 + $0x208] sm:$0xff]
    %v152 = vld [vmem:[#allocation2 + $0x210] sm:$0xff]
    %v153 = vld [vmem:[#allocation2 + $0x218] sm:$0xff]
    %v154 = vld [vmem:[#allocation2 + $0x220] sm:$0xff]
    %v155 = vld [vmem:[#allocation2 + $0x228] sm:$0xff]
    %v156 = vld [vmem:[#allocation2 + $0x230] sm:$0xff]
    %v157 = vld [vmem:[#allocation2 + $0x238] sm:$0xff]
    %v158 = vld [vmem:[#allocation2 + $0x240] sm:$0xff]
    %v159 = vld [vmem:[#allocation2 + $0x248] sm:$0xff]
    %v160 = vld [vmem:[#allocation2 + $0x250] sm:$0xff]
    %v161 = vld [vmem:[#allocation2 + $0x258] sm:$0xff]
    %v162 = vld [vmem:[#allocation2 + $0x260] sm:$0xff]
    %v163 = vld [vmem:[#allocation2 + $0x268] sm:$0xff]
    %v164 = vld [vmem:[#allocation2 + $0x270] sm:$0xff]
    %v165 = vld [vmem:[#allocation2 + $0x278] sm:$0xff]
    %v170 = vunpack.c.l.b16 %v82
    %v171 = vunpack.c.h.b16 %v82
    %v172 = vunpack.c.l.b16 %v83
    %v173 = vunpack.c.l.b16 %v84
    %v174 = vunpack.c.h.b16 %v84
    %v175 = vunpack.c.l.b16 %v85
    %v176 = vpack.c.b16 %v173, %v170
    %v177 = vpack.c.b16 %v174, %v171
    %v178 = vpack.c.b16 %v175, %v172
    %v261 = vunpack.c.l.b16 %v86
    %v262 = vunpack.c.h.b16 %v86
    %v263 = vunpack.c.l.b16 %v87
    %v264 = vunpack.c.h.b16 %v87
    %v265 = vunpack.c.l.b16 %v88
    %v266 = vunpack.c.h.b16 %v88
    %v267 = vunpack.c.l.b16 %v89
    %v268 = vunpack.c.h.b16 %v89
    %v269 = vunpack.c.l.b16 %v90
    %v270 = vunpack.c.h.b16 %v90
    %v271 = vunpack.c.l.b16 %v91
    %v272 = vunpack.c.h.b16 %v91
    %v273 = vunpack.c.l.b16 %v92
    %v274 = vunpack.c.h.b16 %v92
    %v275 = vunpack.c.l.b16 %v93
    %v276 = vunpack.c.h.b16 %v93
    %v277 = vunpack.c.l.b16 %v94
    %v278 = vunpack.c.h.b16 %v94
    %v279 = vunpack.c.l.b16 %v95
    %v280 = vunpack.c.h.b16 %v95
    %v281 = vunpack.c.l.b16 %v96
    %v282 = vunpack.c.h.b16 %v96
    %v283 = vunpack.c.l.b16 %v97
    %v284 = vunpack.c.h.b16 %v97
    %v285 = vunpack.c.l.b16 %v98
    %v286 = vunpack.c.h.b16 %v98
    %v287 = vunpack.c.l.b16 %v99
    %v288 = vunpack.c.h.b16 %v99
    %v289 = vunpack.c.l.b16 %v100
    %v290 = vunpack.c.h.b16 %v100
    %v291 = vunpack.c.l.b16 %v101
    %v292 = vunpack.c.h.b16 %v101
    %v293 = vunpack.c.l.b16 %v102
    %v294 = vunpack.c.h.b16 %v102
    %v295 = vunpack.c.l.b16 %v103
    %v296 = vunpack.c.h.b16 %v103
    %v297 = vunpack.c.l.b16 %v104
    %v298 = vunpack.c.h.b16 %v104
    %v299 = vunpack.c.l.b16 %v105
    %v300 = vunpack.c.h.b16 %v105
    %v301 = vunpack.c.l.b16 %v106
    %v302 = vunpack.c.h.b16 %v106
    %v303 = vunpack.c.l.b16 %v107
    %v304 = vunpack.c.h.b16 %v107
    %v305 = vunpack.c.l.b16 %v108
    %v306 = vunpack.c.h.b16 %v108
    %v307 = vunpack.c.l.b16 %v109
    %v308 = vunpack.c.h.b16 %v109
    %v309 = vunpack.c.l.b16 %v110
    %v310 = vunpack.c.h.b16 %v110
    %v311 = vunpack.c.l.b16 %v111
    %v312 = vunpack.c.h.b16 %v111
    %v313 = vunpack.c.l.b16 %v112
    %v314 = vunpack.c.h.b16 %v112
    %v315 = vunpack.c.l.b16 %v113
    %v316 = vunpack.c.h.b16 %v113
    %v317 = vunpack.c.l.b16 %v114
    %v318 = vunpack.c.h.b16 %v114
    %v319 = vunpack.c.l.b16 %v115
    %v320 = vunpack.c.h.b16 %v115
    %v321 = vunpack.c.l.b16 %v116
    %v322 = vunpack.c.h.b16 %v116
    %v323 = vunpack.c.l.b16 %v117
    %v324 = vunpack.c.h.b16 %v117
    %v325 = vunpack.c.l.b16 %v118
    %v326 = vunpack.c.h.b16 %v118
    %v327 = vunpack.c.l.b16 %v119
    %v328 = vunpack.c.h.b16 %v119
    %v329 = vunpack.c.l.b16 %v120
    %v330 = vunpack.c.h.b16 %v120
    %v331 = vunpack.c.l.b16 %v121
    %v332 = vunpack.c.h.b16 %v121
    %v333 = vunpack.c.l.b16 %v122
    %v334 = vunpack.c.h.b16 %v122
    %v335 = vunpack.c.l.b16 %v123
    %v336 = vunpack.c.h.b16 %v123
    %v337 = vunpack.c.l.b16 %v124
    %v338 = vunpack.c.h.b16 %v124
    %v339 = vunpack.c.l.b16 %v125
    %v340 = vunpack.c.h.b16 %v125
    %v341 = vunpack.c.l.b16 %v126
    %v342 = vunpack.c.h.b16 %v126
    %v343 = vunpack.c.l.b16 %v127
    %v344 = vunpack.c.h.b16 %v127
    %v345 = vunpack.c.l.b16 %v128
    %v346 = vunpack.c.h.b16 %v128
    %v347 = vunpack.c.l.b16 %v129
    %v348 = vunpack.c.h.b16 %v129
    %v349 = vunpack.c.l.b16 %v130
    %v350 = vunpack.c.h.b16 %v130
    %v351 = vunpack.c.l.b16 %v131
    %v352 = vunpack.c.h.b16 %v131
    %v353 = vunpack.c.l.b16 %v132
    %v354 = vunpack.c.h.b16 %v132
    %v355 = vunpack.c.l.b16 %v133
    %v356 = vunpack.c.h.b16 %v133
    %v357 = vunpack.c.l.b16 %v134
    %v358 = vunpack.c.h.b16 %v134
    %v359 = vunpack.c.l.b16 %v135
    %v360 = vunpack.c.h.b16 %v135
    %v361 = vunpack.c.l.b16 %v136
    %v362 = vunpack.c.h.b16 %v136
    %v363 = vunpack.c.l.b16 %v137
    %v364 = vunpack.c.h.b16 %v137
    %v365 = vunpack.c.l.b16 %v138
    %v366 = vunpack.c.h.b16 %v138
    %v367 = vunpack.c.l.b16 %v139
    %v368 = vunpack.c.h.b16 %v139
    %v369 = vunpack.c.l.b16 %v140
    %v370 = vunpack.c.h.b16 %v140
    %v371 = vunpack.c.l.b16 %v141
    %v372 = vunpack.c.h.b16 %v141
    %v373 = vunpack.c.l.b16 %v142
    %v374 = vunpack.c.h.b16 %v142
    %v375 = vunpack.c.l.b16 %v143
    %v376 = vunpack.c.h.b16 %v143
    %v377 = vunpack.c.l.b16 %v144
    %v378 = vunpack.c.h.b16 %v144
    %v379 = vunpack.c.l.b16 %v145
    %v380 = vunpack.c.h.b16 %v145
    %v381 = vunpack.c.l.b16 %v146
    %v382 = vunpack.c.h.b16 %v146
    %v383 = vunpack.c.l.b16 %v147
    %v384 = vunpack.c.h.b16 %v147
    %v385 = vunpack.c.l.b16 %v148
    %v386 = vunpack.c.h.b16 %v148
    %v387 = vunpack.c.l.b16 %v149
    %v388 = vunpack.c.h.b16 %v149
    %v389 = vunpack.c.l.b16 %v150
    %v390 = vunpack.c.h.b16 %v150
    %v391 = vunpack.c.l.b16 %v151
    %v392 = vunpack.c.h.b16 %v151
    %v393 = vunpack.c.l.b16 %v152
    %v394 = vunpack.c.h.b16 %v152
    %v395 = vunpack.c.l.b16 %v153
    %v396 = vunpack.c.h.b16 %v153
    %v397 = vunpack.c.l.b16 %v154
    %v398 = vunpack.c.h.b16 %v154
    %v399 = vunpack.c.l.b16 %v155
    %v400 = vunpack.c.h.b16 %v155
    %v401 = vunpack.c.l.b16 %v156
    %v402 = vunpack.c.h.b16 %v156
    %v403 = vunpack.c.l.b16 %v157
    %v404 = vunpack.c.h.b16 %v157
    %v405 = vunpack.c.l.b16 %v158
    %v406 = vunpack.c.h.b16 %v158
    %v407 = vunpack.c.l.b16 %v159
    %v408 = vunpack.c.h.b16 %v159
    %v409 = vunpack.c.l.b16 %v160
    %v410 = vunpack.c.h.b16 %v160
    %v411 = vunpack.c.l.b16 %v161
    %v412 = vunpack.c.h.b16 %v161
    %v413 = vunpack.c.l.b16 %v162
    %v414 = vunpack.c.h.b16 %v162
    %v415 = vunpack.c.l.b16 %v163
    %v416 = vunpack.c.h.b16 %v163
    %v417 = vunpack.c.l.b16 %v164
    %v418 = vunpack.c.h.b16 %v164
    %v419 = vunpack.c.l.b16 %v165
    %v420 = vunpack.c.h.b16 %v165
    %v421 = vpack.c.b16 %v265, %v261
    %v422 = vpack.c.b16 %v266, %v262
    %v423 = vpack.c.b16 %v267, %v263
    %v424 = vpack.c.b16 %v268, %v264
    %v425 = vpack.c.b16 %v273, %v269
    %v426 = vpack.c.b16 %v274, %v270
    %v427 = vpack.c.b16 %v275, %v271
    %v428 = vpack.c.b16 %v276, %v272
    %v429 = vpack.c.b16 %v281, %v277
    %v430 = vpack.c.b16 %v282, %v278
    %v431 = vpack.c.b16 %v283, %v279
    %v432 = vpack.c.b16 %v284, %v280
    %v433 = vpack.c.b16 %v289, %v285
    %v434 = vpack.c.b16 %v290, %v286
    %v435 = vpack.c.b16 %v291, %v287
    %v436 = vpack.c.b16 %v292, %v288
    %v437 = vpack.c.b16 %v297, %v293
    %v438 = vpack.c.b16 %v298, %v294
    %v439 = vpack.c.b16 %v299, %v295
    %v440 = vpack.c.b16 %v300, %v296
    %v441 = vpack.c.b16 %v305, %v301
    %v442 = vpack.c.b16 %v306, %v302
    %v443 = vpack.c.b16 %v307, %v303
    %v444 = vpack.c.b16 %v308, %v304
    %v445 = vpack.c.b16 %v313, %v309
    %v446 = vpack.c.b16 %v314, %v310
    %v447 = vpack.c.b16 %v315, %v311
    %v448 = vpack.c.b16 %v316, %v312
    %v449 = vpack.c.b16 %v321, %v317
    %v450 = vpack.c.b16 %v322, %v318
    %v451 = vpack.c.b16 %v323, %v319
    %v452 = vpack.c.b16 %v324, %v320
    %v453 = vpack.c.b16 %v329, %v325
    %v454 = vpack.c.b16 %v330, %v326
    %v455 = vpack.c.b16 %v331, %v327
    %v456 = vpack.c.b16 %v332, %v328
    %v457 = vpack.c.b16 %v337, %v333
    %v458 = vpack.c.b16 %v338, %v334
    %v459 = vpack.c.b16 %v339, %v335
    %v460 = vpack.c.b16 %v340, %v336
    %v461 = vpack.c.b16 %v345, %v341
    %v462 = vpack.c.b16 %v346, %v342
    %v463 = vpack.c.b16 %v347, %v343
    %v464 = vpack.c.b16 %v348, %v344
    %v465 = vpack.c.b16 %v353, %v349
    %v466 = vpack.c.b16 %v354, %v350
    %v467 = vpack.c.b16 %v355, %v351
    %v468 = vpack.c.b16 %v356, %v352
    %v469 = vpack.c.b16 %v361, %v357
    %v470 = vpack.c.b16 %v362, %v358
    %v471 = vpack.c.b16 %v363, %v359
    %v472 = vpack.c.b16 %v364, %v360
    %v473 = vpack.c.b16 %v369, %v365
    %v474 = vpack.c.b16 %v370, %v366
    %v475 = vpack.c.b16 %v371, %v367
    %v476 = vpack.c.b16 %v372, %v368
    %v477 = vpack.c.b16 %v377, %v373
    %v478 = vpack.c.b16 %v378, %v374
    %v479 = vpack.c.b16 %v379, %v375
    %v480 = vpack.c.b16 %v380, %v376
    %v481 = vpack.c.b16 %v385, %v381
    %v482 = vpack.c.b16 %v386, %v382
    %v483 = vpack.c.b16 %v387, %v383
    %v484 = vpack.c.b16 %v388, %v384
    %v485 = vpack.c.b16 %v393, %v389
    %v486 = vpack.c.b16 %v394, %v390
    %v487 = vpack.c.b16 %v395, %v391
    %v488 = vpack.c.b16 %v396, %v392
    %v489 = vpack.c.b16 %v401, %v397
    %v490 = vpack.c.b16 %v402, %v398
    %v491 = vpack.c.b16 %v403, %v399
    %v492 = vpack.c.b16 %v404, %v400
    %v493 = vpack.c.b16 %v409, %v405
    %v494 = vpack.c.b16 %v410, %v406
    %v495 = vpack.c.b16 %v411, %v407
    %v496 = vpack.c.b16 %v412, %v408
    %v497 = vpack.c.b16 %v417, %v413
    %v498 = vpack.c.b16 %v418, %v414
    %v499 = vpack.c.b16 %v419, %v415
    %v500 = vpack.c.b16 %v420, %v416
    %vm581 = vcmask 523264
    %v583 = vsel %vm581, %v178, 0
    %585 = vmatprep.subr.bf16.mxu0 %v450
    %586 = vmatpush1.bf16.msra.mxu0 %v449
    %587 = vmatprep.subr.bf16.mxu0 %v446
    %588 = vmatpush1.bf16.msra.mxu0 %v445
    %589 = vmatprep.subr.bf16.mxu0 %v442
    %590 = vmatpush1.bf16.msra.mxu0 %v441
    %591 = vmatprep.subr.bf16.mxu0 %v438
    %592 = vmatpush1.bf16.msra.mxu0 %v437
    %593 = vmatprep.subr.bf16.mxu0 %v434
    %594 = vmatpush1.bf16.msra.mxu0 %v433
    %595 = vmatprep.subr.bf16.mxu0 %v430
    %596 = vmatpush1.bf16.msra.mxu0 %v429
    %597 = vmatprep.subr.bf16.mxu0 %v426
    %598 = vmatpush1.bf16.msra.mxu0 %v425
    %599 = vmatprep.subr.bf16.mxu0 %v422
    %600 = vmatpush1.bf16.msra.mxu0 %v421
    %601 = vmatprep.subr.bf16.mxu0 %v482
    %602 = vmatpush2.bf16.msra.mxu0 %v481
    %603 = vmatprep.subr.bf16.mxu0 %v478
    %604 = vmatpush2.bf16.msra.mxu0 %v477
    %605 = vmatprep.subr.bf16.mxu0 %v474
    %606 = vmatpush2.bf16.msra.mxu0 %v473
    %607 = vmatprep.subr.bf16.mxu0 %v470
    %608 = vmatpush2.bf16.msra.mxu0 %v469
    %609 = vmatprep.subr.bf16.mxu0 %v466
    %610 = vmatpush2.bf16.msra.mxu0 %v465
    %611 = vmatprep.subr.bf16.mxu0 %v462
    %612 = vmatpush2.bf16.msra.mxu0 %v461
    %613 = vmatprep.subr.bf16.mxu0 %v458
    %614 = vmatpush2.bf16.msra.mxu0 %v457
    %615 = vmatprep.subr.bf16.mxu0 %v454
    %616 = vmatpush2.bf16.msra.mxu0 %v453
    %617 = vmatprep.mubr.bf16.mxu0 %v177
    %618 = vmatmul.mubr.bf16.gmra.mxu0 %v176
    %v619 = vpop.f32.mrf.mxu0
    %v620 = vadd.f32 0.0, %v619
    %v621 = vpop.f32.mrf.mxu0
    %v622 = vadd.f32 0.0, %v621
    %v623 = vpop.f32.mrf.mxu0
    %v624 = vadd.f32 0.0, %v623
    %v625 = vpop.f32.mrf.mxu0
    %v626 = vadd.f32 0.0, %v625
    %627 = vdwg.mxu0
    %628 = vmatprep.subr.bf16.mxu0 0
    %629 = vmatpush1.bf16.msra.mxu0 0
    %630 = vmatprep.subr.bf16.mxu0 0
    %631 = vmatpush1.bf16.msra.mxu0 0
    %632 = vmatprep.subr.bf16.mxu0 0
    %633 = vmatpush1.bf16.msra.mxu0 0
    %634 = vmatprep.subr.bf16.mxu0 0
    %635 = vmatpush1.bf16.msra.mxu0 0
    %636 = vmatprep.subr.bf16.mxu0 %v498
    %637 = vmatpush1.bf16.msra.mxu0 %v497
    %638 = vmatprep.subr.bf16.mxu0 %v494
    %639 = vmatpush1.bf16.msra.mxu0 %v493
    %640 = vmatprep.subr.bf16.mxu0 %v490
    %641 = vmatpush1.bf16.msra.mxu0 %v489
    %642 = vmatprep.subr.bf16.mxu0 %v486
    %643 = vmatpush1.bf16.msra.mxu0 %v485
    %644 = vmatprep.subr.bf16.mxu0 0
    %645 = vmatpush2.bf16.msra.mxu0 0
    %646 = vmatprep.subr.bf16.mxu0 0
    %647 = vmatpush2.bf16.msra.mxu0 0
    %648 = vmatprep.subr.bf16.mxu0 0
    %649 = vmatpush2.bf16.msra.mxu0 0
    %650 = vmatprep.subr.bf16.mxu0 0
    %651 = vmatpush2.bf16.msra.mxu0 0
    %652 = vmatprep.subr.bf16.mxu0 0
    %653 = vmatpush2.bf16.msra.mxu0 0
    %654 = vmatprep.subr.bf16.mxu0 0
    %655 = vmatpush2.bf16.msra.mxu0 0
    %656 = vmatprep.subr.bf16.mxu0 0
    %657 = vmatpush2.bf16.msra.mxu0 0
    %658 = vmatprep.subr.bf16.mxu0 0
    %659 = vmatpush2.bf16.msra.mxu0 0
    %660 = vmatprep.mubr.bf16.mxu0 0
    %661 = vmatmul.mubr.bf16.gmra.mxu0 %v583
    %v662 = vpop.f32.mrf.mxu0
    %v663 = vadd.f32 %v620, %v662
    %v664 = vpop.f32.mrf.mxu0
    %v665 = vadd.f32 %v622, %v664
    %v666 = vpop.f32.mrf.mxu0
    %v667 = vadd.f32 %v624, %v666
    %v668 = vpop.f32.mrf.mxu0
    %v669 = vadd.f32 %v626, %v668
    %670 = vdwg.mxu0
    %671 = vmatprep.subr.bf16.mxu0 %v452
    %672 = vmatpush1.bf16.msra.mxu0 %v451
    %673 = vmatprep.subr.bf16.mxu0 %v448
    %674 = vmatpush1.bf16.msra.mxu0 %v447
    %675 = vmatprep.subr.bf16.mxu0 %v444
    %676 = vmatpush1.bf16.msra.mxu0 %v443
    %677 = vmatprep.subr.bf16.mxu0 %v440
    %678 = vmatpush1.bf16.msra.mxu0 %v439
    %679 = vmatprep.subr.bf16.mxu0 %v436
    %680 = vmatpush1.bf16.msra.mxu0 %v435
    %681 = vmatprep.subr.bf16.mxu0 %v432
    %682 = vmatpush1.bf16.msra.mxu0 %v431
    %683 = vmatprep.subr.bf16.mxu0 %v428
    %684 = vmatpush1.bf16.msra.mxu0 %v427
    %685 = vmatprep.subr.bf16.mxu0 %v424
    %686 = vmatpush1.bf16.msra.mxu0 %v423
    %687 = vmatprep.subr.bf16.mxu0 %v484
    %688 = vmatpush2.bf16.msra.mxu0 %v483
    %689 = vmatprep.subr.bf16.mxu0 %v480
    %690 = vmatpush2.bf16.msra.mxu0 %v479
    %691 = vmatprep.subr.bf16.mxu0 %v476
    %692 = vmatpush2.bf16.msra.mxu0 %v475
    %693 = vmatprep.subr.bf16.mxu0 %v472
    %694 = vmatpush2.bf16.msra.mxu0 %v471
    %695 = vmatprep.subr.bf16.mxu0 %v468
    %696 = vmatpush2.bf16.msra.mxu0 %v467
    %697 = vmatprep.subr.bf16.mxu0 %v464
    %698 = vmatpush2.bf16.msra.mxu0 %v463
    %699 = vmatprep.subr.bf16.mxu0 %v460
    %700 = vmatpush2.bf16.msra.mxu0 %v459
    %701 = vmatprep.subr.bf16.mxu0 %v456
    %702 = vmatpush2.bf16.msra.mxu0 %v455
    %703 = vmatprep.mubr.bf16.mxu0 %v177
    %704 = vmatmul.mubr.bf16.gmra.mxu0 %v176
    %v705 = vpop.f32.mrf.mxu0
    %v706 = vadd.f32 0.0, %v705
    %v707 = vpop.f32.mrf.mxu0
    %v708 = vadd.f32 0.0, %v707
    %v709 = vpop.f32.mrf.mxu0
    %v710 = vadd.f32 0.0, %v709
    %v711 = vpop.f32.mrf.mxu0
    %v712 = vadd.f32 0.0, %v711
    %713 = vdwg.mxu0
    %714 = vmatprep.subr.bf16.mxu0 0
    %715 = vmatpush1.bf16.msra.mxu0 0
    %716 = vmatprep.subr.bf16.mxu0 0
    %717 = vmatpush1.bf16.msra.mxu0 0
    %718 = vmatprep.subr.bf16.mxu0 0
    %719 = vmatpush1.bf16.msra.mxu0 0
    %720 = vmatprep.subr.bf16.mxu0 0
    %721 = vmatpush1.bf16.msra.mxu0 0
    %722 = vmatprep.subr.bf16.mxu0 %v500
    %723 = vmatpush1.bf16.msra.mxu0 %v499
    %724 = vmatprep.subr.bf16.mxu0 %v496
    %725 = vmatpush1.bf16.msra.mxu0 %v495
    %726 = vmatprep.subr.bf16.mxu0 %v492
    %727 = vmatpush1.bf16.msra.mxu0 %v491
    %728 = vmatprep.subr.bf16.mxu0 %v488
    %729 = vmatpush1.bf16.msra.mxu0 %v487
    %730 = vmatprep.subr.bf16.mxu0 0
    %731 = vmatpush2.bf16.msra.mxu0 0
    %732 = vmatprep.subr.bf16.mxu0 0
    %733 = vmatpush2.bf16.msra.mxu0 0
    %734 = vmatprep.subr.bf16.mxu0 0
    %735 = vmatpush2.bf16.msra.mxu0 0
    %736 = vmatprep.subr.bf16.mxu0 0
    %737 = vmatpush2.bf16.msra.mxu0 0
    %738 = vmatprep.subr.bf16.mxu0 0
    %739 = vmatpush2.bf16.msra.mxu0 0
    %740 = vmatprep.subr.bf16.mxu0 0
    %741 = vmatpush2.bf16.msra.mxu0 0
    %742 = vmatprep.subr.bf16.mxu0 0
    %743 = vmatpush2.bf16.msra.mxu0 0
    %744 = vmatprep.subr.bf16.mxu0 0
    %745 = vmatpush2.bf16.msra.mxu0 0
    %746 = vmatprep.mubr.bf16.mxu0 0
    %747 = vmatmul.mubr.bf16.gmra.mxu0 %v583
    %v748 = vpop.f32.mrf.mxu0
    %v749 = vadd.f32 %v706, %v748
    %v750 = vpop.f32.mrf.mxu0
    %v751 = vadd.f32 %v708, %v750
    %v752 = vpop.f32.mrf.mxu0
    %v753 = vadd.f32 %v710, %v752
    %v754 = vpop.f32.mrf.mxu0
    %v755 = vadd.f32 %v712, %v754
    %756 = vdwg.mxu0
    %v757 = vld [vmem:[%s6] sm:$0xff]
    %v758 = vld [vmem:[%s6 + $0x8] sm:$0xff]
    %v759 = vld [vmem:[%s6 + $0x10] sm:$0xff]
    %v760 = vld [vmem:[%s6 + $0x18] sm:$0xff]
    %v761 = vld [vmem:[%s6 + $0x20] sm:$0xff]
    %v762 = vld [vmem:[%s6 + $0x28] sm:$0xff]
    %v763 = vld [vmem:[%s6 + $0x30] sm:$0xff]
    %v764 = vld [vmem:[%s6 + $0x38] sm:$0xff]
    %v765 = vld [vmem:[%s6 + $0x40] sm:$0xff]
    %v766 = vld [vmem:[%s6 + $0x48] sm:$0xff]
    %v767 = vld [vmem:[%s6 + $0x50] sm:$0xff]
    %v768 = vld [vmem:[%s6 + $0x58] sm:$0xff]
    %v769 = vld [vmem:[%s6 + $0x60] sm:$0xff]
    %v770 = vld [vmem:[%s6 + $0x68] sm:$0xff]
    %v771 = vld [vmem:[%s6 + $0x70] sm:$0xff]
    %v772 = vld [vmem:[%s6 + $0x78] sm:$0xff]
    %v773 = vld [vmem:[%s6 + $0x80] sm:$0xff]
    %v774 = vld [vmem:[%s6 + $0x88] sm:$0xff]
    %v775 = vld [vmem:[%s6 + $0x90] sm:$0xff]
    %v776 = vld [vmem:[%s6 + $0x98] sm:$0xff]
    %v777 = vld [vmem:[%s6 + $0xa0] sm:$0xff]
    %v778 = vld [vmem:[%s6 + $0xa8] sm:$0xff]
    %v779 = vld [vmem:[%s6 + $0xb0] sm:$0xff]
    %v780 = vld [vmem:[%s6 + $0xb8] sm:$0xff]
    %v781 = vld [vmem:[%s6 + $0xc0] sm:$0xff]
    %v782 = vld [vmem:[%s6 + $0xc8] sm:$0xff]
    %v783 = vld [vmem:[%s6 + $0xd0] sm:$0xff]
    %v784 = vld [vmem:[%s6 + $0xd8] sm:$0xff]
    %v785 = vld [vmem:[%s6 + $0xe0] sm:$0xff]
    %v786 = vld [vmem:[%s6 + $0xe8] sm:$0xff]
    %v787 = vld [vmem:[%s6 + $0xf0] sm:$0xff]
    %v788 = vld [vmem:[%s6 + $0xf8] sm:$0xff]
    %v789 = vld [vmem:[%s6 + $0x100] sm:$0xff]
    %v790 = vld [vmem:[%s6 + $0x108] sm:$0xff]
    %v791 = vld [vmem:[%s6 + $0x110] sm:$0xff]
    %v792 = vld [vmem:[%s6 + $0x118] sm:$0xff]
    %v793 = vld [vmem:[%s6 + $0x120] sm:$0xff]
    %v794 = vld [vmem:[%s6 + $0x128] sm:$0xff]
    %v795 = vld [vmem:[%s6 + $0x130] sm:$0xff]
    %v796 = vld [vmem:[%s6 + $0x138] sm:$0xff]
    %v797 = vld [vmem:[%s6 + $0x140] sm:$0xff]
    %v798 = vld [vmem:[%s6 + $0x148] sm:$0xff]
    %v799 = vld [vmem:[%s6 + $0x150] sm:$0xff]
    %v800 = vld [vmem:[%s6 + $0x158] sm:$0xff]
    %v801 = vld [vmem:[%s6 + $0x160] sm:$0xff]
    %v802 = vld [vmem:[%s6 + $0x168] sm:$0xff]
    %v803 = vld [vmem:[%s6 + $0x170] sm:$0xff]
    %v804 = vld [vmem:[%s6 + $0x178] sm:$0xff]
    %v805 = vld [vmem:[%s6 + $0x180] sm:$0xff]
    %v806 = vld [vmem:[%s6 + $0x188] sm:$0xff]
    %v807 = vld [vmem:[%s6 + $0x190] sm:$0xff]
    %v808 = vld [vmem:[%s6 + $0x198] sm:$0xff]
    %v809 = vld [vmem:[%s6 + $0x1a0] sm:$0xff]
    %v810 = vld [vmem:[%s6 + $0x1a8] sm:$0xff]
    %v811 = vld [vmem:[%s6 + $0x1b0] sm:$0xff]
    %v812 = vld [vmem:[%s6 + $0x1b8] sm:$0xff]
    %v813 = vld [vmem:[%s6 + $0x1c0] sm:$0xff]
    %v814 = vld [vmem:[%s6 + $0x1c8] sm:$0xff]
    %v815 = vld [vmem:[%s6 + $0x1d0] sm:$0xff]
    %v816 = vld [vmem:[%s6 + $0x1d8] sm:$0xff]
    %v817 = vld [vmem:[%s6 + $0x1e0] sm:$0xff]
    %v818 = vld [vmem:[%s6 + $0x1e8] sm:$0xff]
    %v819 = vld [vmem:[%s6 + $0x1f0] sm:$0xff]
    %v820 = vld [vmem:[%s6 + $0x1f8] sm:$0xff]
    %v821 = vld [vmem:[%s7] sm:$0xff]
    %v822 = vld [vmem:[%s7 + $0x8] sm:$0xff]
    %v823 = vld [vmem:[%s7 + $0x10] sm:$0xff]
    %v824 = vld [vmem:[%s7 + $0x18] sm:$0xff]
    %v825 = vld [vmem:[%s7 + $0x20] sm:$0xff]
    %v826 = vld [vmem:[%s7 + $0x28] sm:$0xff]
    %v827 = vld [vmem:[%s7 + $0x30] sm:$0xff]
    %v828 = vld [vmem:[%s7 + $0x38] sm:$0xff]
    %v829 = vld [vmem:[%s7 + $0x40] sm:$0xff]
    %v830 = vld [vmem:[%s7 + $0x48] sm:$0xff]
    %v831 = vld [vmem:[%s7 + $0x50] sm:$0xff]
    %v832 = vld [vmem:[%s7 + $0x58] sm:$0xff]
    %v833 = vld [vmem:[%s7 + $0x60] sm:$0xff]
    %v834 = vld [vmem:[%s7 + $0x68] sm:$0xff]
    %v835 = vld [vmem:[%s7 + $0x70] sm:$0xff]
    %v836 = vld [vmem:[%s7 + $0x78] sm:$0xff]
    %v837 = vld [vmem:[%s8] ss:$2 sm:$0xf]
    %s838 = scalar_lea.vmem %s8, 1
    %v839 = vld [vmem:[%s838] ss:$2 sm:$0xf]
    %vm840 = vcmask 1043456
    %v841 = vsel %vm840, %v667, 0.0
    %v842 = vadd.f32 %v663, %v841
    %v843 = vrot.slane %v842, 4
    %v844 = vadd.f32 %v842, %v843
    %v845 = vrot.slane %v844, 2
    %v846 = vadd.f32 %v844, %v845
    %v847 = vrot.slane %v846, 1
    %v848 = vadd.f32 %v846, %v847
    %v849 = vsel %vm840, %v669, 0.0
    %v850 = vadd.f32 %v665, %v849
    %v851 = vrot.slane %v850, 4
    %v852 = vadd.f32 %v850, %v851
    %v853 = vrot.slane %v852, 2
    %v854 = vadd.f32 %v852, %v853
    %v855 = vrot.slane %v854, 1
    %v856 = vadd.f32 %v854, %v855
    %v857 = vsel %vm840, %v753, 0.0
    %v858 = vadd.f32 %v749, %v857
    %v859 = vrot.slane %v858, 4
    %v860 = vadd.f32 %v858, %v859
    %v861 = vrot.slane %v860, 2
    %v862 = vadd.f32 %v860, %v861
    %v863 = vrot.slane %v862, 1
    %v864 = vadd.f32 %v862, %v863
    %v865 = vsel %vm840, %v755, 0.0
    %v866 = vadd.f32 %v751, %v865
    %v867 = vrot.slane %v866, 4
    %v868 = vadd.f32 %v866, %v867
    %v869 = vrot.slane %v868, 2
    %v870 = vadd.f32 %v868, %v869
    %v871 = vrot.slane %v870, 1
    %v872 = vadd.f32 %v870, %v871
    %873 = vmatprep.subr.mxu0 0.0
    %874 = vmatpush1.msra.mxu0 %v772
    %875 = vmatprep.subr.mxu0 0.0
    %876 = vmatpush1.msra.mxu0 %v771
    %877 = vmatprep.subr.mxu0 0.0
    %878 = vmatpush1.msra.mxu0 %v770
    %879 = vmatprep.subr.mxu0 0.0
    %880 = vmatpush1.msra.mxu0 %v769
    %881 = vmatprep.subr.mxu0 0.0
    %882 = vmatpush1.msra.mxu0 %v768
    %883 = vmatprep.subr.mxu0 0.0
    %884 = vmatpush1.msra.mxu0 %v767
    %885 = vmatprep.subr.mxu0 0.0
    %886 = vmatpush1.msra.mxu0 %v766
    %887 = vmatprep.subr.mxu0 0.0
    %888 = vmatpush1.msra.mxu0 %v765
    %889 = vmatprep.subr.mxu0 0.0
    %890 = vmatpush1.msra.mxu0 %v764
    %891 = vmatprep.subr.mxu0 0.0
    %892 = vmatpush1.msra.mxu0 %v763
    %893 = vmatprep.subr.mxu0 0.0
    %894 = vmatpush1.msra.mxu0 %v762
    %895 = vmatprep.subr.mxu0 0.0
    %896 = vmatpush1.msra.mxu0 %v761
    %897 = vmatprep.subr.mxu0 0.0
    %898 = vmatpush1.msra.mxu0 %v760
    %899 = vmatprep.subr.mxu0 0.0
    %900 = vmatpush1.msra.mxu0 %v759
    %901 = vmatprep.subr.mxu0 0.0
    %902 = vmatpush1.msra.mxu0 %v758
    %903 = vmatprep.subr.mxu0 0.0
    %904 = vmatpush1.msra.mxu0 %v757
    %905 = vmatprep.subr.mxu0 0.0
    %906 = vmatpush2.msra.mxu0 %v788
    %907 = vmatprep.subr.mxu0 0.0
    %908 = vmatpush2.msra.mxu0 %v787
    %909 = vmatprep.subr.mxu0 0.0
    %910 = vmatpush2.msra.mxu0 %v786
    %911 = vmatprep.subr.mxu0 0.0
    %912 = vmatpush2.msra.mxu0 %v785
    %913 = vmatprep.subr.mxu0 0.0
    %914 = vmatpush2.msra.mxu0 %v784
    %915 = vmatprep.subr.mxu0 0.0
    %916 = vmatpush2.msra.mxu0 %v783
    %917 = vmatprep.subr.mxu0 0.0
    %918 = vmatpush2.msra.mxu0 %v782
    %919 = vmatprep.subr.mxu0 0.0
    %920 = vmatpush2.msra.mxu0 %v781
    %921 = vmatprep.subr.mxu0 0.0
    %922 = vmatpush2.msra.mxu0 %v780
    %923 = vmatprep.subr.mxu0 0.0
    %924 = vmatpush2.msra.mxu0 %v779
    %925 = vmatprep.subr.mxu0 0.0
    %926 = vmatpush2.msra.mxu0 %v778
    %927 = vmatprep.subr.mxu0 0.0
    %928 = vmatpush2.msra.mxu0 %v777
    %929 = vmatprep.subr.mxu0 0.0
    %930 = vmatpush2.msra.mxu0 %v776
    %931 = vmatprep.subr.mxu0 0.0
    %932 = vmatpush2.msra.mxu0 %v775
    %933 = vmatprep.subr.mxu0 0.0
    %934 = vmatpush2.msra.mxu0 %v774
    %935 = vmatprep.subr.mxu0 0.0
    %936 = vmatpush2.msra.mxu0 %v773
    %937 = vmatprep.mubr.f32.mxu0 %v856
    %938 = vmatmul.mubr.f32.gmra.mxu0 %v848
    %v939 = vpop.f32.mrf.mxu0
    %v940 = vadd.f32 0.0, %v939
    %v941 = vpop.f32.mrf.mxu0
    %942 = vdwg.mxu0
    %943 = vmatprep.subr.mxu0 0.0
    %944 = vmatpush1.msra.mxu0 %v804
    %945 = vmatprep.subr.mxu0 0.0
    %946 = vmatpush1.msra.mxu0 %v803
    %947 = vmatprep.subr.mxu0 0.0
    %948 = vmatpush1.msra.mxu0 %v802
    %949 = vmatprep.subr.mxu0 0.0
    %950 = vmatpush1.msra.mxu0 %v801
    %951 = vmatprep.subr.mxu0 0.0
    %952 = vmatpush1.msra.mxu0 %v800
    %953 = vmatprep.subr.mxu0 0.0
    %954 = vmatpush1.msra.mxu0 %v799
    %955 = vmatprep.subr.mxu0 0.0
    %956 = vmatpush1.msra.mxu0 %v798
    %957 = vmatprep.subr.mxu0 0.0
    %958 = vmatpush1.msra.mxu0 %v797
    %959 = vmatprep.subr.mxu0 0.0
    %960 = vmatpush1.msra.mxu0 %v796
    %961 = vmatprep.subr.mxu0 0.0
    %962 = vmatpush1.msra.mxu0 %v795
    %963 = vmatprep.subr.mxu0 0.0
    %964 = vmatpush1.msra.mxu0 %v794
    %965 = vmatprep.subr.mxu0 0.0
    %966 = vmatpush1.msra.mxu0 %v793
    %967 = vmatprep.subr.mxu0 0.0
    %968 = vmatpush1.msra.mxu0 %v792
    %969 = vmatprep.subr.mxu0 0.0
    %970 = vmatpush1.msra.mxu0 %v791
    %971 = vmatprep.subr.mxu0 0.0
    %972 = vmatpush1.msra.mxu0 %v790
    %973 = vmatprep.subr.mxu0 0.0
    %974 = vmatpush1.msra.mxu0 %v789
    %975 = vmatprep.subr.mxu0 0.0
    %976 = vmatpush2.msra.mxu0 %v820
    %977 = vmatprep.subr.mxu0 0.0
    %978 = vmatpush2.msra.mxu0 %v819
    %979 = vmatprep.subr.mxu0 0.0
    %980 = vmatpush2.msra.mxu0 %v818
    %981 = vmatprep.subr.mxu0 0.0
    %982 = vmatpush2.msra.mxu0 %v817
    %983 = vmatprep.subr.mxu0 0.0
    %984 = vmatpush2.msra.mxu0 %v816
    %985 = vmatprep.subr.mxu0 0.0
    %986 = vmatpush2.msra.mxu0 %v815
    %987 = vmatprep.subr.mxu0 0.0
    %988 = vmatpush2.msra.mxu0 %v814
    %989 = vmatprep.subr.mxu0 0.0
    %990 = vmatpush2.msra.mxu0 %v813
    %991 = vmatprep.subr.mxu0 0.0
    %992 = vmatpush2.msra.mxu0 %v812
    %993 = vmatprep.subr.mxu0 0.0
    %994 = vmatpush2.msra.mxu0 %v811
    %995 = vmatprep.subr.mxu0 0.0
    %996 = vmatpush2.msra.mxu0 %v810
    %997 = vmatprep.subr.mxu0 0.0
    %998 = vmatpush2.msra.mxu0 %v809
    %999 = vmatprep.subr.mxu0 0.0
    %1000 = vmatpush2.msra.mxu0 %v808
    %1001 = vmatprep.subr.mxu0 0.0
    %1002 = vmatpush2.msra.mxu0 %v807
    %1003 = vmatprep.subr.mxu0 0.0
    %1004 = vmatpush2.msra.mxu0 %v806
    %1005 = vmatprep.subr.mxu0 0.0
    %1006 = vmatpush2.msra.mxu0 %v805
    %1007 = vmatprep.mubr.f32.mxu0 %v872
    %1008 = vmatmul.mubr.f32.gmra.mxu0 %v864
    %v1009 = vpop.f32.mrf.mxu0
    %v1010 = vadd.f32 %v940, %v1009
    %v1011 = vpop.f32.mrf.mxu0
    %1012 = vdwg.mxu0
    %v1013 = vmul.f32 %v1010, 0.0052083335
    %vm1014 = vcmask 261120
    %v1016 = vsel %vm1014, %v1013, 0
    %1018 = vmatprep.subr.mxu0 0.0
    %1019 = vmatpush1.msra.mxu0 0.0
    %1020 = vmatprep.subr.mxu0 0.0
    %1021 = vmatpush1.msra.mxu0 0.0
    %1022 = vmatprep.subr.mxu0 0.0
    %1023 = vmatpush1.msra.mxu0 0.0
    %1024 = vmatprep.subr.mxu0 0.0
    %1025 = vmatpush1.msra.mxu0 0.0
    %1026 = vmatprep.subr.mxu0 0.0
    %1027 = vmatpush1.msra.mxu0 0.0
    %1028 = vmatprep.subr.mxu0 0.0
    %1029 = vmatpush1.msra.mxu0 0.0
    %1030 = vmatprep.subr.mxu0 0.0
    %1031 = vmatpush1.msra.mxu0 0.0
    %1032 = vmatprep.subr.mxu0 0.0
    %1033 = vmatpush1.msra.mxu0 0.0
    %1034 = vmatprep.subr.mxu0 0.0
    %1035 = vmatpush1.msra.mxu0 0.0
    %1036 = vmatprep.subr.mxu0 0.0
    %1037 = vmatpush1.msra.mxu0 0.0
    %1038 = vmatprep.subr.mxu0 0.0
    %1039 = vmatpush1.msra.mxu0 0.0
    %1040 = vmatprep.subr.mxu0 0.0
    %1041 = vmatpush1.msra.mxu0 0.0
    %1042 = vmatprep.subr.mxu0 %v834
    %1043 = vmatpush1.msra.mxu0 %v833
    %1044 = vmatprep.subr.mxu0 %v830
    %1045 = vmatpush1.msra.mxu0 %v829
    %1046 = vmatprep.subr.mxu0 %v826
    %1047 = vmatpush1.msra.mxu0 %v825
    %1048 = vmatprep.subr.mxu0 %v822
    %1049 = vmatpush1.msra.mxu0 %v821
    %1050 = vmatprep.subr.mxu0 0.0
    %1051 = vmatpush2.msra.mxu0 0.0
    %1052 = vmatprep.subr.mxu0 0.0
    %1053 = vmatpush2.msra.mxu0 0.0
    %1054 = vmatprep.subr.mxu0 0.0
    %1055 = vmatpush2.msra.mxu0 0.0
    %1056 = vmatprep.subr.mxu0 0.0
    %1057 = vmatpush2.msra.mxu0 0.0
    %1058 = vmatprep.subr.mxu0 0.0
    %1059 = vmatpush2.msra.mxu0 0.0
    %1060 = vmatprep.subr.mxu0 0.0
    %1061 = vmatpush2.msra.mxu0 0.0
    %1062 = vmatprep.subr.mxu0 0.0
    %1063 = vmatpush2.msra.mxu0 0.0
    %1064 = vmatprep.subr.mxu0 0.0
    %1065 = vmatpush2.msra.mxu0 0.0
    %1066 = vmatprep.subr.mxu0 0.0
    %1067 = vmatpush2.msra.mxu0 0.0
    %1068 = vmatprep.subr.mxu0 0.0
    %1069 = vmatpush2.msra.mxu0 0.0
    %1070 = vmatprep.subr.mxu0 0.0
    %1071 = vmatpush2.msra.mxu0 0.0
    %1072 = vmatprep.subr.mxu0 0.0
    %1073 = vmatpush2.msra.mxu0 0.0
    %1074 = vmatprep.subr.mxu0 0.0
    %1075 = vmatpush2.msra.mxu0 0.0
    %1076 = vmatprep.subr.mxu0 0.0
    %1077 = vmatpush2.msra.mxu0 0.0
    %1078 = vmatprep.subr.mxu0 0.0
    %1079 = vmatpush2.msra.mxu0 0.0
    %1080 = vmatprep.subr.mxu0 0.0
    %1081 = vmatpush2.msra.mxu0 0.0
    %1082 = vmatprep.mubr.f32.mxu0 0.0
    %1083 = vmatmul.mubr.f32.gmra.mxu0 %v1016
    %v1084 = vpop.f32.mrf.mxu0
    %v1085 = vadd.f32 0.0, %v1084
    %v1086 = vpop.f32.mrf.mxu0
    %v1087 = vadd.f32 0.0, %v1086
    %1088 = vdwg.mxu0
    %1089 = vmatprep.subr.mxu0 0.0
    %1090 = vmatpush1.msra.mxu0 0.0
    %1091 = vmatprep.subr.mxu0 0.0
    %1092 = vmatpush1.msra.mxu0 0.0
    %1093 = vmatprep.subr.mxu0 0.0
    %1094 = vmatpush1.msra.mxu0 0.0
    %1095 = vmatprep.subr.mxu0 0.0
    %1096 = vmatpush1.msra.mxu0 0.0
    %1097 = vmatprep.subr.mxu0 0.0
    %1098 = vmatpush1.msra.mxu0 0.0
    %1099 = vmatprep.subr.mxu0 0.0
    %1100 = vmatpush1.msra.mxu0 0.0
    %1101 = vmatprep.subr.mxu0 0.0
    %1102 = vmatpush1.msra.mxu0 0.0
    %1103 = vmatprep.subr.mxu0 0.0
    %1104 = vmatpush1.msra.mxu0 0.0
    %1105 = vmatprep.subr.mxu0 0.0
    %1106 = vmatpush1.msra.mxu0 0.0
    %1107 = vmatprep.subr.mxu0 0.0
    %1108 = vmatpush1.msra.mxu0 0.0
    %1109 = vmatprep.subr.mxu0 0.0
    %1110 = vmatpush1.msra.mxu0 0.0
    %1111 = vmatprep.subr.mxu0 0.0
    %1112 = vmatpush1.msra.mxu0 0.0
    %1113 = vmatprep.subr.mxu0 %v836
    %1114 = vmatpush1.msra.mxu0 %v835
    %1115 = vmatprep.subr.mxu0 %v832
    %1116 = vmatpush1.msra.mxu0 %v831
    %1117 = vmatprep.subr.mxu0 %v828
    %1118 = vmatpush1.msra.mxu0 %v827
    %1119 = vmatprep.subr.mxu0 %v824
    %1120 = vmatpush1.msra.mxu0 %v823
    %1121 = vmatprep.subr.mxu0 0.0
    %1122 = vmatpush2.msra.mxu0 0.0
    %1123 = vmatprep.subr.mxu0 0.0
    %1124 = vmatpush2.msra.mxu0 0.0
    %1125 = vmatprep.subr.mxu0 0.0
    %1126 = vmatpush2.msra.mxu0 0.0
    %1127 = vmatprep.subr.mxu0 0.0
    %1128 = vmatpush2.msra.mxu0 0.0
    %1129 = vmatprep.subr.mxu0 0.0
    %1130 = vmatpush2.msra.mxu0 0.0
    %1131 = vmatprep.subr.mxu0 0.0
    %1132 = vmatpush2.msra.mxu0 0.0
    %1133 = vmatprep.subr.mxu0 0.0
    %1134 = vmatpush2.msra.mxu0 0.0
    %1135 = vmatprep.subr.mxu0 0.0
    %1136 = vmatpush2.msra.mxu0 0.0
    %1137 = vmatprep.subr.mxu0 0.0
    %1138 = vmatpush2.msra.mxu0 0.0
    %1139 = vmatprep.subr.mxu0 0.0
    %1140 = vmatpush2.msra.mxu0 0.0
    %1141 = vmatprep.subr.mxu0 0.0
    %1142 = vmatpush2.msra.mxu0 0.0
    %1143 = vmatprep.subr.mxu0 0.0
    %1144 = vmatpush2.msra.mxu0 0.0
    %1145 = vmatprep.subr.mxu0 0.0
    %1146 = vmatpush2.msra.mxu0 0.0
    %1147 = vmatprep.subr.mxu0 0.0
    %1148 = vmatpush2.msra.mxu0 0.0
    %1149 = vmatprep.subr.mxu0 0.0
    %1150 = vmatpush2.msra.mxu0 0.0
    %1151 = vmatprep.subr.mxu0 0.0
    %1152 = vmatpush2.msra.mxu0 0.0
    %1153 = vmatprep.mubr.f32.mxu0 0.0
    %1154 = vmatmul.mubr.f32.gmra.mxu0 %v1016
    %v1155 = vpop.f32.mrf.mxu0
    %v1156 = vadd.f32 0.0, %v1155
    %v1157 = vpop.f32.mrf.mxu0
    %v1158 = vadd.f32 0.0, %v1157
    %1159 = vdwg.mxu0
    %v1160 = vlaneseq
    %v1161 = vshrl.u32 %v1160, 7
    %v1162 = vsub.s32 0, %v1161
    %v1163 = vrot.slane %v1085, %v1162
    %v1164 = vlaneseq
    %v1165 = vshrl.u32 %v1164, 7
    %v1166 = vsub.s32 0, %v1165
    %v1167 = vrot.slane %v1087, %v1166
    %v1168 = vlaneseq
    %v1169 = vshrl.u32 %v1168, 7
    %v1170 = vsub.s32 0, %v1169
    %v1171 = vrot.slane %v1156, %v1170
    %v1172 = vlaneseq
    %v1173 = vshrl.u32 %v1172, 7
    %v1174 = vsub.s32 0, %v1173
    %v1175 = vrot.slane %v1158, %v1174
    %v1176 = vsub.f32 %v663, %v1163
    %v1177 = vsub.f32 %v665, %v1167
    %v1178 = vsub.f32 %v749, %v1171
    %v1179 = vsub.f32 %v751, %v1175
    %v1180 = vsub.f32 %v667, %v1163
    %v1181 = vsub.f32 %v669, %v1167
    %v1182 = vsub.f32 %v753, %v1171
    %v1183 = vsub.f32 %v755, %v1175
    %v1184 = vmul.f32 %v1176, %v1176
    %v1185 = vmul.f32 %v1177, %v1177
    %v1186 = vmul.f32 %v1178, %v1178
    %v1187 = vmul.f32 %v1179, %v1179
    %v1188 = vmul.f32 %v1180, %v1180
    %v1189 = vmul.f32 %v1181, %v1181
    %v1190 = vmul.f32 %v1182, %v1182
    %v1191 = vmul.f32 %v1183, %v1183
    %v1192 = vsel %vm840, %v1188, 0.0
    %v1193 = vadd.f32 %v1184, %v1192
    %v1194 = vrot.slane %v1193, 4
    %v1195 = vadd.f32 %v1193, %v1194
    %v1196 = vrot.slane %v1195, 2
    %v1197 = vadd.f32 %v1195, %v1196
    %v1198 = vrot.slane %v1197, 1
    %v1199 = vadd.f32 %v1197, %v1198
    %v1200 = vsel %vm840, %v1189, 0.0
    %v1201 = vadd.f32 %v1185, %v1200
    %v1202 = vrot.slane %v1201, 4
    %v1203 = vadd.f32 %v1201, %v1202
    %v1204 = vrot.slane %v1203, 2
    %v1205 = vadd.f32 %v1203, %v1204
    %v1206 = vrot.slane %v1205, 1
    %v1207 = vadd.f32 %v1205, %v1206
    %v1208 = vsel %vm840, %v1190, 0.0
    %v1209 = vadd.f32 %v1186, %v1208
    %v1210 = vrot.slane %v1209, 4
    %v1211 = vadd.f32 %v1209, %v1210
    %v1212 = vrot.slane %v1211, 2
    %v1213 = vadd.f32 %v1211, %v1212
    %v1214 = vrot.slane %v1213, 1
    %v1215 = vadd.f32 %v1213, %v1214
    %v1216 = vsel %vm840, %v1191, 0.0
    %v1217 = vadd.f32 %v1187, %v1216
    %v1218 = vrot.slane %v1217, 4
    %v1219 = vadd.f32 %v1217, %v1218
    %v1220 = vrot.slane %v1219, 2
    %v1221 = vadd.f32 %v1219, %v1220
    %v1222 = vrot.slane %v1221, 1
    %v1223 = vadd.f32 %v1221, %v1222
    %1224 = vmatprep.subr.mxu0 0.0
    %1225 = vmatpush1.msra.mxu0 %v772
    %1226 = vmatprep.subr.mxu0 0.0
    %1227 = vmatpush1.msra.mxu0 %v771
    %1228 = vmatprep.subr.mxu0 0.0
    %1229 = vmatpush1.msra.mxu0 %v770
    %1230 = vmatprep.subr.mxu0 0.0
    %1231 = vmatpush1.msra.mxu0 %v769
    %1232 = vmatprep.subr.mxu0 0.0
    %1233 = vmatpush1.msra.mxu0 %v768
    %1234 = vmatprep.subr.mxu0 0.0
    %1235 = vmatpush1.msra.mxu0 %v767
    %1236 = vmatprep.subr.mxu0 0.0
    %1237 = vmatpush1.msra.mxu0 %v766
    %1238 = vmatprep.subr.mxu0 0.0
    %1239 = vmatpush1.msra.mxu0 %v765
    %1240 = vmatprep.subr.mxu0 0.0
    %1241 = vmatpush1.msra.mxu0 %v764
    %1242 = vmatprep.subr.mxu0 0.0
    %1243 = vmatpush1.msra.mxu0 %v763
    %1244 = vmatprep.subr.mxu0 0.0
    %1245 = vmatpush1.msra.mxu0 %v762
    %1246 = vmatprep.subr.mxu0 0.0
    %1247 = vmatpush1.msra.mxu0 %v761
    %1248 = vmatprep.subr.mxu0 0.0
    %1249 = vmatpush1.msra.mxu0 %v760
    %1250 = vmatprep.subr.mxu0 0.0
    %1251 = vmatpush1.msra.mxu0 %v759
    %1252 = vmatprep.subr.mxu0 0.0
    %1253 = vmatpush1.msra.mxu0 %v758
    %1254 = vmatprep.subr.mxu0 0.0
    %1255 = vmatpush1.msra.mxu0 %v757
    %1256 = vmatprep.subr.mxu0 0.0
    %1257 = vmatpush2.msra.mxu0 %v788
    %1258 = vmatprep.subr.mxu0 0.0
    %1259 = vmatpush2.msra.mxu0 %v787
    %1260 = vmatprep.subr.mxu0 0.0
    %1261 = vmatpush2.msra.mxu0 %v786
    %1262 = vmatprep.subr.mxu0 0.0
    %1263 = vmatpush2.msra.mxu0 %v785
    %1264 = vmatprep.subr.mxu0 0.0
    %1265 = vmatpush2.msra.mxu0 %v784
    %1266 = vmatprep.subr.mxu0 0.0
    %1267 = vmatpush2.msra.mxu0 %v783
    %1268 = vmatprep.subr.mxu0 0.0
    %1269 = vmatpush2.msra.mxu0 %v782
    %1270 = vmatprep.subr.mxu0 0.0
    %1271 = vmatpush2.msra.mxu0 %v781
    %1272 = vmatprep.subr.mxu0 0.0
    %1273 = vmatpush2.msra.mxu0 %v780
    %1274 = vmatprep.subr.mxu0 0.0
    %1275 = vmatpush2.msra.mxu0 %v779
    %1276 = vmatprep.subr.mxu0 0.0
    %1277 = vmatpush2.msra.mxu0 %v778
    %1278 = vmatprep.subr.mxu0 0.0
    %1279 = vmatpush2.msra.mxu0 %v777
    %1280 = vmatprep.subr.mxu0 0.0
    %1281 = vmatpush2.msra.mxu0 %v776
    %1282 = vmatprep.subr.mxu0 0.0
    %1283 = vmatpush2.msra.mxu0 %v775
    %1284 = vmatprep.subr.mxu0 0.0
    %1285 = vmatpush2.msra.mxu0 %v774
    %1286 = vmatprep.subr.mxu0 0.0
    %1287 = vmatpush2.msra.mxu0 %v773
    %1288 = vmatprep.mubr.f32.mxu0 %v1207
    %1289 = vmatmul.mubr.f32.gmra.mxu0 %v1199
    %v1290 = vpop.f32.mrf.mxu0
    %v1291 = vadd.f32 0.0, %v1290
    %v1292 = vpop.f32.mrf.mxu0
    %1293 = vdwg.mxu0
    %1294 = vmatprep.subr.mxu0 0.0
    %1295 = vmatpush1.msra.mxu0 %v804
    %1296 = vmatprep.subr.mxu0 0.0
    %1297 = vmatpush1.msra.mxu0 %v803
    %1298 = vmatprep.subr.mxu0 0.0
    %1299 = vmatpush1.msra.mxu0 %v802
    %1300 = vmatprep.subr.mxu0 0.0
    %1301 = vmatpush1.msra.mxu0 %v801
    %1302 = vmatprep.subr.mxu0 0.0
    %1303 = vmatpush1.msra.mxu0 %v800
    %1304 = vmatprep.subr.mxu0 0.0
    %1305 = vmatpush1.msra.mxu0 %v799
    %1306 = vmatprep.subr.mxu0 0.0
    %1307 = vmatpush1.msra.mxu0 %v798
    %1308 = vmatprep.subr.mxu0 0.0
    %1309 = vmatpush1.msra.mxu0 %v797
    %1310 = vmatprep.subr.mxu0 0.0
    %1311 = vmatpush1.msra.mxu0 %v796
    %1312 = vmatprep.subr.mxu0 0.0
    %1313 = vmatpush1.msra.mxu0 %v795
    %1314 = vmatprep.subr.mxu0 0.0
    %1315 = vmatpush1.msra.mxu0 %v794
    %1316 = vmatprep.subr.mxu0 0.0
    %1317 = vmatpush1.msra.mxu0 %v793
    %1318 = vmatprep.subr.mxu0 0.0
    %1319 = vmatpush1.msra.mxu0 %v792
    %1320 = vmatprep.subr.mxu0 0.0
    %1321 = vmatpush1.msra.mxu0 %v791
    %1322 = vmatprep.subr.mxu0 0.0
    %1323 = vmatpush1.msra.mxu0 %v790
    %1324 = vmatprep.subr.mxu0 0.0
    %1325 = vmatpush1.msra.mxu0 %v789
    %1326 = vmatprep.subr.mxu0 0.0
    %1327 = vmatpush2.msra.mxu0 %v820
    %1328 = vmatprep.subr.mxu0 0.0
    %1329 = vmatpush2.msra.mxu0 %v819
    %1330 = vmatprep.subr.mxu0 0.0
    %1331 = vmatpush2.msra.mxu0 %v818
    %1332 = vmatprep.subr.mxu0 0.0
    %1333 = vmatpush2.msra.mxu0 %v817
    %1334 = vmatprep.subr.mxu0 0.0
    %1335 = vmatpush2.msra.mxu0 %v816
    %1336 = vmatprep.subr.mxu0 0.0
    %1337 = vmatpush2.msra.mxu0 %v815
    %1338 = vmatprep.subr.mxu0 0.0
    %1339 = vmatpush2.msra.mxu0 %v814
    %1340 = vmatprep.subr.mxu0 0.0
    %1341 = vmatpush2.msra.mxu0 %v813
    %1342 = vmatprep.subr.mxu0 0.0
    %1343 = vmatpush2.msra.mxu0 %v812
    %1344 = vmatprep.subr.mxu0 0.0
    %1345 = vmatpush2.msra.mxu0 %v811
    %1346 = vmatprep.subr.mxu0 0.0
    %1347 = vmatpush2.msra.mxu0 %v810
    %1348 = vmatprep.subr.mxu0 0.0
    %1349 = vmatpush2.msra.mxu0 %v809
    %1350 = vmatprep.subr.mxu0 0.0
    %1351 = vmatpush2.msra.mxu0 %v808
    %1352 = vmatprep.subr.mxu0 0.0
    %1353 = vmatpush2.msra.mxu0 %v807
    %1354 = vmatprep.subr.mxu0 0.0
    %1355 = vmatpush2.msra.mxu0 %v806
    %1356 = vmatprep.subr.mxu0 0.0
    %1357 = vmatpush2.msra.mxu0 %v805
    %1358 = vmatprep.mubr.f32.mxu0 %v1223
    %1359 = vmatmul.mubr.f32.gmra.mxu0 %v1215
    %v1360 = vpop.f32.mrf.mxu0
    %v1361 = vadd.f32 %v1291, %v1360
    %v1362 = vpop.f32.mrf.mxu0
    %1363 = vdwg.mxu0
    %v1364 = vmul.f32 %v1361, 0.0052083335
    %v1365 = vadd.f32 %v1364, 1e-05
    %v1366 = vrsqrt.pop %v1365
    %v1368 = vsel %vm1014, %v1366, 0
    %1370 = vmatprep.subr.mxu0 0.0
    %1371 = vmatpush1.msra.mxu0 0.0
    %1372 = vmatprep.subr.mxu0 0.0
    %1373 = vmatpush1.msra.mxu0 0.0
    %1374 = vmatprep.subr.mxu0 0.0
    %1375 = vmatpush1.msra.mxu0 0.0
    %1376 = vmatprep.subr.mxu0 0.0
    %1377 = vmatpush1.msra.mxu0 0.0
    %1378 = vmatprep.subr.mxu0 0.0
    %1379 = vmatpush1.msra.mxu0 0.0
    %1380 = vmatprep.subr.mxu0 0.0
    %1381 = vmatpush1.msra.mxu0 0.0
    %1382 = vmatprep.subr.mxu0 0.0
    %1383 = vmatpush1.msra.mxu0 0.0
    %1384 = vmatprep.subr.mxu0 0.0
    %1385 = vmatpush1.msra.mxu0 0.0
    %1386 = vmatprep.subr.mxu0 0.0
    %1387 = vmatpush1.msra.mxu0 0.0
    %1388 = vmatprep.subr.mxu0 0.0
    %1389 = vmatpush1.msra.mxu0 0.0
    %1390 = vmatprep.subr.mxu0 0.0
    %1391 = vmatpush1.msra.mxu0 0.0
    %1392 = vmatprep.subr.mxu0 0.0
    %1393 = vmatpush1.msra.mxu0 0.0
    %1394 = vmatprep.subr.mxu0 %v834
    %1395 = vmatpush1.msra.mxu0 %v833
    %1396 = vmatprep.subr.mxu0 %v830
    %1397 = vmatpush1.msra.mxu0 %v829
    %1398 = vmatprep.subr.mxu0 %v826
    %1399 = vmatpush1.msra.mxu0 %v825
    %1400 = vmatprep.subr.mxu0 %v822
    %1401 = vmatpush1.msra.mxu0 %v821
    %1402 = vmatprep.subr.mxu0 0.0
    %1403 = vmatpush2.msra.mxu0 0.0
    %1404 = vmatprep.subr.mxu0 0.0
    %1405 = vmatpush2.msra.mxu0 0.0
    %1406 = vmatprep.subr.mxu0 0.0
    %1407 = vmatpush2.msra.mxu0 0.0
    %1408 = vmatprep.subr.mxu0 0.0
    %1409 = vmatpush2.msra.mxu0 0.0
    %1410 = vmatprep.subr.mxu0 0.0
    %1411 = vmatpush2.msra.mxu0 0.0
    %1412 = vmatprep.subr.mxu0 0.0
    %1413 = vmatpush2.msra.mxu0 0.0
    %1414 = vmatprep.subr.mxu0 0.0
    %1415 = vmatpush2.msra.mxu0 0.0
    %1416 = vmatprep.subr.mxu0 0.0
    %1417 = vmatpush2.msra.mxu0 0.0
    %1418 = vmatprep.subr.mxu0 0.0
    %1419 = vmatpush2.msra.mxu0 0.0
    %1420 = vmatprep.subr.mxu0 0.0
    %1421 = vmatpush2.msra.mxu0 0.0
    %1422 = vmatprep.subr.mxu0 0.0
    %1423 = vmatpush2.msra.mxu0 0.0
    %1424 = vmatprep.subr.mxu0 0.0
    %1425 = vmatpush2.msra.mxu0 0.0
    %1426 = vmatprep.subr.mxu0 0.0
    %1427 = vmatpush2.msra.mxu0 0.0
    %1428 = vmatprep.subr.mxu0 0.0
    %1429 = vmatpush2.msra.mxu0 0.0
    %1430 = vmatprep.subr.mxu0 0.0
    %1431 = vmatpush2.msra.mxu0 0.0
    %1432 = vmatprep.subr.mxu0 0.0
    %1433 = vmatpush2.msra.mxu0 0.0
    %1434 = vmatprep.mubr.f32.mxu0 0.0
    %1435 = vmatmul.mubr.f32.gmra.mxu0 %v1368
    %v1436 = vpop.f32.mrf.mxu0
    %v1437 = vadd.f32 0.0, %v1436
    %v1438 = vpop.f32.mrf.mxu0
    %v1439 = vadd.f32 0.0, %v1438
    %1440 = vdwg.mxu0
    %1441 = vmatprep.subr.mxu0 0.0
    %1442 = vmatpush1.msra.mxu0 0.0
    %1443 = vmatprep.subr.mxu0 0.0
    %1444 = vmatpush1.msra.mxu0 0.0
    %1445 = vmatprep.subr.mxu0 0.0
    %1446 = vmatpush1.msra.mxu0 0.0
    %1447 = vmatprep.subr.mxu0 0.0
    %1448 = vmatpush1.msra.mxu0 0.0
    %1449 = vmatprep.subr.mxu0 0.0
    %1450 = vmatpush1.msra.mxu0 0.0
    %1451 = vmatprep.subr.mxu0 0.0
    %1452 = vmatpush1.msra.mxu0 0.0
    %1453 = vmatprep.subr.mxu0 0.0
    %1454 = vmatpush1.msra.mxu0 0.0
    %1455 = vmatprep.subr.mxu0 0.0
    %1456 = vmatpush1.msra.mxu0 0.0
    %1457 = vmatprep.subr.mxu0 0.0
    %1458 = vmatpush1.msra.mxu0 0.0
    %1459 = vmatprep.subr.mxu0 0.0
    %1460 = vmatpush1.msra.mxu0 0.0
    %1461 = vmatprep.subr.mxu0 0.0
    %1462 = vmatpush1.msra.mxu0 0.0
    %1463 = vmatprep.subr.mxu0 0.0
    %1464 = vmatpush1.msra.mxu0 0.0
    %1465 = vmatprep.subr.mxu0 %v836
    %1466 = vmatpush1.msra.mxu0 %v835
    %1467 = vmatprep.subr.mxu0 %v832
    %1468 = vmatpush1.msra.mxu0 %v831
    %1469 = vmatprep.subr.mxu0 %v828
    %1470 = vmatpush1.msra.mxu0 %v827
    %1471 = vmatprep.subr.mxu0 %v824
    %1472 = vmatpush1.msra.mxu0 %v823
    %1473 = vmatprep.subr.mxu0 0.0
    %1474 = vmatpush2.msra.mxu0 0.0
    %1475 = vmatprep.subr.mxu0 0.0
    %1476 = vmatpush2.msra.mxu0 0.0
    %1477 = vmatprep.subr.mxu0 0.0
    %1478 = vmatpush2.msra.mxu0 0.0
    %1479 = vmatprep.subr.mxu0 0.0
    %1480 = vmatpush2.msra.mxu0 0.0
    %1481 = vmatprep.subr.mxu0 0.0
    %1482 = vmatpush2.msra.mxu0 0.0
    %1483 = vmatprep.subr.mxu0 0.0
    %1484 = vmatpush2.msra.mxu0 0.0
    %1485 = vmatprep.subr.mxu0 0.0
    %1486 = vmatpush2.msra.mxu0 0.0
    %1487 = vmatprep.subr.mxu0 0.0
    %1488 = vmatpush2.msra.mxu0 0.0
    %1489 = vmatprep.subr.mxu0 0.0
    %1490 = vmatpush2.msra.mxu0 0.0
    %1491 = vmatprep.subr.mxu0 0.0
    %1492 = vmatpush2.msra.mxu0 0.0
    %1493 = vmatprep.subr.mxu0 0.0
    %1494 = vmatpush2.msra.mxu0 0.0
    %1495 = vmatprep.subr.mxu0 0.0
    %1496 = vmatpush2.msra.mxu0 0.0
    %1497 = vmatprep.subr.mxu0 0.0
    %1498 = vmatpush2.msra.mxu0 0.0
    %1499 = vmatprep.subr.mxu0 0.0
    %1500 = vmatpush2.msra.mxu0 0.0
    %1501 = vmatprep.subr.mxu0 0.0
    %1502 = vmatpush2.msra.mxu0 0.0
    %1503 = vmatprep.subr.mxu0 0.0
    %1504 = vmatpush2.msra.mxu0 0.0
    %1505 = vmatprep.mubr.f32.mxu0 0.0
    %1506 = vmatmul.mubr.f32.gmra.mxu0 %v1368
    %v1507 = vpop.f32.mrf.mxu0
    %v1508 = vadd.f32 0.0, %v1507
    %v1509 = vpop.f32.mrf.mxu0
    %v1510 = vadd.f32 0.0, %v1509
    %1511 = vdwg.mxu0
    %v1513 = vlaneseq
    %v1514 = vshrl.u32 %v1513, 7
    %v1515 = vsub.s32 0, %v1514
    %v1516 = vrot.slane %v837, %v1515
    %v1517 = vlaneseq
    %v1518 = vshrl.u32 %v1517, 7
    %v1519 = vsub.s32 1, %v1518
    %v1520 = vrot.slane %v837, %v1519
    %v1521 = vlaneseq
    %v1522 = vshrl.u32 %v1521, 7
    %v1523 = vsub.s32 2, %v1522
    %v1524 = vrot.slane %v837, %v1523
    %v1525 = vlaneseq
    %v1526 = vshrl.u32 %v1525, 7
    %v1527 = vsub.s32 3, %v1526
    %v1528 = vrot.slane %v837, %v1527
    %v1533 = vmul.f32 %v1437, %v1516
    %v1534 = vmul.f32 %v1439, %v1520
    %v1535 = vmul.f32 %v1508, %v1524
    %v1536 = vmul.f32 %v1510, %v1528
    %v1537 = vlaneseq
    %v1538 = vshrl.u32 %v1537, 7
    %v1539 = vsub.s32 0, %v1538
    %v1540 = vrot.slane %v1533, %v1539
    %v1541 = vlaneseq
    %v1542 = vshrl.u32 %v1541, 7
    %v1543 = vsub.s32 0, %v1542
    %v1544 = vrot.slane %v1534, %v1543
    %v1545 = vlaneseq
    %v1546 = vshrl.u32 %v1545, 7
    %v1547 = vsub.s32 0, %v1546
    %v1548 = vrot.slane %v1535, %v1547
    %v1549 = vlaneseq
    %v1550 = vshrl.u32 %v1549, 7
    %v1551 = vsub.s32 0, %v1550
    %v1552 = vrot.slane %v1536, %v1551
    %v1553 = vmul.f32 %v1176, %v1540
    %v1554 = vmul.f32 %v1177, %v1544
    %v1555 = vmul.f32 %v1178, %v1548
    %v1556 = vmul.f32 %v1179, %v1552
    %v1557 = vmul.f32 %v1180, %v1540
    %v1558 = vmul.f32 %v1181, %v1544
    %v1559 = vmul.f32 %v1182, %v1548
    %v1560 = vmul.f32 %v1183, %v1552
    %v1562 = vlaneseq
    %v1563 = vshrl.u32 %v1562, 7
    %v1564 = vsub.s32 0, %v1563
    %v1565 = vrot.slane %v839, %v1564
    %v1566 = vlaneseq
    %v1567 = vshrl.u32 %v1566, 7
    %v1568 = vsub.s32 1, %v1567
    %v1569 = vrot.slane %v839, %v1568
    %v1570 = vlaneseq
    %v1571 = vshrl.u32 %v1570, 7
    %v1572 = vsub.s32 2, %v1571
    %v1573 = vrot.slane %v839, %v1572
    %v1574 = vlaneseq
    %v1575 = vshrl.u32 %v1574, 7
    %v1576 = vsub.s32 3, %v1575
    %v1577 = vrot.slane %v839, %v1576
    %v1582 = vadd.f32 %v1553, %v1565
    %v1583 = vadd.f32 %v1554, %v1569
    %v1584 = vadd.f32 %v1555, %v1573
    %v1585 = vadd.f32 %v1556, %v1577
    %v1586 = vadd.f32 %v1557, %v1565
    %v1587 = vadd.f32 %v1558, %v1569
    %v1588 = vadd.f32 %v1559, %v1573
    %v1589 = vadd.f32 %v1560, %v1577
    %v1590 = vmax.f32 %v1582, 0.0
    %v1591 = vmax.f32 %v1583, 0.0
    %v1592 = vmax.f32 %v1584, 0.0
    %v1593 = vmax.f32 %v1585, 0.0
    %v1594 = vmax.f32 %v1586, 0.0
    %v1595 = vmax.f32 %v1587, 0.0
    %v1596 = vmax.f32 %v1588, 0.0
    %v1597 = vmax.f32 %v1589, 0.0
    %v1598 = vpack.c.bf16 %v1594, %v1590
    %v1599 = vpack.c.bf16 %v1595, %v1591
    %v1600 = vpack.c.bf16 %v1596, %v1592
    %v1601 = vpack.c.bf16 %v1597, %v1593
    %v1602 = vld [vmem:[%s2] sm:$0xff]
    %v1603 = vld [vmem:[%s2 + $0x8] sm:$0xff]
    %v1604 = vld [vmem:[%s2 + $0x10] sm:$0xff]
    %v1605 = vld [vmem:[%s2 + $0x18] sm:$0xff]
    %v1606 = vld [vmem:[%s2 + $0x20] sm:$0xff]
    %v1607 = vld [vmem:[%s2 + $0x28] sm:$0xff]
    %v1608 = vld [vmem:[%s2 + $0x30] sm:$0xff]
    %v1609 = vld [vmem:[%s2 + $0x38] sm:$0xff]
    %v1610 = vld [vmem:[%s2 + $0x40] sm:$0xff]
    %v1611 = vld [vmem:[%s2 + $0x48] sm:$0xff]
    %v1612 = vld [vmem:[%s2 + $0x50] sm:$0xff]
    %v1613 = vld [vmem:[%s2 + $0x58] sm:$0xff]
    %v1614 = vld [vmem:[%s2 + $0x60] sm:$0xff]
    %v1615 = vld [vmem:[%s2 + $0x68] sm:$0xff]
    %v1616 = vld [vmem:[%s2 + $0x70] sm:$0xff]
    %v1617 = vld [vmem:[%s2 + $0x78] sm:$0xff]
    %v1618 = vld [vmem:[%s2 + $0x80] sm:$0xff]
    %v1619 = vld [vmem:[%s2 + $0x88] sm:$0xff]
    %v1620 = vld [vmem:[%s2 + $0x90] sm:$0xff]
    %v1621 = vld [vmem:[%s2 + $0x98] sm:$0xff]
    %v1622 = vld [vmem:[%s2 + $0xa0] sm:$0xff]
    %v1623 = vld [vmem:[%s2 + $0xa8] sm:$0xff]
    %v1624 = vld [vmem:[%s2 + $0xb0] sm:$0xff]
    %v1625 = vld [vmem:[%s2 + $0xb8] sm:$0xff]
    %v1626 = vld [vmem:[%s2 + $0xc0] sm:$0xff]
    %v1627 = vld [vmem:[%s2 + $0xc8] sm:$0xff]
    %v1628 = vld [vmem:[%s2 + $0xd0] sm:$0xff]
    %v1629 = vld [vmem:[%s2 + $0xd8] sm:$0xff]
    %v1630 = vld [vmem:[%s2 + $0xe0] sm:$0xff]
    %v1631 = vld [vmem:[%s2 + $0xe8] sm:$0xff]
    %v1632 = vld [vmem:[%s2 + $0xf0] sm:$0xff]
    %v1633 = vld [vmem:[%s2 + $0xf8] sm:$0xff]
    %v1634 = vld [vmem:[%s2 + $0x100] sm:$0xff]
    %v1635 = vld [vmem:[%s2 + $0x108] sm:$0xff]
    %v1636 = vld [vmem:[%s2 + $0x110] sm:$0xff]
    %v1637 = vld [vmem:[%s2 + $0x118] sm:$0xff]
    %v1638 = vld [vmem:[%s2 + $0x120] sm:$0xff]
    %v1639 = vld [vmem:[%s2 + $0x128] sm:$0xff]
    %v1640 = vld [vmem:[%s2 + $0x130] sm:$0xff]
    %v1641 = vld [vmem:[%s2 + $0x138] sm:$0xff]
    %v1642 = vld [vmem:[%s2 + $0x140] sm:$0xff]
    %v1643 = vld [vmem:[%s2 + $0x148] sm:$0xff]
    %v1644 = vld [vmem:[%s2 + $0x150] sm:$0xff]
    %v1645 = vld [vmem:[%s2 + $0x158] sm:$0xff]
    %v1646 = vld [vmem:[%s2 + $0x160] sm:$0xff]
    %v1647 = vld [vmem:[%s2 + $0x168] sm:$0xff]
    %v1648 = vld [vmem:[%s2 + $0x170] sm:$0xff]
    %v1649 = vld [vmem:[%s2 + $0x178] sm:$0xff]
    %v1650 = vld [vmem:[%s2 + $0x180] sm:$0xff]
    %v1651 = vld [vmem:[%s2 + $0x188] sm:$0xff]
    %v1652 = vld [vmem:[%s2 + $0x190] sm:$0xff]
    %v1653 = vld [vmem:[%s2 + $0x198] sm:$0xff]
    %v1654 = vld [vmem:[%s2 + $0x1a0] sm:$0xff]
    %v1655 = vld [vmem:[%s2 + $0x1a8] sm:$0xff]
    %v1656 = vld [vmem:[%s2 + $0x1b0] sm:$0xff]
    %v1657 = vld [vmem:[%s2 + $0x1b8] sm:$0xff]
    %v1658 = vld [vmem:[%s2 + $0x1c0] sm:$0xff]
    %v1659 = vld [vmem:[%s2 + $0x1c8] sm:$0xff]
    %v1660 = vld [vmem:[%s2 + $0x1d0] sm:$0xff]
    %v1661 = vld [vmem:[%s2 + $0x1d8] sm:$0xff]
    %v1662 = vld [vmem:[%s2 + $0x1e0] sm:$0xff]
    %v1663 = vld [vmem:[%s2 + $0x1e8] sm:$0xff]
    %v1664 = vld [vmem:[%s2 + $0x1f0] sm:$0xff]
    %v1665 = vld [vmem:[%s2 + $0x1f8] sm:$0xff]
    %v1730 = vunpack.c.l.b16 %v1602
    %v1731 = vunpack.c.h.b16 %v1602
    %v1732 = vunpack.c.l.b16 %v1603
    %v1733 = vunpack.c.h.b16 %v1603
    %v1734 = vunpack.c.l.b16 %v1604
    %v1735 = vunpack.c.h.b16 %v1604
    %v1736 = vunpack.c.l.b16 %v1605
    %v1737 = vunpack.c.h.b16 %v1605
    %v1738 = vunpack.c.l.b16 %v1606
    %v1739 = vunpack.c.h.b16 %v1606
    %v1740 = vunpack.c.l.b16 %v1607
    %v1741 = vunpack.c.h.b16 %v1607
    %v1742 = vunpack.c.l.b16 %v1608
    %v1743 = vunpack.c.h.b16 %v1608
    %v1744 = vunpack.c.l.b16 %v1609
    %v1745 = vunpack.c.h.b16 %v1609
    %v1746 = vunpack.c.l.b16 %v1610
    %v1747 = vunpack.c.h.b16 %v1610
    %v1748 = vunpack.c.l.b16 %v1611
    %v1749 = vunpack.c.h.b16 %v1611
    %v1750 = vunpack.c.l.b16 %v1612
    %v1751 = vunpack.c.h.b16 %v1612
    %v1752 = vunpack.c.l.b16 %v1613
    %v1753 = vunpack.c.h.b16 %v1613
    %v1754 = vunpack.c.l.b16 %v1614
    %v1755 = vunpack.c.h.b16 %v1614
    %v1756 = vunpack.c.l.b16 %v1615
    %v1757 = vunpack.c.h.b16 %v1615
    %v1758 = vunpack.c.l.b16 %v1616
    %v1759 = vunpack.c.h.b16 %v1616
    %v1760 = vunpack.c.l.b16 %v1617
    %v1761 = vunpack.c.h.b16 %v1617
    %v1762 = vunpack.c.l.b16 %v1618
    %v1763 = vunpack.c.h.b16 %v1618
    %v1764 = vunpack.c.l.b16 %v1619
    %v1765 = vunpack.c.h.b16 %v1619
    %v1766 = vunpack.c.l.b16 %v1620
    %v1767 = vunpack.c.h.b16 %v1620
    %v1768 = vunpack.c.l.b16 %v1621
    %v1769 = vunpack.c.h.b16 %v1621
    %v1770 = vunpack.c.l.b16 %v1622
    %v1771 = vunpack.c.h.b16 %v1622
    %v1772 = vunpack.c.l.b16 %v1623
    %v1773 = vunpack.c.h.b16 %v1623
    %v1774 = vunpack.c.l.b16 %v1624
    %v1775 = vunpack.c.h.b16 %v1624
    %v1776 = vunpack.c.l.b16 %v1625
    %v1777 = vunpack.c.h.b16 %v1625
    %v1778 = vunpack.c.l.b16 %v1626
    %v1779 = vunpack.c.h.b16 %v1626
    %v1780 = vunpack.c.l.b16 %v1627
    %v1781 = vunpack.c.h.b16 %v1627
    %v1782 = vunpack.c.l.b16 %v1628
    %v1783 = vunpack.c.h.b16 %v1628
    %v1784 = vunpack.c.l.b16 %v1629
    %v1785 = vunpack.c.h.b16 %v1629
    %v1786 = vunpack.c.l.b16 %v1630
    %v1787 = vunpack.c.h.b16 %v1630
    %v1788 = vunpack.c.l.b16 %v1631
    %v1789 = vunpack.c.h.b16 %v1631
    %v1790 = vunpack.c.l.b16 %v1632
    %v1791 = vunpack.c.h.b16 %v1632
    %v1792 = vunpack.c.l.b16 %v1633
    %v1793 = vunpack.c.h.b16 %v1633
    %v1794 = vunpack.c.l.b16 %v1634
    %v1795 = vunpack.c.h.b16 %v1634
    %v1796 = vunpack.c.l.b16 %v1635
    %v1797 = vunpack.c.h.b16 %v1635
    %v1798 = vunpack.c.l.b16 %v1636
    %v1799 = vunpack.c.h.b16 %v1636
    %v1800 = vunpack.c.l.b16 %v1637
    %v1801 = vunpack.c.h.b16 %v1637
    %v1802 = vunpack.c.l.b16 %v1638
    %v1803 = vunpack.c.h.b16 %v1638
    %v1804 = vunpack.c.l.b16 %v1639
    %v1805 = vunpack.c.h.b16 %v1639
    %v1806 = vunpack.c.l.b16 %v1640
    %v1807 = vunpack.c.h.b16 %v1640
    %v1808 = vunpack.c.l.b16 %v1641
    %v1809 = vunpack.c.h.b16 %v1641
    %v1810 = vunpack.c.l.b16 %v1642
    %v1811 = vunpack.c.h.b16 %v1642
    %v1812 = vunpack.c.l.b16 %v1643
    %v1813 = vunpack.c.h.b16 %v1643
    %v1814 = vunpack.c.l.b16 %v1644
    %v1815 = vunpack.c.h.b16 %v1644
    %v1816 = vunpack.c.l.b16 %v1645
    %v1817 = vunpack.c.h.b16 %v1645
    %v1818 = vunpack.c.l.b16 %v1646
    %v1819 = vunpack.c.h.b16 %v1646
    %v1820 = vunpack.c.l.b16 %v1647
    %v1821 = vunpack.c.h.b16 %v1647
    %v1822 = vunpack.c.l.b16 %v1648
    %v1823 = vunpack.c.h.b16 %v1648
    %v1824 = vunpack.c.l.b16 %v1649
    %v1825 = vunpack.c.h.b16 %v1649
    %v1826 = vunpack.c.l.b16 %v1650
    %v1827 = vunpack.c.h.b16 %v1650
    %v1828 = vunpack.c.l.b16 %v1651
    %v1829 = vunpack.c.h.b16 %v1651
    %v1830 = vunpack.c.l.b16 %v1652
    %v1831 = vunpack.c.h.b16 %v1652
    %v1832 = vunpack.c.l.b16 %v1653
    %v1833 = vunpack.c.h.b16 %v1653
    %v1834 = vunpack.c.l.b16 %v1654
    %v1835 = vunpack.c.h.b16 %v1654
    %v1836 = vunpack.c.l.b16 %v1655
    %v1837 = vunpack.c.h.b16 %v1655
    %v1838 = vunpack.c.l.b16 %v1656
    %v1839 = vunpack.c.h.b16 %v1656
    %v1840 = vunpack.c.l.b16 %v1657
    %v1841 = vunpack.c.h.b16 %v1657
    %v1842 = vunpack.c.l.b16 %v1658
    %v1843 = vunpack.c.h.b16 %v1658
    %v1844 = vunpack.c.l.b16 %v1659
    %v1845 = vunpack.c.h.b16 %v1659
    %v1846 = vunpack.c.l.b16 %v1660
    %v1847 = vunpack.c.h.b16 %v1660
    %v1848 = vunpack.c.l.b16 %v1661
    %v1849 = vunpack.c.h.b16 %v1661
    %v1850 = vunpack.c.l.b16 %v1662
    %v1851 = vunpack.c.h.b16 %v1662
    %v1852 = vunpack.c.l.b16 %v1663
    %v1853 = vunpack.c.h.b16 %v1663
    %v1854 = vunpack.c.l.b16 %v1664
    %v1855 = vunpack.c.h.b16 %v1664
    %v1856 = vunpack.c.l.b16 %v1665
    %v1857 = vunpack.c.h.b16 %v1665
    %v1858 = vpack.c.b16 %v1732, %v1730
    %v1859 = vpack.c.b16 %v1733, %v1731
    %v1860 = vpack.c.b16 %v1736, %v1734
    %v1861 = vpack.c.b16 %v1737, %v1735
    %v1862 = vpack.c.b16 %v1740, %v1738
    %v1863 = vpack.c.b16 %v1741, %v1739
    %v1864 = vpack.c.b16 %v1744, %v1742
    %v1865 = vpack.c.b16 %v1745, %v1743
    %v1866 = vpack.c.b16 %v1748, %v1746
    %v1867 = vpack.c.b16 %v1749, %v1747
    %v1868 = vpack.c.b16 %v1752, %v1750
    %v1869 = vpack.c.b16 %v1753, %v1751
    %v1870 = vpack.c.b16 %v1756, %v1754
    %v1871 = vpack.c.b16 %v1757, %v1755
    %v1872 = vpack.c.b16 %v1760, %v1758
    %v1873 = vpack.c.b16 %v1761, %v1759
    %v1874 = vpack.c.b16 %v1764, %v1762
    %v1875 = vpack.c.b16 %v1765, %v1763
    %v1876 = vpack.c.b16 %v1768, %v1766
    %v1877 = vpack.c.b16 %v1769, %v1767
    %v1878 = vpack.c.b16 %v1772, %v1770
    %v1879 = vpack.c.b16 %v1773, %v1771
    %v1880 = vpack.c.b16 %v1776, %v1774
    %v1881 = vpack.c.b16 %v1777, %v1775
    %v1882 = vpack.c.b16 %v1780, %v1778
    %v1883 = vpack.c.b16 %v1781, %v1779
    %v1884 = vpack.c.b16 %v1784, %v1782
    %v1885 = vpack.c.b16 %v1785, %v1783
    %v1886 = vpack.c.b16 %v1788, %v1786
    %v1887 = vpack.c.b16 %v1789, %v1787
    %v1888 = vpack.c.b16 %v1792, %v1790
    %v1889 = vpack.c.b16 %v1793, %v1791
    %v1890 = vpack.c.b16 %v1796, %v1794
    %v1891 = vpack.c.b16 %v1797, %v1795
    %v1892 = vpack.c.b16 %v1800, %v1798
    %v1893 = vpack.c.b16 %v1801, %v1799
    %v1894 = vpack.c.b16 %v1804, %v1802
    %v1895 = vpack.c.b16 %v1805, %v1803
    %v1896 = vpack.c.b16 %v1808, %v1806
    %v1897 = vpack.c.b16 %v1809, %v1807
    %v1898 = vpack.c.b16 %v1812, %v1810
    %v1899 = vpack.c.b16 %v1813, %v1811
    %v1900 = vpack.c.b16 %v1816, %v1814
    %v1901 = vpack.c.b16 %v1817, %v1815
    %v1902 = vpack.c.b16 %v1820, %v1818
    %v1903 = vpack.c.b16 %v1821, %v1819
    %v1904 = vpack.c.b16 %v1824, %v1822
    %v1905 = vpack.c.b16 %v1825, %v1823
    %v1906 = vpack.c.b16 %v1828, %v1826
    %v1907 = vpack.c.b16 %v1829, %v1827
    %v1908 = vpack.c.b16 %v1832, %v1830
    %v1909 = vpack.c.b16 %v1833, %v1831
    %v1910 = vpack.c.b16 %v1836, %v1834
    %v1911 = vpack.c.b16 %v1837, %v1835
    %v1912 = vpack.c.b16 %v1840, %v1838
    %v1913 = vpack.c.b16 %v1841, %v1839
    %v1914 = vpack.c.b16 %v1844, %v1842
    %v1915 = vpack.c.b16 %v1845, %v1843
    %v1916 = vpack.c.b16 %v1848, %v1846
    %v1917 = vpack.c.b16 %v1849, %v1847
    %v1918 = vpack.c.b16 %v1852, %v1850
    %v1919 = vpack.c.b16 %v1853, %v1851
    %v1920 = vpack.c.b16 %v1856, %v1854
    %v1921 = vpack.c.b16 %v1857, %v1855
    %1986 = vmatprep.subr.bf16.mxu0 %v1873
    %1987 = vmatpush1.bf16.msra.mxu0 %v1872
    %1988 = vmatprep.subr.bf16.mxu0 %v1871
    %1989 = vmatpush1.bf16.msra.mxu0 %v1870
    %1990 = vmatprep.subr.bf16.mxu0 %v1869
    %1991 = vmatpush1.bf16.msra.mxu0 %v1868
    %1992 = vmatprep.subr.bf16.mxu0 %v1867
    %1993 = vmatpush1.bf16.msra.mxu0 %v1866
    %1994 = vmatprep.subr.bf16.mxu0 %v1865
    %1995 = vmatpush1.bf16.msra.mxu0 %v1864
    %1996 = vmatprep.subr.bf16.mxu0 %v1863
    %1997 = vmatpush1.bf16.msra.mxu0 %v1862
    %1998 = vmatprep.subr.bf16.mxu0 %v1861
    %1999 = vmatpush1.bf16.msra.mxu0 %v1860
    %2000 = vmatprep.subr.bf16.mxu0 %v1859
    %2001 = vmatpush1.bf16.msra.mxu0 %v1858
    %2002 = vmatprep.subr.bf16.mxu0 %v1889
    %2003 = vmatpush2.bf16.msra.mxu0 %v1888
    %2004 = vmatprep.subr.bf16.mxu0 %v1887
    %2005 = vmatpush2.bf16.msra.mxu0 %v1886
    %2006 = vmatprep.subr.bf16.mxu0 %v1885
    %2007 = vmatpush2.bf16.msra.mxu0 %v1884
    %2008 = vmatprep.subr.bf16.mxu0 %v1883
    %2009 = vmatpush2.bf16.msra.mxu0 %v1882
    %2010 = vmatprep.subr.bf16.mxu0 %v1881
    %2011 = vmatpush2.bf16.msra.mxu0 %v1880
    %2012 = vmatprep.subr.bf16.mxu0 %v1879
    %2013 = vmatpush2.bf16.msra.mxu0 %v1878
    %2014 = vmatprep.subr.bf16.mxu0 %v1877
    %2015 = vmatpush2.bf16.msra.mxu0 %v1876
    %2016 = vmatprep.subr.bf16.mxu0 %v1875
    %2017 = vmatpush2.bf16.msra.mxu0 %v1874
    %2018 = vmatprep.mubr.bf16.mxu0 %v1599
    %2019 = vmatmul.mubr.bf16.gmra.mxu0 %v1598
    %v2020 = vpop.f32.mrf.mxu0
    %v2021 = vadd.f32 0.0, %v2020
    %v2022 = vpop.f32.mrf.mxu0
    %v2023 = vadd.f32 0.0, %v2022
    %v2024 = vpop.f32.mrf.mxu0
    %v2025 = vadd.f32 0.0, %v2024
    %v2026 = vpop.f32.mrf.mxu0
    %v2027 = vadd.f32 0.0, %v2026
    %2028 = vdwg.mxu0
    %2029 = vmatprep.subr.bf16.mxu0 %v1905
    %2030 = vmatpush1.bf16.msra.mxu0 %v1904
    %2031 = vmatprep.subr.bf16.mxu0 %v1903
    %2032 = vmatpush1.bf16.msra.mxu0 %v1902
    %2033 = vmatprep.subr.bf16.mxu0 %v1901
    %2034 = vmatpush1.bf16.msra.mxu0 %v1900
    %2035 = vmatprep.subr.bf16.mxu0 %v1899
    %2036 = vmatpush1.bf16.msra.mxu0 %v1898
    %2037 = vmatprep.subr.bf16.mxu0 %v1897
    %2038 = vmatpush1.bf16.msra.mxu0 %v1896
    %2039 = vmatprep.subr.bf16.mxu0 %v1895
    %2040 = vmatpush1.bf16.msra.mxu0 %v1894
    %2041 = vmatprep.subr.bf16.mxu0 %v1893
    %2042 = vmatpush1.bf16.msra.mxu0 %v1892
    %2043 = vmatprep.subr.bf16.mxu0 %v1891
    %2044 = vmatpush1.bf16.msra.mxu0 %v1890
    %2045 = vmatprep.subr.bf16.mxu0 %v1921
    %2046 = vmatpush2.bf16.msra.mxu0 %v1920
    %2047 = vmatprep.subr.bf16.mxu0 %v1919
    %2048 = vmatpush2.bf16.msra.mxu0 %v1918
    %2049 = vmatprep.subr.bf16.mxu0 %v1917
    %2050 = vmatpush2.bf16.msra.mxu0 %v1916
    %2051 = vmatprep.subr.bf16.mxu0 %v1915
    %2052 = vmatpush2.bf16.msra.mxu0 %v1914
    %2053 = vmatprep.subr.bf16.mxu0 %v1913
    %2054 = vmatpush2.bf16.msra.mxu0 %v1912
    %2055 = vmatprep.subr.bf16.mxu0 %v1911
    %2056 = vmatpush2.bf16.msra.mxu0 %v1910
    %2057 = vmatprep.subr.bf16.mxu0 %v1909
    %2058 = vmatpush2.bf16.msra.mxu0 %v1908
    %2059 = vmatprep.subr.bf16.mxu0 %v1907
    %2060 = vmatpush2.bf16.msra.mxu0 %v1906
    %2061 = vmatprep.mubr.bf16.mxu0 %v1601
    %2062 = vmatmul.mubr.bf16.gmra.mxu0 %v1600
    %v2063 = vpop.f32.mrf.mxu0
    %v2064 = vadd.f32 %v2021, %v2063
    %v2065 = vpop.f32.mrf.mxu0
    %v2066 = vadd.f32 %v2023, %v2065
    %v2067 = vpop.f32.mrf.mxu0
    %v2068 = vadd.f32 %v2025, %v2067
    %v2069 = vpop.f32.mrf.mxu0
    %v2070 = vadd.f32 %v2027, %v2069
    %2071 = vdwg.mxu0
    %v2072 = vld [vmem:[%s5] sm:$0xff]
    %v2073 = vld [vmem:[%s5 + $0x8] sm:$0xf]
    %s2074 = scalar_lea.vmem %s2, 512
    %v2075 = vld [vmem:[%s2074] sm:$0xff]
    %v2076 = vld [vmem:[%s2074 + $0x8] sm:$0xff]
    %v2077 = vld [vmem:[%s2074 + $0x10] sm:$0xff]
    %v2078 = vld [vmem:[%s2074 + $0x18] sm:$0xff]
    %v2079 = vld [vmem:[%s2074 + $0x20] sm:$0xff]
    %v2080 = vld [vmem:[%s2074 + $0x28] sm:$0xff]
    %v2081 = vld [vmem:[%s2074 + $0x30] sm:$0xff]
    %v2082 = vld [vmem:[%s2074 + $0x38] sm:$0xff]
    %v2083 = vld [vmem:[%s2074 + $0x40] sm:$0xff]
    %v2084 = vld [vmem:[%s2074 + $0x48] sm:$0xff]
    %v2085 = vld [vmem:[%s2074 + $0x50] sm:$0xff]
    %v2086 = vld [vmem:[%s2074 + $0x58] sm:$0xff]
    %v2087 = vld [vmem:[%s2074 + $0x60] sm:$0xff]
    %v2088 = vld [vmem:[%s2074 + $0x68] sm:$0xff]
    %v2089 = vld [vmem:[%s2074 + $0x70] sm:$0xff]
    %v2090 = vld [vmem:[%s2074 + $0x78] sm:$0xff]
    %v2091 = vld [vmem:[%s2074 + $0x80] sm:$0xff]
    %v2092 = vld [vmem:[%s2074 + $0x88] sm:$0xff]
    %v2093 = vld [vmem:[%s2074 + $0x90] sm:$0xff]
    %v2094 = vld [vmem:[%s2074 + $0x98] sm:$0xff]
    %v2095 = vld [vmem:[%s2074 + $0xa0] sm:$0xff]
    %v2096 = vld [vmem:[%s2074 + $0xa8] sm:$0xff]
    %v2097 = vld [vmem:[%s2074 + $0xb0] sm:$0xff]
    %v2098 = vld [vmem:[%s2074 + $0xb8] sm:$0xff]
    %v2099 = vld [vmem:[%s2074 + $0xc0] sm:$0xff]
    %v2100 = vld [vmem:[%s2074 + $0xc8] sm:$0xff]
    %v2101 = vld [vmem:[%s2074 + $0xd0] sm:$0xff]
    %v2102 = vld [vmem:[%s2074 + $0xd8] sm:$0xff]
    %v2103 = vld [vmem:[%s2074 + $0xe0] sm:$0xff]
    %v2104 = vld [vmem:[%s2074 + $0xe8] sm:$0xff]
    %v2105 = vld [vmem:[%s2074 + $0xf0] sm:$0xff]
    %v2106 = vld [vmem:[%s2074 + $0xf8] sm:$0xff]
    %v2107 = vld [vmem:[%s2074 + $0x100] sm:$0xff]
    %v2108 = vld [vmem:[%s2074 + $0x108] sm:$0xff]
    %v2109 = vld [vmem:[%s2074 + $0x110] sm:$0xff]
    %v2110 = vld [vmem:[%s2074 + $0x118] sm:$0xff]
    %v2111 = vld [vmem:[%s2074 + $0x120] sm:$0xff]
    %v2112 = vld [vmem:[%s2074 + $0x128] sm:$0xff]
    %v2113 = vld [vmem:[%s2074 + $0x130] sm:$0xff]
    %v2114 = vld [vmem:[%s2074 + $0x138] sm:$0xff]
    %v2115 = vld [vmem:[%s2074 + $0x140] sm:$0xff]
    %v2116 = vld [vmem:[%s2074 + $0x148] sm:$0xff]
    %v2117 = vld [vmem:[%s2074 + $0x150] sm:$0xff]
    %v2118 = vld [vmem:[%s2074 + $0x158] sm:$0xff]
    %v2119 = vld [vmem:[%s2074 + $0x160] sm:$0xff]
    %v2120 = vld [vmem:[%s2074 + $0x168] sm:$0xff]
    %v2121 = vld [vmem:[%s2074 + $0x170] sm:$0xff]
    %v2122 = vld [vmem:[%s2074 + $0x178] sm:$0xff]
    %v2123 = vld [vmem:[%s2074 + $0x180] sm:$0xff]
    %v2124 = vld [vmem:[%s2074 + $0x188] sm:$0xff]
    %v2125 = vld [vmem:[%s2074 + $0x190] sm:$0xff]
    %v2126 = vld [vmem:[%s2074 + $0x198] sm:$0xff]
    %v2127 = vld [vmem:[%s2074 + $0x1a0] sm:$0xff]
    %v2128 = vld [vmem:[%s2074 + $0x1a8] sm:$0xff]
    %v2129 = vld [vmem:[%s2074 + $0x1b0] sm:$0xff]
    %v2130 = vld [vmem:[%s2074 + $0x1b8] sm:$0xff]
    %v2131 = vld [vmem:[%s2074 + $0x1c0] sm:$0xff]
    %v2132 = vld [vmem:[%s2074 + $0x1c8] sm:$0xff]
    %v2133 = vld [vmem:[%s2074 + $0x1d0] sm:$0xff]
    %v2134 = vld [vmem:[%s2074 + $0x1d8] sm:$0xff]
    %v2135 = vld [vmem:[%s2074 + $0x1e0] sm:$0xff]
    %v2136 = vld [vmem:[%s2074 + $0x1e8] sm:$0xff]
    %v2137 = vld [vmem:[%s2074 + $0x1f0] sm:$0xff]
    %v2138 = vld [vmem:[%s2074 + $0x1f8] sm:$0xff]
    %v2203 = vunpack.c.l.b16 %v2075
    %v2204 = vunpack.c.h.b16 %v2075
    %v2205 = vunpack.c.l.b16 %v2076
    %v2206 = vunpack.c.h.b16 %v2076
    %v2207 = vunpack.c.l.b16 %v2077
    %v2208 = vunpack.c.h.b16 %v2077
    %v2209 = vunpack.c.l.b16 %v2078
    %v2210 = vunpack.c.h.b16 %v2078
    %v2211 = vunpack.c.l.b16 %v2079
    %v2212 = vunpack.c.h.b16 %v2079
    %v2213 = vunpack.c.l.b16 %v2080
    %v2214 = vunpack.c.h.b16 %v2080
    %v2215 = vunpack.c.l.b16 %v2081
    %v2216 = vunpack.c.h.b16 %v2081
    %v2217 = vunpack.c.l.b16 %v2082
    %v2218 = vunpack.c.h.b16 %v2082
    %v2219 = vunpack.c.l.b16 %v2083
    %v2220 = vunpack.c.h.b16 %v2083
    %v2221 = vunpack.c.l.b16 %v2084
    %v2222 = vunpack.c.h.b16 %v2084
    %v2223 = vunpack.c.l.b16 %v2085
    %v2224 = vunpack.c.h.b16 %v2085
    %v2225 = vunpack.c.l.b16 %v2086
    %v2226 = vunpack.c.h.b16 %v2086
    %v2227 = vunpack.c.l.b16 %v2087
    %v2228 = vunpack.c.h.b16 %v2087
    %v2229 = vunpack.c.l.b16 %v2088
    %v2230 = vunpack.c.h.b16 %v2088
    %v2231 = vunpack.c.l.b16 %v2089
    %v2232 = vunpack.c.h.b16 %v2089
    %v2233 = vunpack.c.l.b16 %v2090
    %v2234 = vunpack.c.h.b16 %v2090
    %v2235 = vunpack.c.l.b16 %v2091
    %v2236 = vunpack.c.h.b16 %v2091
    %v2237 = vunpack.c.l.b16 %v2092
    %v2238 = vunpack.c.h.b16 %v2092
    %v2239 = vunpack.c.l.b16 %v2093
    %v2240 = vunpack.c.h.b16 %v2093
    %v2241 = vunpack.c.l.b16 %v2094
    %v2242 = vunpack.c.h.b16 %v2094
    %v2243 = vunpack.c.l.b16 %v2095
    %v2244 = vunpack.c.h.b16 %v2095
    %v2245 = vunpack.c.l.b16 %v2096
    %v2246 = vunpack.c.h.b16 %v2096
    %v2247 = vunpack.c.l.b16 %v2097
    %v2248 = vunpack.c.h.b16 %v2097
    %v2249 = vunpack.c.l.b16 %v2098
    %v2250 = vunpack.c.h.b16 %v2098
    %v2251 = vunpack.c.l.b16 %v2099
    %v2252 = vunpack.c.h.b16 %v2099
    %v2253 = vunpack.c.l.b16 %v2100
    %v2254 = vunpack.c.h.b16 %v2100
    %v2255 = vunpack.c.l.b16 %v2101
    %v2256 = vunpack.c.h.b16 %v2101
    %v2257 = vunpack.c.l.b16 %v2102
    %v2258 = vunpack.c.h.b16 %v2102
    %v2259 = vunpack.c.l.b16 %v2103
    %v2260 = vunpack.c.h.b16 %v2103
    %v2261 = vunpack.c.l.b16 %v2104
    %v2262 = vunpack.c.h.b16 %v2104
    %v2263 = vunpack.c.l.b16 %v2105
    %v2264 = vunpack.c.h.b16 %v2105
    %v2265 = vunpack.c.l.b16 %v2106
    %v2266 = vunpack.c.h.b16 %v2106
    %v2267 = vunpack.c.l.b16 %v2107
    %v2268 = vunpack.c.h.b16 %v2107
    %v2269 = vunpack.c.l.b16 %v2108
    %v2270 = vunpack.c.h.b16 %v2108
    %v2271 = vunpack.c.l.b16 %v2109
    %v2272 = vunpack.c.h.b16 %v2109
    %v2273 = vunpack.c.l.b16 %v2110
    %v2274 = vunpack.c.h.b16 %v2110
    %v2275 = vunpack.c.l.b16 %v2111
    %v2276 = vunpack.c.h.b16 %v2111
    %v2277 = vunpack.c.l.b16 %v2112
    %v2278 = vunpack.c.h.b16 %v2112
    %v2279 = vunpack.c.l.b16 %v2113
    %v2280 = vunpack.c.h.b16 %v2113
    %v2281 = vunpack.c.l.b16 %v2114
    %v2282 = vunpack.c.h.b16 %v2114
    %v2283 = vunpack.c.l.b16 %v2115
    %v2284 = vunpack.c.h.b16 %v2115
    %v2285 = vunpack.c.l.b16 %v2116
    %v2286 = vunpack.c.h.b16 %v2116
    %v2287 = vunpack.c.l.b16 %v2117
    %v2288 = vunpack.c.h.b16 %v2117
    %v2289 = vunpack.c.l.b16 %v2118
    %v2290 = vunpack.c.h.b16 %v2118
    %v2291 = vunpack.c.l.b16 %v2119
    %v2292 = vunpack.c.h.b16 %v2119
    %v2293 = vunpack.c.l.b16 %v2120
    %v2294 = vunpack.c.h.b16 %v2120
    %v2295 = vunpack.c.l.b16 %v2121
    %v2296 = vunpack.c.h.b16 %v2121
    %v2297 = vunpack.c.l.b16 %v2122
    %v2298 = vunpack.c.h.b16 %v2122
    %v2299 = vunpack.c.l.b16 %v2123
    %v2300 = vunpack.c.h.b16 %v2123
    %v2301 = vunpack.c.l.b16 %v2124
    %v2302 = vunpack.c.h.b16 %v2124
    %v2303 = vunpack.c.l.b16 %v2125
    %v2304 = vunpack.c.h.b16 %v2125
    %v2305 = vunpack.c.l.b16 %v2126
    %v2306 = vunpack.c.h.b16 %v2126
    %v2307 = vunpack.c.l.b16 %v2127
    %v2308 = vunpack.c.h.b16 %v2127
    %v2309 = vunpack.c.l.b16 %v2128
    %v2310 = vunpack.c.h.b16 %v2128
    %v2311 = vunpack.c.l.b16 %v2129
    %v2312 = vunpack.c.h.b16 %v2129
    %v2313 = vunpack.c.l.b16 %v2130
    %v2314 = vunpack.c.h.b16 %v2130
    %v2315 = vunpack.c.l.b16 %v2131
    %v2316 = vunpack.c.h.b16 %v2131
    %v2317 = vunpack.c.l.b16 %v2132
    %v2318 = vunpack.c.h.b16 %v2132
    %v2319 = vunpack.c.l.b16 %v2133
    %v2320 = vunpack.c.h.b16 %v2133
    %v2321 = vunpack.c.l.b16 %v2134
    %v2322 = vunpack.c.h.b16 %v2134
    %v2323 = vunpack.c.l.b16 %v2135
    %v2324 = vunpack.c.h.b16 %v2135
    %v2325 = vunpack.c.l.b16 %v2136
    %v2326 = vunpack.c.h.b16 %v2136
    %v2327 = vunpack.c.l.b16 %v2137
    %v2328 = vunpack.c.h.b16 %v2137
    %v2329 = vunpack.c.l.b16 %v2138
    %v2330 = vunpack.c.h.b16 %v2138
    %v2331 = vpack.c.b16 %v2205, %v2203
    %v2332 = vpack.c.b16 %v2206, %v2204
    %v2333 = vpack.c.b16 %v2209, %v2207
    %v2334 = vpack.c.b16 %v2210, %v2208
    %v2335 = vpack.c.b16 %v2213, %v2211
    %v2336 = vpack.c.b16 %v2214, %v2212
    %v2337 = vpack.c.b16 %v2217, %v2215
    %v2338 = vpack.c.b16 %v2218, %v2216
    %v2339 = vpack.c.b16 %v2221, %v2219
    %v2340 = vpack.c.b16 %v2222, %v2220
    %v2341 = vpack.c.b16 %v2225, %v2223
    %v2342 = vpack.c.b16 %v2226, %v2224
    %v2343 = vpack.c.b16 %v2229, %v2227
    %v2344 = vpack.c.b16 %v2230, %v2228
    %v2345 = vpack.c.b16 %v2233, %v2231
    %v2346 = vpack.c.b16 %v2234, %v2232
    %v2347 = vpack.c.b16 %v2237, %v2235
    %v2348 = vpack.c.b16 %v2238, %v2236
    %v2349 = vpack.c.b16 %v2241, %v2239
    %v2350 = vpack.c.b16 %v2242, %v2240
    %v2351 = vpack.c.b16 %v2245, %v2243
    %v2352 = vpack.c.b16 %v2246, %v2244
    %v2353 = vpack.c.b16 %v2249, %v2247
    %v2354 = vpack.c.b16 %v2250, %v2248
    %v2355 = vpack.c.b16 %v2253, %v2251
    %v2356 = vpack.c.b16 %v2254, %v2252
    %v2357 = vpack.c.b16 %v2257, %v2255
    %v2358 = vpack.c.b16 %v2258, %v2256
    %v2359 = vpack.c.b16 %v2261, %v2259
    %v2360 = vpack.c.b16 %v2262, %v2260
    %v2361 = vpack.c.b16 %v2265, %v2263
    %v2362 = vpack.c.b16 %v2266, %v2264
    %v2363 = vpack.c.b16 %v2269, %v2267
    %v2364 = vpack.c.b16 %v2270, %v2268
    %v2365 = vpack.c.b16 %v2273, %v2271
    %v2366 = vpack.c.b16 %v2274, %v2272
    %v2367 = vpack.c.b16 %v2277, %v2275
    %v2368 = vpack.c.b16 %v2278, %v2276
    %v2369 = vpack.c.b16 %v2281, %v2279
    %v2370 = vpack.c.b16 %v2282, %v2280
    %v2371 = vpack.c.b16 %v2285, %v2283
    %v2372 = vpack.c.b16 %v2286, %v2284
    %v2373 = vpack.c.b16 %v2289, %v2287
    %v2374 = vpack.c.b16 %v2290, %v2288
    %v2375 = vpack.c.b16 %v2293, %v2291
    %v2376 = vpack.c.b16 %v2294, %v2292
    %v2377 = vpack.c.b16 %v2297, %v2295
    %v2378 = vpack.c.b16 %v2298, %v2296
    %v2379 = vpack.c.b16 %v2301, %v2299
    %v2380 = vpack.c.b16 %v2302, %v2300
    %v2381 = vpack.c.b16 %v2305, %v2303
    %v2382 = vpack.c.b16 %v2306, %v2304
    %v2383 = vpack.c.b16 %v2309, %v2307
    %v2384 = vpack.c.b16 %v2310, %v2308
    %v2385 = vpack.c.b16 %v2313, %v2311
    %v2386 = vpack.c.b16 %v2314, %v2312
    %v2387 = vpack.c.b16 %v2317, %v2315
    %v2388 = vpack.c.b16 %v2318, %v2316
    %v2389 = vpack.c.b16 %v2321, %v2319
    %v2390 = vpack.c.b16 %v2322, %v2320
    %v2391 = vpack.c.b16 %v2325, %v2323
    %v2392 = vpack.c.b16 %v2326, %v2324
    %v2393 = vpack.c.b16 %v2329, %v2327
    %v2394 = vpack.c.b16 %v2330, %v2328
    %2459 = vmatprep.subr.bf16.mxu0 %v2346
    %2460 = vmatpush1.bf16.msra.mxu0 %v2345
    %2461 = vmatprep.subr.bf16.mxu0 %v2344
    %2462 = vmatpush1.bf16.msra.mxu0 %v2343
    %2463 = vmatprep.subr.bf16.mxu0 %v2342
    %2464 = vmatpush1.bf16.msra.mxu0 %v2341
    %2465 = vmatprep.subr.bf16.mxu0 %v2340
    %2466 = vmatpush1.bf16.msra.mxu0 %v2339
    %2467 = vmatprep.subr.bf16.mxu0 %v2338
    %2468 = vmatpush1.bf16.msra.mxu0 %v2337
    %2469 = vmatprep.subr.bf16.mxu0 %v2336
    %2470 = vmatpush1.bf16.msra.mxu0 %v2335
    %2471 = vmatprep.subr.bf16.mxu0 %v2334
    %2472 = vmatpush1.bf16.msra.mxu0 %v2333
    %2473 = vmatprep.subr.bf16.mxu0 %v2332
    %2474 = vmatpush1.bf16.msra.mxu0 %v2331
    %2475 = vmatprep.subr.bf16.mxu0 %v2362
    %2476 = vmatpush2.bf16.msra.mxu0 %v2361
    %2477 = vmatprep.subr.bf16.mxu0 %v2360
    %2478 = vmatpush2.bf16.msra.mxu0 %v2359
    %2479 = vmatprep.subr.bf16.mxu0 %v2358
    %2480 = vmatpush2.bf16.msra.mxu0 %v2357
    %2481 = vmatprep.subr.bf16.mxu0 %v2356
    %2482 = vmatpush2.bf16.msra.mxu0 %v2355
    %2483 = vmatprep.subr.bf16.mxu0 %v2354
    %2484 = vmatpush2.bf16.msra.mxu0 %v2353
    %2485 = vmatprep.subr.bf16.mxu0 %v2352
    %2486 = vmatpush2.bf16.msra.mxu0 %v2351
    %2487 = vmatprep.subr.bf16.mxu0 %v2350
    %2488 = vmatpush2.bf16.msra.mxu0 %v2349
    %2489 = vmatprep.subr.bf16.mxu0 %v2348
    %2490 = vmatpush2.bf16.msra.mxu0 %v2347
    %2491 = vmatprep.mubr.bf16.mxu0 %v1599
    %2492 = vmatmul.mubr.bf16.gmra.mxu0 %v1598
    %v2493 = vpop.f32.mrf.mxu0
    %v2494 = vadd.f32 0.0, %v2493
    %v2495 = vpop.f32.mrf.mxu0
    %v2496 = vadd.f32 0.0, %v2495
    %v2497 = vpop.f32.mrf.mxu0
    %v2498 = vadd.f32 0.0, %v2497
    %v2499 = vpop.f32.mrf.mxu0
    %v2500 = vadd.f32 0.0, %v2499
    %2501 = vdwg.mxu0
    %2502 = vmatprep.subr.bf16.mxu0 %v2378
    %2503 = vmatpush1.bf16.msra.mxu0 %v2377
    %2504 = vmatprep.subr.bf16.mxu0 %v2376
    %2505 = vmatpush1.bf16.msra.mxu0 %v2375
    %2506 = vmatprep.subr.bf16.mxu0 %v2374
    %2507 = vmatpush1.bf16.msra.mxu0 %v2373
    %2508 = vmatprep.subr.bf16.mxu0 %v2372
    %2509 = vmatpush1.bf16.msra.mxu0 %v2371
    %2510 = vmatprep.subr.bf16.mxu0 %v2370
    %2511 = vmatpush1.bf16.msra.mxu0 %v2369
    %2512 = vmatprep.subr.bf16.mxu0 %v2368
    %2513 = vmatpush1.bf16.msra.mxu0 %v2367
    %2514 = vmatprep.subr.bf16.mxu0 %v2366
    %2515 = vmatpush1.bf16.msra.mxu0 %v2365
    %2516 = vmatprep.subr.bf16.mxu0 %v2364
    %2517 = vmatpush1.bf16.msra.mxu0 %v2363
    %2518 = vmatprep.subr.bf16.mxu0 %v2394
    %2519 = vmatpush2.bf16.msra.mxu0 %v2393
    %2520 = vmatprep.subr.bf16.mxu0 %v2392
    %2521 = vmatpush2.bf16.msra.mxu0 %v2391
    %2522 = vmatprep.subr.bf16.mxu0 %v2390
    %2523 = vmatpush2.bf16.msra.mxu0 %v2389
    %2524 = vmatprep.subr.bf16.mxu0 %v2388
    %2525 = vmatpush2.bf16.msra.mxu0 %v2387
    %2526 = vmatprep.subr.bf16.mxu0 %v2386
    %2527 = vmatpush2.bf16.msra.mxu0 %v2385
    %2528 = vmatprep.subr.bf16.mxu0 %v2384
    %2529 = vmatpush2.bf16.msra.mxu0 %v2383
    %2530 = vmatprep.subr.bf16.mxu0 %v2382
    %2531 = vmatpush2.bf16.msra.mxu0 %v2381
    %2532 = vmatprep.subr.bf16.mxu0 %v2380
    %2533 = vmatpush2.bf16.msra.mxu0 %v2379
    %2534 = vmatprep.mubr.bf16.mxu0 %v1601
    %2535 = vmatmul.mubr.bf16.gmra.mxu0 %v1600
    %v2536 = vpop.f32.mrf.mxu0
    %v2537 = vadd.f32 %v2494, %v2536
    %v2538 = vpop.f32.mrf.mxu0
    %v2539 = vadd.f32 %v2496, %v2538
    %v2540 = vpop.f32.mrf.mxu0
    %v2541 = vadd.f32 %v2498, %v2540
    %v2542 = vpop.f32.mrf.mxu0
    %v2543 = vadd.f32 %v2500, %v2542
    %2544 = vdwg.mxu0
    %s2545 = scalar_lea.vmem %s5, 16
    %v2546 = vld [vmem:[%s2545] sm:$0xff]
    %v2547 = vld [vmem:[%s2545 + $0x8] sm:$0xf]
    %vm2548 = vcmask 97280
    %v2550 = vsel %vm2548, %v2546, 0
    %v2553 = vsel %vm2548, %v2547, 0
    %v2556 = vsel %vm840, %v2541, 0
    %v2559 = vsel %vm840, %v2543, 0
    %2561 = vmatprep.subr.mxu0 0.0
    %2562 = vmatpush1.msra.mxu0 0.0
    %2563 = vmatprep.subr.mxu0 0.0
    %2564 = vmatpush1.msra.mxu0 0.0
    %2565 = vmatprep.subr.mxu0 0.0
    %2566 = vmatpush1.msra.mxu0 0.0
    %2567 = vmatprep.subr.mxu0 0.0
    %2568 = vmatpush1.msra.mxu0 0.0
    %2569 = vmatprep.subr.mxu0 0.0
    %2570 = vmatpush1.msra.mxu0 0.0
    %2571 = vmatprep.subr.mxu0 0.0
    %2572 = vmatpush1.msra.mxu0 0.0
    %2573 = vmatprep.subr.mxu0 0.0
    %2574 = vmatpush1.msra.mxu0 0.0
    %2575 = vmatprep.subr.mxu0 0.0
    %2576 = vmatpush1.msra.mxu0 0.0
    %2577 = vmatprep.subr.mxu0 0.0
    %2578 = vmatpush1.msra.mxu0 0.0
    %2579 = vmatprep.subr.mxu0 0.0
    %2580 = vmatpush1.msra.mxu0 0.0
    %2581 = vmatprep.subr.mxu0 0.0
    %2582 = vmatpush1.msra.mxu0 0.0
    %2583 = vmatprep.subr.mxu0 0.0
    %2584 = vmatpush1.msra.mxu0 0.0
    %2585 = vmatprep.subr.mxu0 0.0
    %2586 = vmatpush1.msra.mxu0 0.0
    %2587 = vmatprep.subr.mxu0 0.0
    %2588 = vmatpush1.msra.mxu0 0.0
    %2589 = vmatprep.subr.mxu0 %v2559
    %2590 = vmatpush1.msra.mxu0 %v2556
    %2591 = vmatprep.subr.mxu0 %v2539
    %2592 = vmatpush1.msra.mxu0 %v2537
    %2593 = vmatprep.subr.mxu0 0.0
    %2594 = vmatpush2.msra.mxu0 0.0
    %2595 = vmatprep.subr.mxu0 0.0
    %2596 = vmatpush2.msra.mxu0 0.0
    %2597 = vmatprep.subr.mxu0 0.0
    %2598 = vmatpush2.msra.mxu0 0.0
    %2599 = vmatprep.subr.mxu0 0.0
    %2600 = vmatpush2.msra.mxu0 0.0
    %2601 = vmatprep.subr.mxu0 0.0
    %2602 = vmatpush2.msra.mxu0 0.0
    %2603 = vmatprep.subr.mxu0 0.0
    %2604 = vmatpush2.msra.mxu0 0.0
    %2605 = vmatprep.subr.mxu0 0.0
    %2606 = vmatpush2.msra.mxu0 0.0
    %2607 = vmatprep.subr.mxu0 0.0
    %2608 = vmatpush2.msra.mxu0 0.0
    %2609 = vmatprep.subr.mxu0 0.0
    %2610 = vmatpush2.msra.mxu0 0.0
    %2611 = vmatprep.subr.mxu0 0.0
    %2612 = vmatpush2.msra.mxu0 0.0
    %2613 = vmatprep.subr.mxu0 0.0
    %2614 = vmatpush2.msra.mxu0 0.0
    %2615 = vmatprep.subr.mxu0 0.0
    %2616 = vmatpush2.msra.mxu0 0.0
    %2617 = vmatprep.subr.mxu0 0.0
    %2618 = vmatpush2.msra.mxu0 0.0
    %2619 = vmatprep.subr.mxu0 0.0
    %2620 = vmatpush2.msra.mxu0 0.0
    %2621 = vmatprep.subr.mxu0 0.0
    %2622 = vmatpush2.msra.mxu0 0.0
    %2623 = vmatprep.subr.mxu0 0.0
    %2624 = vmatpush2.msra.mxu0 0.0
    %2625 = vmatprep.mubr.f32.mxu0 0.0
    %2626 = vmatmul.mubr.f32.gmra.mxu0 %v2550
    %v2627 = vpop.f32.mrf.mxu0
    %v2628 = vadd.f32 0.0, %v2627
    %v2629 = vpop.f32.mrf.mxu0
    %v2630 = vadd.f32 0.0, %v2629
    %2631 = vmatprep.mubr.f32.mxu0 0.0
    %2632 = vmatmul.mubr.f32.gmra.mxu0 %v2553
    %v2633 = vpop.f32.mrf.mxu0
    %v2634 = vadd.f32 0.0, %v2633
    %v2635 = vpop.f32.mrf.mxu0
    %v2636 = vadd.f32 0.0, %v2635
    %2637 = vdwg.mxu0
    %v2639 = vsel %vm2548, %v2072, 0
    %v2642 = vsel %vm2548, %v2073, 0
    %v2645 = vsel %vm840, %v2068, 0
    %v2648 = vsel %vm840, %v2070, 0
    %2650 = vmatprep.subr.mxu0 0.0
    %2651 = vmatpush1.msra.mxu0 0.0
    %2652 = vmatprep.subr.mxu0 0.0
    %2653 = vmatpush1.msra.mxu0 0.0
    %2654 = vmatprep.subr.mxu0 0.0
    %2655 = vmatpush1.msra.mxu0 0.0
    %2656 = vmatprep.subr.mxu0 0.0
    %2657 = vmatpush1.msra.mxu0 0.0
    %2658 = vmatprep.subr.mxu0 0.0
    %2659 = vmatpush1.msra.mxu0 0.0
    %2660 = vmatprep.subr.mxu0 0.0
    %2661 = vmatpush1.msra.mxu0 0.0
    %2662 = vmatprep.subr.mxu0 0.0
    %2663 = vmatpush1.msra.mxu0 0.0
    %2664 = vmatprep.subr.mxu0 0.0
    %2665 = vmatpush1.msra.mxu0 0.0
    %2666 = vmatprep.subr.mxu0 0.0
    %2667 = vmatpush1.msra.mxu0 0.0
    %2668 = vmatprep.subr.mxu0 0.0
    %2669 = vmatpush1.msra.mxu0 0.0
    %2670 = vmatprep.subr.mxu0 0.0
    %2671 = vmatpush1.msra.mxu0 0.0
    %2672 = vmatprep.subr.mxu0 0.0
    %2673 = vmatpush1.msra.mxu0 0.0
    %2674 = vmatprep.subr.mxu0 0.0
    %2675 = vmatpush1.msra.mxu0 0.0
    %2676 = vmatprep.subr.mxu0 0.0
    %2677 = vmatpush1.msra.mxu0 0.0
    %2678 = vmatprep.subr.mxu0 %v2648
    %2679 = vmatpush1.msra.mxu0 %v2645
    %2680 = vmatprep.subr.mxu0 %v2066
    %2681 = vmatpush1.msra.mxu0 %v2064
    %2682 = vmatprep.subr.mxu0 0.0
    %2683 = vmatpush2.msra.mxu0 0.0
    %2684 = vmatprep.subr.mxu0 0.0
    %2685 = vmatpush2.msra.mxu0 0.0
    %2686 = vmatprep.subr.mxu0 0.0
    %2687 = vmatpush2.msra.mxu0 0.0
    %2688 = vmatprep.subr.mxu0 0.0
    %2689 = vmatpush2.msra.mxu0 0.0
    %2690 = vmatprep.subr.mxu0 0.0
    %2691 = vmatpush2.msra.mxu0 0.0
    %2692 = vmatprep.subr.mxu0 0.0
    %2693 = vmatpush2.msra.mxu0 0.0
    %2694 = vmatprep.subr.mxu0 0.0
    %2695 = vmatpush2.msra.mxu0 0.0
    %2696 = vmatprep.subr.mxu0 0.0
    %2697 = vmatpush2.msra.mxu0 0.0
    %2698 = vmatprep.subr.mxu0 0.0
    %2699 = vmatpush2.msra.mxu0 0.0
    %2700 = vmatprep.subr.mxu0 0.0
    %2701 = vmatpush2.msra.mxu0 0.0
    %2702 = vmatprep.subr.mxu0 0.0
    %2703 = vmatpush2.msra.mxu0 0.0
    %2704 = vmatprep.subr.mxu0 0.0
    %2705 = vmatpush2.msra.mxu0 0.0
    %2706 = vmatprep.subr.mxu0 0.0
    %2707 = vmatpush2.msra.mxu0 0.0
    %2708 = vmatprep.subr.mxu0 0.0
    %2709 = vmatpush2.msra.mxu0 0.0
    %2710 = vmatprep.subr.mxu0 0.0
    %2711 = vmatpush2.msra.mxu0 0.0
    %2712 = vmatprep.subr.mxu0 0.0
    %2713 = vmatpush2.msra.mxu0 0.0
    %2714 = vmatprep.mubr.f32.mxu0 0.0
    %2715 = vmatmul.mubr.f32.gmra.mxu0 %v2639
    %v2716 = vpop.f32.mrf.mxu0
    %v2717 = vadd.f32 %v2628, %v2716
    %v2718 = vpop.f32.mrf.mxu0
    %v2719 = vadd.f32 %v2630, %v2718
    %2720 = vmatprep.mubr.f32.mxu0 0.0
    %2721 = vmatmul.mubr.f32.gmra.mxu0 %v2642
    %v2722 = vpop.f32.mrf.mxu0
    %v2723 = vadd.f32 %v2634, %v2722
    %v2724 = vpop.f32.mrf.mxu0
    %v2725 = vadd.f32 %v2636, %v2724
    %2726 = vdwg.mxu0
    %s2727 = scalar_lea.vmem %s2, 1024
    %v2728 = vld [vmem:[%s2727] sm:$0xff]
    %v2729 = vld [vmem:[%s2727 + $0x8] sm:$0xff]
    %v2730 = vld [vmem:[%s2727 + $0x10] sm:$0xff]
    %v2731 = vld [vmem:[%s2727 + $0x18] sm:$0xff]
    %v2732 = vld [vmem:[%s2727 + $0x20] sm:$0xff]
    %v2733 = vld [vmem:[%s2727 + $0x28] sm:$0xff]
    %v2734 = vld [vmem:[%s2727 + $0x30] sm:$0xff]
    %v2735 = vld [vmem:[%s2727 + $0x38] sm:$0xff]
    %v2736 = vld [vmem:[%s2727 + $0x40] sm:$0xff]
    %v2737 = vld [vmem:[%s2727 + $0x48] sm:$0xff]
    %v2738 = vld [vmem:[%s2727 + $0x50] sm:$0xff]
    %v2739 = vld [vmem:[%s2727 + $0x58] sm:$0xff]
    %v2740 = vld [vmem:[%s2727 + $0x60] sm:$0xff]
    %v2741 = vld [vmem:[%s2727 + $0x68] sm:$0xff]
    %v2742 = vld [vmem:[%s2727 + $0x70] sm:$0xff]
    %v2743 = vld [vmem:[%s2727 + $0x78] sm:$0xff]
    %v2744 = vld [vmem:[%s2727 + $0x80] sm:$0xff]
    %v2745 = vld [vmem:[%s2727 + $0x88] sm:$0xff]
    %v2746 = vld [vmem:[%s2727 + $0x90] sm:$0xff]
    %v2747 = vld [vmem:[%s2727 + $0x98] sm:$0xff]
    %v2748 = vld [vmem:[%s2727 + $0xa0] sm:$0xff]
    %v2749 = vld [vmem:[%s2727 + $0xa8] sm:$0xff]
    %v2750 = vld [vmem:[%s2727 + $0xb0] sm:$0xff]
    %v2751 = vld [vmem:[%s2727 + $0xb8] sm:$0xff]
    %v2752 = vld [vmem:[%s2727 + $0xc0] sm:$0xff]
    %v2753 = vld [vmem:[%s2727 + $0xc8] sm:$0xff]
    %v2754 = vld [vmem:[%s2727 + $0xd0] sm:$0xff]
    %v2755 = vld [vmem:[%s2727 + $0xd8] sm:$0xff]
    %v2756 = vld [vmem:[%s2727 + $0xe0] sm:$0xff]
    %v2757 = vld [vmem:[%s2727 + $0xe8] sm:$0xff]
    %v2758 = vld [vmem:[%s2727 + $0xf0] sm:$0xff]
    %v2759 = vld [vmem:[%s2727 + $0xf8] sm:$0xff]
    %v2760 = vld [vmem:[%s2727 + $0x100] sm:$0xff]
    %v2761 = vld [vmem:[%s2727 + $0x108] sm:$0xff]
    %v2762 = vld [vmem:[%s2727 + $0x110] sm:$0xff]
    %v2763 = vld [vmem:[%s2727 + $0x118] sm:$0xff]
    %v2764 = vld [vmem:[%s2727 + $0x120] sm:$0xff]
    %v2765 = vld [vmem:[%s2727 + $0x128] sm:$0xff]
    %v2766 = vld [vmem:[%s2727 + $0x130] sm:$0xff]
    %v2767 = vld [vmem:[%s2727 + $0x138] sm:$0xff]
    %v2768 = vld [vmem:[%s2727 + $0x140] sm:$0xff]
    %v2769 = vld [vmem:[%s2727 + $0x148] sm:$0xff]
    %v2770 = vld [vmem:[%s2727 + $0x150] sm:$0xff]
    %v2771 = vld [vmem:[%s2727 + $0x158] sm:$0xff]
    %v2772 = vld [vmem:[%s2727 + $0x160] sm:$0xff]
    %v2773 = vld [vmem:[%s2727 + $0x168] sm:$0xff]
    %v2774 = vld [vmem:[%s2727 + $0x170] sm:$0xff]
    %v2775 = vld [vmem:[%s2727 + $0x178] sm:$0xff]
    %v2776 = vld [vmem:[%s2727 + $0x180] sm:$0xff]
    %v2777 = vld [vmem:[%s2727 + $0x188] sm:$0xff]
    %v2778 = vld [vmem:[%s2727 + $0x190] sm:$0xff]
    %v2779 = vld [vmem:[%s2727 + $0x198] sm:$0xff]
    %v2780 = vld [vmem:[%s2727 + $0x1a0] sm:$0xff]
    %v2781 = vld [vmem:[%s2727 + $0x1a8] sm:$0xff]
    %v2782 = vld [vmem:[%s2727 + $0x1b0] sm:$0xff]
    %v2783 = vld [vmem:[%s2727 + $0x1b8] sm:$0xff]
    %v2784 = vld [vmem:[%s2727 + $0x1c0] sm:$0xff]
    %v2785 = vld [vmem:[%s2727 + $0x1c8] sm:$0xff]
    %v2786 = vld [vmem:[%s2727 + $0x1d0] sm:$0xff]
    %v2787 = vld [vmem:[%s2727 + $0x1d8] sm:$0xff]
    %v2788 = vld [vmem:[%s2727 + $0x1e0] sm:$0xff]
    %v2789 = vld [vmem:[%s2727 + $0x1e8] sm:$0xff]
    %v2790 = vld [vmem:[%s2727 + $0x1f0] sm:$0xff]
    %v2791 = vld [vmem:[%s2727 + $0x1f8] sm:$0xff]
    %v2856 = vunpack.c.l.b16 %v2728
    %v2857 = vunpack.c.h.b16 %v2728
    %v2858 = vunpack.c.l.b16 %v2729
    %v2859 = vunpack.c.h.b16 %v2729
    %v2860 = vunpack.c.l.b16 %v2730
    %v2861 = vunpack.c.h.b16 %v2730
    %v2862 = vunpack.c.l.b16 %v2731
    %v2863 = vunpack.c.h.b16 %v2731
    %v2864 = vunpack.c.l.b16 %v2732
    %v2865 = vunpack.c.h.b16 %v2732
    %v2866 = vunpack.c.l.b16 %v2733
    %v2867 = vunpack.c.h.b16 %v2733
    %v2868 = vunpack.c.l.b16 %v2734
    %v2869 = vunpack.c.h.b16 %v2734
    %v2870 = vunpack.c.l.b16 %v2735
    %v2871 = vunpack.c.h.b16 %v2735
    %v2872 = vunpack.c.l.b16 %v2736
    %v2873 = vunpack.c.h.b16 %v2736
    %v2874 = vunpack.c.l.b16 %v2737
    %v2875 = vunpack.c.h.b16 %v2737
    %v2876 = vunpack.c.l.b16 %v2738
    %v2877 = vunpack.c.h.b16 %v2738
    %v2878 = vunpack.c.l.b16 %v2739
    %v2879 = vunpack.c.h.b16 %v2739
    %v2880 = vunpack.c.l.b16 %v2740
    %v2881 = vunpack.c.h.b16 %v2740
    %v2882 = vunpack.c.l.b16 %v2741
    %v2883 = vunpack.c.h.b16 %v2741
    %v2884 = vunpack.c.l.b16 %v2742
    %v2885 = vunpack.c.h.b16 %v2742
    %v2886 = vunpack.c.l.b16 %v2743
    %v2887 = vunpack.c.h.b16 %v2743
    %v2888 = vunpack.c.l.b16 %v2744
    %v2889 = vunpack.c.h.b16 %v2744
    %v2890 = vunpack.c.l.b16 %v2745
    %v2891 = vunpack.c.h.b16 %v2745
    %v2892 = vunpack.c.l.b16 %v2746
    %v2893 = vunpack.c.h.b16 %v2746
    %v2894 = vunpack.c.l.b16 %v2747
    %v2895 = vunpack.c.h.b16 %v2747
    %v2896 = vunpack.c.l.b16 %v2748
    %v2897 = vunpack.c.h.b16 %v2748
    %v2898 = vunpack.c.l.b16 %v2749
    %v2899 = vunpack.c.h.b16 %v2749
    %v2900 = vunpack.c.l.b16 %v2750
    %v2901 = vunpack.c.h.b16 %v2750
    %v2902 = vunpack.c.l.b16 %v2751
    %v2903 = vunpack.c.h.b16 %v2751
    %v2904 = vunpack.c.l.b16 %v2752
    %v2905 = vunpack.c.h.b16 %v2752
    %v2906 = vunpack.c.l.b16 %v2753
    %v2907 = vunpack.c.h.b16 %v2753
    %v2908 = vunpack.c.l.b16 %v2754
    %v2909 = vunpack.c.h.b16 %v2754
    %v2910 = vunpack.c.l.b16 %v2755
    %v2911 = vunpack.c.h.b16 %v2755
    %v2912 = vunpack.c.l.b16 %v2756
    %v2913 = vunpack.c.h.b16 %v2756
    %v2914 = vunpack.c.l.b16 %v2757
    %v2915 = vunpack.c.h.b16 %v2757
    %v2916 = vunpack.c.l.b16 %v2758
    %v2917 = vunpack.c.h.b16 %v2758
    %v2918 = vunpack.c.l.b16 %v2759
    %v2919 = vunpack.c.h.b16 %v2759
    %v2920 = vunpack.c.l.b16 %v2760
    %v2921 = vunpack.c.h.b16 %v2760
    %v2922 = vunpack.c.l.b16 %v2761
    %v2923 = vunpack.c.h.b16 %v2761
    %v2924 = vunpack.c.l.b16 %v2762
    %v2925 = vunpack.c.h.b16 %v2762
    %v2926 = vunpack.c.l.b16 %v2763
    %v2927 = vunpack.c.h.b16 %v2763
    %v2928 = vunpack.c.l.b16 %v2764
    %v2929 = vunpack.c.h.b16 %v2764
    %v2930 = vunpack.c.l.b16 %v2765
    %v2931 = vunpack.c.h.b16 %v2765
    %v2932 = vunpack.c.l.b16 %v2766
    %v2933 = vunpack.c.h.b16 %v2766
    %v2934 = vunpack.c.l.b16 %v2767
    %v2935 = vunpack.c.h.b16 %v2767
    %v2936 = vunpack.c.l.b16 %v2768
    %v2937 = vunpack.c.h.b16 %v2768
    %v2938 = vunpack.c.l.b16 %v2769
    %v2939 = vunpack.c.h.b16 %v2769
    %v2940 = vunpack.c.l.b16 %v2770
    %v2941 = vunpack.c.h.b16 %v2770
    %v2942 = vunpack.c.l.b16 %v2771
    %v2943 = vunpack.c.h.b16 %v2771
    %v2944 = vunpack.c.l.b16 %v2772
    %v2945 = vunpack.c.h.b16 %v2772
    %v2946 = vunpack.c.l.b16 %v2773
    %v2947 = vunpack.c.h.b16 %v2773
    %v2948 = vunpack.c.l.b16 %v2774
    %v2949 = vunpack.c.h.b16 %v2774
    %v2950 = vunpack.c.l.b16 %v2775
    %v2951 = vunpack.c.h.b16 %v2775
    %v2952 = vunpack.c.l.b16 %v2776
    %v2953 = vunpack.c.h.b16 %v2776
    %v2954 = vunpack.c.l.b16 %v2777
    %v2955 = vunpack.c.h.b16 %v2777
    %v2956 = vunpack.c.l.b16 %v2778
    %v2957 = vunpack.c.h.b16 %v2778
    %v2958 = vunpack.c.l.b16 %v2779
    %v2959 = vunpack.c.h.b16 %v2779
    %v2960 = vunpack.c.l.b16 %v2780
    %v2961 = vunpack.c.h.b16 %v2780
    %v2962 = vunpack.c.l.b16 %v2781
    %v2963 = vunpack.c.h.b16 %v2781
    %v2964 = vunpack.c.l.b16 %v2782
    %v2965 = vunpack.c.h.b16 %v2782
    %v2966 = vunpack.c.l.b16 %v2783
    %v2967 = vunpack.c.h.b16 %v2783
    %v2968 = vunpack.c.l.b16 %v2784
    %v2969 = vunpack.c.h.b16 %v2784
    %v2970 = vunpack.c.l.b16 %v2785
    %v2971 = vunpack.c.h.b16 %v2785
    %v2972 = vunpack.c.l.b16 %v2786
    %v2973 = vunpack.c.h.b16 %v2786
    %v2974 = vunpack.c.l.b16 %v2787
    %v2975 = vunpack.c.h.b16 %v2787
    %v2976 = vunpack.c.l.b16 %v2788
    %v2977 = vunpack.c.h.b16 %v2788
    %v2978 = vunpack.c.l.b16 %v2789
    %v2979 = vunpack.c.h.b16 %v2789
    %v2980 = vunpack.c.l.b16 %v2790
    %v2981 = vunpack.c.h.b16 %v2790
    %v2982 = vunpack.c.l.b16 %v2791
    %v2983 = vunpack.c.h.b16 %v2791
    %v2984 = vpack.c.b16 %v2858, %v2856
    %v2985 = vpack.c.b16 %v2859, %v2857
    %v2986 = vpack.c.b16 %v2862, %v2860
    %v2987 = vpack.c.b16 %v2863, %v2861
    %v2988 = vpack.c.b16 %v2866, %v2864
    %v2989 = vpack.c.b16 %v2867, %v2865
    %v2990 = vpack.c.b16 %v2870, %v2868
    %v2991 = vpack.c.b16 %v2871, %v2869
    %v2992 = vpack.c.b16 %v2874, %v2872
    %v2993 = vpack.c.b16 %v2875, %v2873
    %v2994 = vpack.c.b16 %v2878, %v2876
    %v2995 = vpack.c.b16 %v2879, %v2877
    %v2996 = vpack.c.b16 %v2882, %v2880
    %v2997 = vpack.c.b16 %v2883, %v2881
    %v2998 = vpack.c.b16 %v2886, %v2884
    %v2999 = vpack.c.b16 %v2887, %v2885
    %v3000 = vpack.c.b16 %v2890, %v2888
    %v3001 = vpack.c.b16 %v2891, %v2889
    %v3002 = vpack.c.b16 %v2894, %v2892
    %v3003 = vpack.c.b16 %v2895, %v2893
    %v3004 = vpack.c.b16 %v2898, %v2896
    %v3005 = vpack.c.b16 %v2899, %v2897
    %v3006 = vpack.c.b16 %v2902, %v2900
    %v3007 = vpack.c.b16 %v2903, %v2901
    %v3008 = vpack.c.b16 %v2906, %v2904
    %v3009 = vpack.c.b16 %v2907, %v2905
    %v3010 = vpack.c.b16 %v2910, %v2908
    %v3011 = vpack.c.b16 %v2911, %v2909
    %v3012 = vpack.c.b16 %v2914, %v2912
    %v3013 = vpack.c.b16 %v2915, %v2913
    %v3014 = vpack.c.b16 %v2918, %v2916
    %v3015 = vpack.c.b16 %v2919, %v2917
    %v3016 = vpack.c.b16 %v2922, %v2920
    %v3017 = vpack.c.b16 %v2923, %v2921
    %v3018 = vpack.c.b16 %v2926, %v2924
    %v3019 = vpack.c.b16 %v2927, %v2925
    %v3020 = vpack.c.b16 %v2930, %v2928
    %v3021 = vpack.c.b16 %v2931, %v2929
    %v3022 = vpack.c.b16 %v2934, %v2932
    %v3023 = vpack.c.b16 %v2935, %v2933
    %v3024 = vpack.c.b16 %v2938, %v2936
    %v3025 = vpack.c.b16 %v2939, %v2937
    %v3026 = vpack.c.b16 %v2942, %v2940
    %v3027 = vpack.c.b16 %v2943, %v2941
    %v3028 = vpack.c.b16 %v2946, %v2944
    %v3029 = vpack.c.b16 %v2947, %v2945
    %v3030 = vpack.c.b16 %v2950, %v2948
    %v3031 = vpack.c.b16 %v2951, %v2949
    %v3032 = vpack.c.b16 %v2954, %v2952
    %v3033 = vpack.c.b16 %v2955, %v2953
    %v3034 = vpack.c.b16 %v2958, %v2956
    %v3035 = vpack.c.b16 %v2959, %v2957
    %v3036 = vpack.c.b16 %v2962, %v2960
    %v3037 = vpack.c.b16 %v2963, %v2961
    %v3038 = vpack.c.b16 %v2966, %v2964
    %v3039 = vpack.c.b16 %v2967, %v2965
    %v3040 = vpack.c.b16 %v2970, %v2968
    %v3041 = vpack.c.b16 %v2971, %v2969
    %v3042 = vpack.c.b16 %v2974, %v2972
    %v3043 = vpack.c.b16 %v2975, %v2973
    %v3044 = vpack.c.b16 %v2978, %v2976
    %v3045 = vpack.c.b16 %v2979, %v2977
    %v3046 = vpack.c.b16 %v2982, %v2980
    %v3047 = vpack.c.b16 %v2983, %v2981
    %3112 = vmatprep.subr.bf16.mxu0 %v2999
    %3113 = vmatpush1.bf16.msra.mxu0 %v2998
    %3114 = vmatprep.subr.bf16.mxu0 %v2997
    %3115 = vmatpush1.bf16.msra.mxu0 %v2996
    %3116 = vmatprep.subr.bf16.mxu0 %v2995
    %3117 = vmatpush1.bf16.msra.mxu0 %v2994
    %3118 = vmatprep.subr.bf16.mxu0 %v2993
    %3119 = vmatpush1.bf16.msra.mxu0 %v2992
    %3120 = vmatprep.subr.bf16.mxu0 %v2991
    %3121 = vmatpush1.bf16.msra.mxu0 %v2990
    %3122 = vmatprep.subr.bf16.mxu0 %v2989
    %3123 = vmatpush1.bf16.msra.mxu0 %v2988
    %3124 = vmatprep.subr.bf16.mxu0 %v2987
    %3125 = vmatpush1.bf16.msra.mxu0 %v2986
    %3126 = vmatprep.subr.bf16.mxu0 %v2985
    %3127 = vmatpush1.bf16.msra.mxu0 %v2984
    %3128 = vmatprep.subr.bf16.mxu0 %v3015
    %3129 = vmatpush2.bf16.msra.mxu0 %v3014
    %3130 = vmatprep.subr.bf16.mxu0 %v3013
    %3131 = vmatpush2.bf16.msra.mxu0 %v3012
    %3132 = vmatprep.subr.bf16.mxu0 %v3011
    %3133 = vmatpush2.bf16.msra.mxu0 %v3010
    %3134 = vmatprep.subr.bf16.mxu0 %v3009
    %3135 = vmatpush2.bf16.msra.mxu0 %v3008
    %3136 = vmatprep.subr.bf16.mxu0 %v3007
    %3137 = vmatpush2.bf16.msra.mxu0 %v3006
    %3138 = vmatprep.subr.bf16.mxu0 %v3005
    %3139 = vmatpush2.bf16.msra.mxu0 %v3004
    %3140 = vmatprep.subr.bf16.mxu0 %v3003
    %3141 = vmatpush2.bf16.msra.mxu0 %v3002
    %3142 = vmatprep.subr.bf16.mxu0 %v3001
    %3143 = vmatpush2.bf16.msra.mxu0 %v3000
    %3144 = vmatprep.mubr.bf16.mxu0 %v1599
    %3145 = vmatmul.mubr.bf16.gmra.mxu0 %v1598
    %v3146 = vpop.f32.mrf.mxu0
    %v3147 = vadd.f32 0.0, %v3146
    %v3148 = vpop.f32.mrf.mxu0
    %v3149 = vadd.f32 0.0, %v3148
    %v3150 = vpop.f32.mrf.mxu0
    %v3151 = vadd.f32 0.0, %v3150
    %v3152 = vpop.f32.mrf.mxu0
    %v3153 = vadd.f32 0.0, %v3152
    %3154 = vdwg.mxu0
    %3155 = vmatprep.subr.bf16.mxu0 %v3031
    %3156 = vmatpush1.bf16.msra.mxu0 %v3030
    %3157 = vmatprep.subr.bf16.mxu0 %v3029
    %3158 = vmatpush1.bf16.msra.mxu0 %v3028
    %3159 = vmatprep.subr.bf16.mxu0 %v3027
    %3160 = vmatpush1.bf16.msra.mxu0 %v3026
    %3161 = vmatprep.subr.bf16.mxu0 %v3025
    %3162 = vmatpush1.bf16.msra.mxu0 %v3024
    %3163 = vmatprep.subr.bf16.mxu0 %v3023
    %3164 = vmatpush1.bf16.msra.mxu0 %v3022
    %3165 = vmatprep.subr.bf16.mxu0 %v3021
    %3166 = vmatpush1.bf16.msra.mxu0 %v3020
    %3167 = vmatprep.subr.bf16.mxu0 %v3019
    %3168 = vmatpush1.bf16.msra.mxu0 %v3018
    %3169 = vmatprep.subr.bf16.mxu0 %v3017
    %3170 = vmatpush1.bf16.msra.mxu0 %v3016
    %3171 = vmatprep.subr.bf16.mxu0 %v3047
    %3172 = vmatpush2.bf16.msra.mxu0 %v3046
    %3173 = vmatprep.subr.bf16.mxu0 %v3045
    %3174 = vmatpush2.bf16.msra.mxu0 %v3044
    %3175 = vmatprep.subr.bf16.mxu0 %v3043
    %3176 = vmatpush2.bf16.msra.mxu0 %v3042
    %3177 = vmatprep.subr.bf16.mxu0 %v3041
    %3178 = vmatpush2.bf16.msra.mxu0 %v3040
    %3179 = vmatprep.subr.bf16.mxu0 %v3039
    %3180 = vmatpush2.bf16.msra.mxu0 %v3038
    %3181 = vmatprep.subr.bf16.mxu0 %v3037
    %3182 = vmatpush2.bf16.msra.mxu0 %v3036
    %3183 = vmatprep.subr.bf16.mxu0 %v3035
    %3184 = vmatpush2.bf16.msra.mxu0 %v3034
    %3185 = vmatprep.subr.bf16.mxu0 %v3033
    %3186 = vmatpush2.bf16.msra.mxu0 %v3032
    %3187 = vmatprep.mubr.bf16.mxu0 %v1601
    %3188 = vmatmul.mubr.bf16.gmra.mxu0 %v1600
    %v3189 = vpop.f32.mrf.mxu0
    %v3190 = vadd.f32 %v3147, %v3189
    %v3191 = vpop.f32.mrf.mxu0
    %v3192 = vadd.f32 %v3149, %v3191
    %v3193 = vpop.f32.mrf.mxu0
    %v3194 = vadd.f32 %v3151, %v3193
    %v3195 = vpop.f32.mrf.mxu0
    %v3196 = vadd.f32 %v3153, %v3195
    %3197 = vdwg.mxu0
    %s3198 = scalar_lea.vmem %s5, 32
    %v3199 = vld [vmem:[%s3198] sm:$0xff]
    %v3200 = vld [vmem:[%s3198 + $0x8] sm:$0xf]
    %v3202 = vsel %vm2548, %v3199, 0
    %v3205 = vsel %vm2548, %v3200, 0
    %v3208 = vsel %vm840, %v3194, 0
    %v3211 = vsel %vm840, %v3196, 0
    %3213 = vmatprep.subr.mxu0 0.0
    %3214 = vmatpush1.msra.mxu0 0.0
    %3215 = vmatprep.subr.mxu0 0.0
    %3216 = vmatpush1.msra.mxu0 0.0
    %3217 = vmatprep.subr.mxu0 0.0
    %3218 = vmatpush1.msra.mxu0 0.0
    %3219 = vmatprep.subr.mxu0 0.0
    %3220 = vmatpush1.msra.mxu0 0.0
    %3221 = vmatprep.subr.mxu0 0.0
    %3222 = vmatpush1.msra.mxu0 0.0
    %3223 = vmatprep.subr.mxu0 0.0
    %3224 = vmatpush1.msra.mxu0 0.0
    %3225 = vmatprep.subr.mxu0 0.0
    %3226 = vmatpush1.msra.mxu0 0.0
    %3227 = vmatprep.subr.mxu0 0.0
    %3228 = vmatpush1.msra.mxu0 0.0
    %3229 = vmatprep.subr.mxu0 0.0
    %3230 = vmatpush1.msra.mxu0 0.0
    %3231 = vmatprep.subr.mxu0 0.0
    %3232 = vmatpush1.msra.mxu0 0.0
    %3233 = vmatprep.subr.mxu0 0.0
    %3234 = vmatpush1.msra.mxu0 0.0
    %3235 = vmatprep.subr.mxu0 0.0
    %3236 = vmatpush1.msra.mxu0 0.0
    %3237 = vmatprep.subr.mxu0 0.0
    %3238 = vmatpush1.msra.mxu0 0.0
    %3239 = vmatprep.subr.mxu0 0.0
    %3240 = vmatpush1.msra.mxu0 0.0
    %3241 = vmatprep.subr.mxu0 %v3211
    %3242 = vmatpush1.msra.mxu0 %v3208
    %3243 = vmatprep.subr.mxu0 %v3192
    %3244 = vmatpush1.msra.mxu0 %v3190
    %3245 = vmatprep.subr.mxu0 0.0
    %3246 = vmatpush2.msra.mxu0 0.0
    %3247 = vmatprep.subr.mxu0 0.0
    %3248 = vmatpush2.msra.mxu0 0.0
    %3249 = vmatprep.subr.mxu0 0.0
    %3250 = vmatpush2.msra.mxu0 0.0
    %3251 = vmatprep.subr.mxu0 0.0
    %3252 = vmatpush2.msra.mxu0 0.0
    %3253 = vmatprep.subr.mxu0 0.0
    %3254 = vmatpush2.msra.mxu0 0.0
    %3255 = vmatprep.subr.mxu0 0.0
    %3256 = vmatpush2.msra.mxu0 0.0
    %3257 = vmatprep.subr.mxu0 0.0
    %3258 = vmatpush2.msra.mxu0 0.0
    %3259 = vmatprep.subr.mxu0 0.0
    %3260 = vmatpush2.msra.mxu0 0.0
    %3261 = vmatprep.subr.mxu0 0.0
    %3262 = vmatpush2.msra.mxu0 0.0
    %3263 = vmatprep.subr.mxu0 0.0
    %3264 = vmatpush2.msra.mxu0 0.0
    %3265 = vmatprep.subr.mxu0 0.0
    %3266 = vmatpush2.msra.mxu0 0.0
    %3267 = vmatprep.subr.mxu0 0.0
    %3268 = vmatpush2.msra.mxu0 0.0
    %3269 = vmatprep.subr.mxu0 0.0
    %3270 = vmatpush2.msra.mxu0 0.0
    %3271 = vmatprep.subr.mxu0 0.0
    %3272 = vmatpush2.msra.mxu0 0.0
    %3273 = vmatprep.subr.mxu0 0.0
    %3274 = vmatpush2.msra.mxu0 0.0
    %3275 = vmatprep.subr.mxu0 0.0
    %3276 = vmatpush2.msra.mxu0 0.0
    %3277 = vmatprep.mubr.f32.mxu0 0.0
    %3278 = vmatmul.mubr.f32.gmra.mxu0 %v3202
    %v3279 = vpop.f32.mrf.mxu0
    %v3280 = vadd.f32 0.0, %v3279
    %v3281 = vpop.f32.mrf.mxu0
    %v3282 = vadd.f32 0.0, %v3281
    %3283 = vmatprep.mubr.f32.mxu0 0.0
    %3284 = vmatmul.mubr.f32.gmra.mxu0 %v3205
    %v3285 = vpop.f32.mrf.mxu0
    %v3286 = vadd.f32 0.0, %v3285
    %v3287 = vpop.f32.mrf.mxu0
    %v3288 = vadd.f32 0.0, %v3287
    %3289 = vdwg.mxu0
    %v3290 = vadd.f32 %v2717, %v3280
    %v3291 = vadd.f32 %v2719, %v3282
    %v3292 = vadd.f32 %v2723, %v3286
    %v3293 = vadd.f32 %v2725, %v3288
    %v3294 = vld [vmem:[%s9] sm:$0xff]
    %v3295 = vld [vmem:[%s9 + $0x8] sm:$0xff]
    %v3296 = vld [vmem:[%s9 + $0x10] sm:$0xff]
    %v3297 = vld [vmem:[%s9 + $0x18] sm:$0xff]
    %v3298 = vld [vmem:[%s9 + $0x20] sm:$0xff]
    %v3299 = vld [vmem:[%s9 + $0x28] sm:$0xff]
    %v3300 = vld [vmem:[%s9 + $0x30] sm:$0xff]
    %v3301 = vld [vmem:[%s9 + $0x38] sm:$0xff]
    %v3302 = vld [vmem:[%s9 + $0x40] sm:$0xff]
    %v3303 = vld [vmem:[%s9 + $0x48] sm:$0xff]
    %v3304 = vld [vmem:[%s9 + $0x50] sm:$0xff]
    %v3305 = vld [vmem:[%s9 + $0x58] sm:$0xff]
    %v3306 = vld [vmem:[%s9 + $0x60] sm:$0xff]
    %v3307 = vld [vmem:[%s9 + $0x68] sm:$0xff]
    %v3308 = vld [vmem:[%s9 + $0x70] sm:$0xff]
    %v3309 = vld [vmem:[%s9 + $0x78] sm:$0xff]
    %v3310 = vld [vmem:[%s9 + $0x80] sm:$0xff]
    %v3311 = vld [vmem:[%s9 + $0x88] sm:$0xff]
    %v3312 = vld [vmem:[%s9 + $0x90] sm:$0xff]
    %v3313 = vld [vmem:[%s9 + $0x98] sm:$0xff]
    %v3314 = vld [vmem:[%s9 + $0xa0] sm:$0xff]
    %v3315 = vld [vmem:[%s9 + $0xa8] sm:$0xff]
    %v3316 = vld [vmem:[%s9 + $0xb0] sm:$0xff]
    %v3317 = vld [vmem:[%s9 + $0xb8] sm:$0xff]
    %v3318 = vld [vmem:[%s9 + $0xc0] sm:$0xff]
    %v3319 = vld [vmem:[%s9 + $0xc8] sm:$0xff]
    %v3320 = vld [vmem:[%s9 + $0xd0] sm:$0xff]
    %v3321 = vld [vmem:[%s9 + $0xd8] sm:$0xff]
    %v3322 = vld [vmem:[%s9 + $0xe0] sm:$0xff]
    %v3323 = vld [vmem:[%s9 + $0xe8] sm:$0xff]
    %v3324 = vld [vmem:[%s9 + $0xf0] sm:$0xff]
    %v3325 = vld [vmem:[%s9 + $0xf8] sm:$0xff]
    %v3326 = vld [vmem:[%s10] sm:$0xff]
    %v3327 = vld [vmem:[%s10 + $0x8] sm:$0xff]
    %v3328 = vld [vmem:[%s10 + $0x10] sm:$0xff]
    %v3329 = vld [vmem:[%s10 + $0x18] sm:$0xff]
    %v3330 = vld [vmem:[%s11] ss:$2 sm:$0x3]
    %s3331 = scalar_lea.vmem %s11, 1
    %v3332 = vld [vmem:[%s3331] ss:$2 sm:$0x3]
    %v3333 = vsel %vm840, %v3292, 0.0
    %v3334 = vadd.f32 %v3290, %v3333
    %v3335 = vrot.slane %v3334, 4
    %v3336 = vadd.f32 %v3334, %v3335
    %v3337 = vrot.slane %v3336, 2
    %v3338 = vadd.f32 %v3336, %v3337
    %v3339 = vrot.slane %v3338, 1
    %v3340 = vadd.f32 %v3338, %v3339
    %v3341 = vsel %vm840, %v3293, 0.0
    %v3342 = vadd.f32 %v3291, %v3341
    %v3343 = vrot.slane %v3342, 4
    %v3344 = vadd.f32 %v3342, %v3343
    %v3345 = vrot.slane %v3344, 2
    %v3346 = vadd.f32 %v3344, %v3345
    %v3347 = vrot.slane %v3346, 1
    %v3348 = vadd.f32 %v3346, %v3347
    %3349 = vmatprep.subr.mxu0 0.0
    %3350 = vmatpush1.msra.mxu0 %v3309
    %3351 = vmatprep.subr.mxu0 0.0
    %3352 = vmatpush1.msra.mxu0 %v3308
    %3353 = vmatprep.subr.mxu0 0.0
    %3354 = vmatpush1.msra.mxu0 %v3307
    %3355 = vmatprep.subr.mxu0 0.0
    %3356 = vmatpush1.msra.mxu0 %v3306
    %3357 = vmatprep.subr.mxu0 0.0
    %3358 = vmatpush1.msra.mxu0 %v3305
    %3359 = vmatprep.subr.mxu0 0.0
    %3360 = vmatpush1.msra.mxu0 %v3304
    %3361 = vmatprep.subr.mxu0 0.0
    %3362 = vmatpush1.msra.mxu0 %v3303
    %3363 = vmatprep.subr.mxu0 0.0
    %3364 = vmatpush1.msra.mxu0 %v3302
    %3365 = vmatprep.subr.mxu0 0.0
    %3366 = vmatpush1.msra.mxu0 %v3301
    %3367 = vmatprep.subr.mxu0 0.0
    %3368 = vmatpush1.msra.mxu0 %v3300
    %3369 = vmatprep.subr.mxu0 0.0
    %3370 = vmatpush1.msra.mxu0 %v3299
    %3371 = vmatprep.subr.mxu0 0.0
    %3372 = vmatpush1.msra.mxu0 %v3298
    %3373 = vmatprep.subr.mxu0 0.0
    %3374 = vmatpush1.msra.mxu0 %v3297
    %3375 = vmatprep.subr.mxu0 0.0
    %3376 = vmatpush1.msra.mxu0 %v3296
    %3377 = vmatprep.subr.mxu0 0.0
    %3378 = vmatpush1.msra.mxu0 %v3295
    %3379 = vmatprep.subr.mxu0 0.0
    %3380 = vmatpush1.msra.mxu0 %v3294
    %3381 = vmatprep.subr.mxu0 0.0
    %3382 = vmatpush2.msra.mxu0 %v3325
    %3383 = vmatprep.subr.mxu0 0.0
    %3384 = vmatpush2.msra.mxu0 %v3324
    %3385 = vmatprep.subr.mxu0 0.0
    %3386 = vmatpush2.msra.mxu0 %v3323
    %3387 = vmatprep.subr.mxu0 0.0
    %3388 = vmatpush2.msra.mxu0 %v3322
    %3389 = vmatprep.subr.mxu0 0.0
    %3390 = vmatpush2.msra.mxu0 %v3321
    %3391 = vmatprep.subr.mxu0 0.0
    %3392 = vmatpush2.msra.mxu0 %v3320
    %3393 = vmatprep.subr.mxu0 0.0
    %3394 = vmatpush2.msra.mxu0 %v3319
    %3395 = vmatprep.subr.mxu0 0.0
    %3396 = vmatpush2.msra.mxu0 %v3318
    %3397 = vmatprep.subr.mxu0 0.0
    %3398 = vmatpush2.msra.mxu0 %v3317
    %3399 = vmatprep.subr.mxu0 0.0
    %3400 = vmatpush2.msra.mxu0 %v3316
    %3401 = vmatprep.subr.mxu0 0.0
    %3402 = vmatpush2.msra.mxu0 %v3315
    %3403 = vmatprep.subr.mxu0 0.0
    %3404 = vmatpush2.msra.mxu0 %v3314
    %3405 = vmatprep.subr.mxu0 0.0
    %3406 = vmatpush2.msra.mxu0 %v3313
    %3407 = vmatprep.subr.mxu0 0.0
    %3408 = vmatpush2.msra.mxu0 %v3312
    %3409 = vmatprep.subr.mxu0 0.0
    %3410 = vmatpush2.msra.mxu0 %v3311
    %3411 = vmatprep.subr.mxu0 0.0
    %3412 = vmatpush2.msra.mxu0 %v3310
    %3413 = vmatprep.mubr.f32.mxu0 %v3348
    %3414 = vmatmul.mubr.f32.gmra.mxu0 %v3340
    %v3415 = vpop.f32.mrf.mxu0
    %v3416 = vadd.f32 0.0, %v3415
    %v3417 = vpop.f32.mrf.mxu0
    %3418 = vdwg.mxu0
    %v3419 = vmul.f32 %v3416, 0.0052083335
    %vm3420 = vcmask 130048
    %v3422 = vsel %vm3420, %v3419, 0
    %3424 = vmatprep.subr.mxu0 0.0
    %3425 = vmatpush1.msra.mxu0 0.0
    %3426 = vmatprep.subr.mxu0 0.0
    %3427 = vmatpush1.msra.mxu0 0.0
    %3428 = vmatprep.subr.mxu0 0.0
    %3429 = vmatpush1.msra.mxu0 0.0
    %3430 = vmatprep.subr.mxu0 0.0
    %3431 = vmatpush1.msra.mxu0 0.0
    %3432 = vmatprep.subr.mxu0 0.0
    %3433 = vmatpush1.msra.mxu0 0.0
    %3434 = vmatprep.subr.mxu0 0.0
    %3435 = vmatpush1.msra.mxu0 0.0
    %3436 = vmatprep.subr.mxu0 0.0
    %3437 = vmatpush1.msra.mxu0 0.0
    %3438 = vmatprep.subr.mxu0 0.0
    %3439 = vmatpush1.msra.mxu0 0.0
    %3440 = vmatprep.subr.mxu0 0.0
    %3441 = vmatpush1.msra.mxu0 0.0
    %3442 = vmatprep.subr.mxu0 0.0
    %3443 = vmatpush1.msra.mxu0 0.0
    %3444 = vmatprep.subr.mxu0 0.0
    %3445 = vmatpush1.msra.mxu0 0.0
    %3446 = vmatprep.subr.mxu0 0.0
    %3447 = vmatpush1.msra.mxu0 0.0
    %3448 = vmatprep.subr.mxu0 0.0
    %3449 = vmatpush1.msra.mxu0 0.0
    %3450 = vmatprep.subr.mxu0 0.0
    %3451 = vmatpush1.msra.mxu0 0.0
    %3452 = vmatprep.subr.mxu0 %v3329
    %3453 = vmatpush1.msra.mxu0 %v3328
    %3454 = vmatprep.subr.mxu0 %v3327
    %3455 = vmatpush1.msra.mxu0 %v3326
    %3456 = vmatprep.subr.mxu0 0.0
    %3457 = vmatpush2.msra.mxu0 0.0
    %3458 = vmatprep.subr.mxu0 0.0
    %3459 = vmatpush2.msra.mxu0 0.0
    %3460 = vmatprep.subr.mxu0 0.0
    %3461 = vmatpush2.msra.mxu0 0.0
    %3462 = vmatprep.subr.mxu0 0.0
    %3463 = vmatpush2.msra.mxu0 0.0
    %3464 = vmatprep.subr.mxu0 0.0
    %3465 = vmatpush2.msra.mxu0 0.0
    %3466 = vmatprep.subr.mxu0 0.0
    %3467 = vmatpush2.msra.mxu0 0.0
    %3468 = vmatprep.subr.mxu0 0.0
    %3469 = vmatpush2.msra.mxu0 0.0
    %3470 = vmatprep.subr.mxu0 0.0
    %3471 = vmatpush2.msra.mxu0 0.0
    %3472 = vmatprep.subr.mxu0 0.0
    %3473 = vmatpush2.msra.mxu0 0.0
    %3474 = vmatprep.subr.mxu0 0.0
    %3475 = vmatpush2.msra.mxu0 0.0
    %3476 = vmatprep.subr.mxu0 0.0
    %3477 = vmatpush2.msra.mxu0 0.0
    %3478 = vmatprep.subr.mxu0 0.0
    %3479 = vmatpush2.msra.mxu0 0.0
    %3480 = vmatprep.subr.mxu0 0.0
    %3481 = vmatpush2.msra.mxu0 0.0
    %3482 = vmatprep.subr.mxu0 0.0
    %3483 = vmatpush2.msra.mxu0 0.0
    %3484 = vmatprep.subr.mxu0 0.0
    %3485 = vmatpush2.msra.mxu0 0.0
    %3486 = vmatprep.subr.mxu0 0.0
    %3487 = vmatpush2.msra.mxu0 0.0
    %3488 = vmatprep.mubr.f32.mxu0 0.0
    %3489 = vmatmul.mubr.f32.gmra.mxu0 %v3422
    %v3490 = vpop.f32.mrf.mxu0
    %v3491 = vadd.f32 0.0, %v3490
    %v3492 = vpop.f32.mrf.mxu0
    %v3493 = vadd.f32 0.0, %v3492
    %3494 = vdwg.mxu0
    %v3495 = vlaneseq
    %v3496 = vshrl.u32 %v3495, 7
    %v3497 = vsub.s32 0, %v3496
    %v3498 = vrot.slane %v3491, %v3497
    %v3499 = vlaneseq
    %v3500 = vshrl.u32 %v3499, 7
    %v3501 = vsub.s32 0, %v3500
    %v3502 = vrot.slane %v3493, %v3501
    %v3503 = vsub.f32 %v3290, %v3498
    %v3504 = vsub.f32 %v3291, %v3502
    %v3505 = vsub.f32 %v3292, %v3498
    %v3506 = vsub.f32 %v3293, %v3502
    %v3507 = vmul.f32 %v3503, %v3503
    %v3508 = vmul.f32 %v3504, %v3504
    %v3509 = vmul.f32 %v3505, %v3505
    %v3510 = vmul.f32 %v3506, %v3506
    %v3511 = vsel %vm840, %v3509, 0.0
    %v3512 = vadd.f32 %v3507, %v3511
    %v3513 = vrot.slane %v3512, 4
    %v3514 = vadd.f32 %v3512, %v3513
    %v3515 = vrot.slane %v3514, 2
    %v3516 = vadd.f32 %v3514, %v3515
    %v3517 = vrot.slane %v3516, 1
    %v3518 = vadd.f32 %v3516, %v3517
    %v3519 = vsel %vm840, %v3510, 0.0
    %v3520 = vadd.f32 %v3508, %v3519
    %v3521 = vrot.slane %v3520, 4
    %v3522 = vadd.f32 %v3520, %v3521
    %v3523 = vrot.slane %v3522, 2
    %v3524 = vadd.f32 %v3522, %v3523
    %v3525 = vrot.slane %v3524, 1
    %v3526 = vadd.f32 %v3524, %v3525
    %3527 = vmatprep.subr.mxu0 0.0
    %3528 = vmatpush1.msra.mxu0 %v3309
    %3529 = vmatprep.subr.mxu0 0.0
    %3530 = vmatpush1.msra.mxu0 %v3308
    %3531 = vmatprep.subr.mxu0 0.0
    %3532 = vmatpush1.msra.mxu0 %v3307
    %3533 = vmatprep.subr.mxu0 0.0
    %3534 = vmatpush1.msra.mxu0 %v3306
    %3535 = vmatprep.subr.mxu0 0.0
    %3536 = vmatpush1.msra.mxu0 %v3305
    %3537 = vmatprep.subr.mxu0 0.0
    %3538 = vmatpush1.msra.mxu0 %v3304
    %3539 = vmatprep.subr.mxu0 0.0
    %3540 = vmatpush1.msra.mxu0 %v3303
    %3541 = vmatprep.subr.mxu0 0.0
    %3542 = vmatpush1.msra.mxu0 %v3302
    %3543 = vmatprep.subr.mxu0 0.0
    %3544 = vmatpush1.msra.mxu0 %v3301
    %3545 = vmatprep.subr.mxu0 0.0
    %3546 = vmatpush1.msra.mxu0 %v3300
    %3547 = vmatprep.subr.mxu0 0.0
    %3548 = vmatpush1.msra.mxu0 %v3299
    %3549 = vmatprep.subr.mxu0 0.0
    %3550 = vmatpush1.msra.mxu0 %v3298
    %3551 = vmatprep.subr.mxu0 0.0
    %3552 = vmatpush1.msra.mxu0 %v3297
    %3553 = vmatprep.subr.mxu0 0.0
    %3554 = vmatpush1.msra.mxu0 %v3296
    %3555 = vmatprep.subr.mxu0 0.0
    %3556 = vmatpush1.msra.mxu0 %v3295
    %3557 = vmatprep.subr.mxu0 0.0
    %3558 = vmatpush1.msra.mxu0 %v3294
    %3559 = vmatprep.subr.mxu0 0.0
    %3560 = vmatpush2.msra.mxu0 %v3325
    %3561 = vmatprep.subr.mxu0 0.0
    %3562 = vmatpush2.msra.mxu0 %v3324
    %3563 = vmatprep.subr.mxu0 0.0
    %3564 = vmatpush2.msra.mxu0 %v3323
    %3565 = vmatprep.subr.mxu0 0.0
    %3566 = vmatpush2.msra.mxu0 %v3322
    %3567 = vmatprep.subr.mxu0 0.0
    %3568 = vmatpush2.msra.mxu0 %v3321
    %3569 = vmatprep.subr.mxu0 0.0
    %3570 = vmatpush2.msra.mxu0 %v3320
    %3571 = vmatprep.subr.mxu0 0.0
    %3572 = vmatpush2.msra.mxu0 %v3319
    %3573 = vmatprep.subr.mxu0 0.0
    %3574 = vmatpush2.msra.mxu0 %v3318
    %3575 = vmatprep.subr.mxu0 0.0
    %3576 = vmatpush2.msra.mxu0 %v3317
    %3577 = vmatprep.subr.mxu0 0.0
    %3578 = vmatpush2.msra.mxu0 %v3316
    %3579 = vmatprep.subr.mxu0 0.0
    %3580 = vmatpush2.msra.mxu0 %v3315
    %3581 = vmatprep.subr.mxu0 0.0
    %3582 = vmatpush2.msra.mxu0 %v3314
    %3583 = vmatprep.subr.mxu0 0.0
    %3584 = vmatpush2.msra.mxu0 %v3313
    %3585 = vmatprep.subr.mxu0 0.0
    %3586 = vmatpush2.msra.mxu0 %v3312
    %3587 = vmatprep.subr.mxu0 0.0
    %3588 = vmatpush2.msra.mxu0 %v3311
    %3589 = vmatprep.subr.mxu0 0.0
    %3590 = vmatpush2.msra.mxu0 %v3310
    %3591 = vmatprep.mubr.f32.mxu0 %v3526
    %3592 = vmatmul.mubr.f32.gmra.mxu0 %v3518
    %v3593 = vpop.f32.mrf.mxu0
    %v3594 = vadd.f32 0.0, %v3593
    %v3595 = vpop.f32.mrf.mxu0
    %3596 = vdwg.mxu0
    %v3597 = vmul.f32 %v3594, 0.0052083335
    %v3598 = vadd.f32 %v3597, 1e-05
    %v3599 = vrsqrt.pop %v3598
    %v3601 = vsel %vm3420, %v3599, 0
    %3603 = vmatprep.subr.mxu0 0.0
    %3604 = vmatpush1.msra.mxu0 0.0
    %3605 = vmatprep.subr.mxu0 0.0
    %3606 = vmatpush1.msra.mxu0 0.0
    %3607 = vmatprep.subr.mxu0 0.0
    %3608 = vmatpush1.msra.mxu0 0.0
    %3609 = vmatprep.subr.mxu0 0.0
    %3610 = vmatpush1.msra.mxu0 0.0
    %3611 = vmatprep.subr.mxu0 0.0
    %3612 = vmatpush1.msra.mxu0 0.0
    %3613 = vmatprep.subr.mxu0 0.0
    %3614 = vmatpush1.msra.mxu0 0.0
    %3615 = vmatprep.subr.mxu0 0.0
    %3616 = vmatpush1.msra.mxu0 0.0
    %3617 = vmatprep.subr.mxu0 0.0
    %3618 = vmatpush1.msra.mxu0 0.0
    %3619 = vmatprep.subr.mxu0 0.0
    %3620 = vmatpush1.msra.mxu0 0.0
    %3621 = vmatprep.subr.mxu0 0.0
    %3622 = vmatpush1.msra.mxu0 0.0
    %3623 = vmatprep.subr.mxu0 0.0
    %3624 = vmatpush1.msra.mxu0 0.0
    %3625 = vmatprep.subr.mxu0 0.0
    %3626 = vmatpush1.msra.mxu0 0.0
    %3627 = vmatprep.subr.mxu0 0.0
    %3628 = vmatpush1.msra.mxu0 0.0
    %3629 = vmatprep.subr.mxu0 0.0
    %3630 = vmatpush1.msra.mxu0 0.0
    %3631 = vmatprep.subr.mxu0 %v3329
    %3632 = vmatpush1.msra.mxu0 %v3328
    %3633 = vmatprep.subr.mxu0 %v3327
    %3634 = vmatpush1.msra.mxu0 %v3326
    %3635 = vmatprep.subr.mxu0 0.0
    %3636 = vmatpush2.msra.mxu0 0.0
    %3637 = vmatprep.subr.mxu0 0.0
    %3638 = vmatpush2.msra.mxu0 0.0
    %3639 = vmatprep.subr.mxu0 0.0
    %3640 = vmatpush2.msra.mxu0 0.0
    %3641 = vmatprep.subr.mxu0 0.0
    %3642 = vmatpush2.msra.mxu0 0.0
    %3643 = vmatprep.subr.mxu0 0.0
    %3644 = vmatpush2.msra.mxu0 0.0
    %3645 = vmatprep.subr.mxu0 0.0
    %3646 = vmatpush2.msra.mxu0 0.0
    %3647 = vmatprep.subr.mxu0 0.0
    %3648 = vmatpush2.msra.mxu0 0.0
    %3649 = vmatprep.subr.mxu0 0.0
    %3650 = vmatpush2.msra.mxu0 0.0
    %3651 = vmatprep.subr.mxu0 0.0
    %3652 = vmatpush2.msra.mxu0 0.0
    %3653 = vmatprep.subr.mxu0 0.0
    %3654 = vmatpush2.msra.mxu0 0.0
    %3655 = vmatprep.subr.mxu0 0.0
    %3656 = vmatpush2.msra.mxu0 0.0
    %3657 = vmatprep.subr.mxu0 0.0
    %3658 = vmatpush2.msra.mxu0 0.0
    %3659 = vmatprep.subr.mxu0 0.0
    %3660 = vmatpush2.msra.mxu0 0.0
    %3661 = vmatprep.subr.mxu0 0.0
    %3662 = vmatpush2.msra.mxu0 0.0
    %3663 = vmatprep.subr.mxu0 0.0
    %3664 = vmatpush2.msra.mxu0 0.0
    %3665 = vmatprep.subr.mxu0 0.0
    %3666 = vmatpush2.msra.mxu0 0.0
    %3667 = vmatprep.mubr.f32.mxu0 0.0
    %3668 = vmatmul.mubr.f32.gmra.mxu0 %v3601
    %v3669 = vpop.f32.mrf.mxu0
    %v3670 = vadd.f32 0.0, %v3669
    %v3671 = vpop.f32.mrf.mxu0
    %v3672 = vadd.f32 0.0, %v3671
    %3673 = vdwg.mxu0
    %v3675 = vlaneseq
    %v3676 = vshrl.u32 %v3675, 7
    %v3677 = vsub.s32 0, %v3676
    %v3678 = vrot.slane %v3330, %v3677
    %v3679 = vlaneseq
    %v3680 = vshrl.u32 %v3679, 7
    %v3681 = vsub.s32 1, %v3680
    %v3682 = vrot.slane %v3330, %v3681
    %v3685 = vmul.f32 %v3670, %v3678
    %v3686 = vmul.f32 %v3672, %v3682
    %v3687 = vlaneseq
    %v3688 = vshrl.u32 %v3687, 7
    %v3689 = vsub.s32 0, %v3688
    %v3690 = vrot.slane %v3685, %v3689
    %v3691 = vlaneseq
    %v3692 = vshrl.u32 %v3691, 7
    %v3693 = vsub.s32 0, %v3692
    %v3694 = vrot.slane %v3686, %v3693
    %v3695 = vmul.f32 %v3503, %v3690
    %v3696 = vmul.f32 %v3504, %v3694
    %v3697 = vmul.f32 %v3505, %v3690
    %v3698 = vmul.f32 %v3506, %v3694
    %v3700 = vlaneseq
    %v3701 = vshrl.u32 %v3700, 7
    %v3702 = vsub.s32 0, %v3701
    %v3703 = vrot.slane %v3332, %v3702
    %v3704 = vlaneseq
    %v3705 = vshrl.u32 %v3704, 7
    %v3706 = vsub.s32 1, %v3705
    %v3707 = vrot.slane %v3332, %v3706
    %v3710 = vadd.f32 %v3695, %v3703
    %v3711 = vadd.f32 %v3696, %v3707
    %v3712 = vadd.f32 %v3697, %v3703
    %v3713 = vadd.f32 %v3698, %v3707
    %v3714 = vmax.f32 %v3710, 0.0
    %v3715 = vmax.f32 %v3711, 0.0
    %v3716 = vmax.f32 %v3712, 0.0
    %v3717 = vmax.f32 %v3713, 0.0
    %v3718 = vpack.c.bf16 %v3716, %v3714
    %v3719 = vpack.c.bf16 %v3717, %v3715
    %v3720 = vld [vmem:[#allocation4] sm:$0xf]
    %v3721 = vld [vmem:[#allocation4 + $0x4] sm:$0xf]
    %v3722 = vld [vmem:[#allocation4 + $0x8] sm:$0xf]
    %v3723 = vld [vmem:[#allocation4 + $0xc] sm:$0xf]
    %v3724 = vld [vmem:[#allocation4 + $0x10] sm:$0xf]
    %v3725 = vld [vmem:[#allocation4 + $0x14] sm:$0xf]
    %v3726 = vld [vmem:[#allocation4 + $0x18] sm:$0xf]
    %v3727 = vld [vmem:[#allocation4 + $0x1c] sm:$0xf]
    %v3728 = vld [vmem:[#allocation4 + $0x20] sm:$0xf]
    %v3729 = vld [vmem:[#allocation4 + $0x24] sm:$0xf]
    %v3730 = vld [vmem:[#allocation4 + $0x28] sm:$0xf]
    %v3731 = vld [vmem:[#allocation4 + $0x2c] sm:$0xf]
    %v3732 = vld [vmem:[#allocation4 + $0x30] sm:$0xf]
    %v3733 = vld [vmem:[#allocation4 + $0x34] sm:$0xf]
    %v3734 = vld [vmem:[#allocation4 + $0x38] sm:$0xf]
    %v3735 = vld [vmem:[#allocation4 + $0x3c] sm:$0xf]
    %v3736 = vld [vmem:[#allocation4 + $0x40] sm:$0xf]
    %v3737 = vld [vmem:[#allocation4 + $0x44] sm:$0xf]
    %v3738 = vld [vmem:[#allocation4 + $0x48] sm:$0xf]
    %v3739 = vld [vmem:[#allocation4 + $0x4c] sm:$0xf]
    %v3740 = vld [vmem:[#allocation4 + $0x50] sm:$0xf]
    %v3741 = vld [vmem:[#allocation4 + $0x54] sm:$0xf]
    %v3742 = vld [vmem:[#allocation4 + $0x58] sm:$0xf]
    %v3743 = vld [vmem:[#allocation4 + $0x5c] sm:$0xf]
    %v3744 = vld [vmem:[#allocation4 + $0x60] sm:$0xf]
    %v3745 = vld [vmem:[#allocation4 + $0x64] sm:$0xf]
    %v3746 = vld [vmem:[#allocation4 + $0x68] sm:$0xf]
    %v3747 = vld [vmem:[#allocation4 + $0x6c] sm:$0xf]
    %v3748 = vld [vmem:[#allocation4 + $0x70] sm:$0xf]
    %v3749 = vld [vmem:[#allocation4 + $0x74] sm:$0xf]
    %v3750 = vld [vmem:[#allocation4 + $0x78] sm:$0xf]
    %v3751 = vld [vmem:[#allocation4 + $0x7c] sm:$0xf]
    %v3784 = vunpack.c.l.b16 %v3720
    %v3785 = vunpack.c.l.b16 %v3721
    %v3786 = vunpack.c.l.b16 %v3722
    %v3787 = vunpack.c.l.b16 %v3723
    %v3788 = vunpack.c.l.b16 %v3724
    %v3789 = vunpack.c.l.b16 %v3725
    %v3790 = vunpack.c.l.b16 %v3726
    %v3791 = vunpack.c.l.b16 %v3727
    %v3792 = vunpack.c.l.b16 %v3728
    %v3793 = vunpack.c.l.b16 %v3729
    %v3794 = vunpack.c.l.b16 %v3730
    %v3795 = vunpack.c.l.b16 %v3731
    %v3796 = vunpack.c.l.b16 %v3732
    %v3797 = vunpack.c.l.b16 %v3733
    %v3798 = vunpack.c.l.b16 %v3734
    %v3799 = vunpack.c.l.b16 %v3735
    %v3800 = vunpack.c.l.b16 %v3736
    %v3801 = vunpack.c.l.b16 %v3737
    %v3802 = vunpack.c.l.b16 %v3738
    %v3803 = vunpack.c.l.b16 %v3739
    %v3804 = vunpack.c.l.b16 %v3740
    %v3805 = vunpack.c.l.b16 %v3741
    %v3806 = vunpack.c.l.b16 %v3742
    %v3807 = vunpack.c.l.b16 %v3743
    %v3808 = vunpack.c.l.b16 %v3744
    %v3809 = vunpack.c.l.b16 %v3745
    %v3810 = vunpack.c.l.b16 %v3746
    %v3811 = vunpack.c.l.b16 %v3747
    %v3812 = vunpack.c.l.b16 %v3748
    %v3813 = vunpack.c.l.b16 %v3749
    %v3814 = vunpack.c.l.b16 %v3750
    %v3815 = vunpack.c.l.b16 %v3751
    %v3816 = vpack.c.b16 %v3785, %v3784
    %v3817 = vpack.c.b16 %v3787, %v3786
    %v3818 = vpack.c.b16 %v3789, %v3788
    %v3819 = vpack.c.b16 %v3791, %v3790
    %v3820 = vpack.c.b16 %v3793, %v3792
    %v3821 = vpack.c.b16 %v3795, %v3794
    %v3822 = vpack.c.b16 %v3797, %v3796
    %v3823 = vpack.c.b16 %v3799, %v3798
    %v3824 = vpack.c.b16 %v3801, %v3800
    %v3825 = vpack.c.b16 %v3803, %v3802
    %v3826 = vpack.c.b16 %v3805, %v3804
    %v3827 = vpack.c.b16 %v3807, %v3806
    %v3828 = vpack.c.b16 %v3809, %v3808
    %v3829 = vpack.c.b16 %v3811, %v3810
    %v3830 = vpack.c.b16 %v3813, %v3812
    %v3831 = vpack.c.b16 %v3815, %v3814
    %3848 = vmatprep.subr.bf16.mxu0 0
    %3849 = vmatpush1.bf16.msra.mxu0 %v3823
    %3850 = vmatprep.subr.bf16.mxu0 0
    %3851 = vmatpush1.bf16.msra.mxu0 %v3822
    %3852 = vmatprep.subr.bf16.mxu0 0
    %3853 = vmatpush1.bf16.msra.mxu0 %v3821
    %3854 = vmatprep.subr.bf16.mxu0 0
    %3855 = vmatpush1.bf16.msra.mxu0 %v3820
    %3856 = vmatprep.subr.bf16.mxu0 0
    %3857 = vmatpush1.bf16.msra.mxu0 %v3819
    %3858 = vmatprep.subr.bf16.mxu0 0
    %3859 = vmatpush1.bf16.msra.mxu0 %v3818
    %3860 = vmatprep.subr.bf16.mxu0 0
    %3861 = vmatpush1.bf16.msra.mxu0 %v3817
    %3862 = vmatprep.subr.bf16.mxu0 0
    %3863 = vmatpush1.bf16.msra.mxu0 %v3816
    %3864 = vmatprep.subr.bf16.mxu0 0
    %3865 = vmatpush2.bf16.msra.mxu0 %v3831
    %3866 = vmatprep.subr.bf16.mxu0 0
    %3867 = vmatpush2.bf16.msra.mxu0 %v3830
    %3868 = vmatprep.subr.bf16.mxu0 0
    %3869 = vmatpush2.bf16.msra.mxu0 %v3829
    %3870 = vmatprep.subr.bf16.mxu0 0
    %3871 = vmatpush2.bf16.msra.mxu0 %v3828
    %3872 = vmatprep.subr.bf16.mxu0 0
    %3873 = vmatpush2.bf16.msra.mxu0 %v3827
    %3874 = vmatprep.subr.bf16.mxu0 0
    %3875 = vmatpush2.bf16.msra.mxu0 %v3826
    %3876 = vmatprep.subr.bf16.mxu0 0
    %3877 = vmatpush2.bf16.msra.mxu0 %v3825
    %3878 = vmatprep.subr.bf16.mxu0 0
    %3879 = vmatpush2.bf16.msra.mxu0 %v3824
    %3880 = vmatprep.mubr.bf16.mxu0 %v3719
    %3881 = vmatmul.mubr.bf16.gmra.mxu0 %v3718
    %v3882 = vpop.f32.mrf.mxu0
    %v3883 = vadd.f32 0.0, %v3882
    %v3884 = vpop.f32.mrf.mxu0
    %v3885 = vpop.f32.mrf.mxu0
    %v3886 = vadd.f32 0.0, %v3885
    %v3887 = vpop.f32.mrf.mxu0
    %3888 = vdwg.mxu0
    %s3889 = scalar_lea.vmem [#allocation4], 128
    %v3890 = vld [vmem:[%s3889] sm:$0xf]
    %v3891 = vld [vmem:[%s3889 + $0x4] sm:$0xf]
    %v3892 = vld [vmem:[%s3889 + $0x8] sm:$0xf]
    %v3893 = vld [vmem:[%s3889 + $0xc] sm:$0xf]
    %v3894 = vld [vmem:[%s3889 + $0x10] sm:$0xf]
    %v3895 = vld [vmem:[%s3889 + $0x14] sm:$0xf]
    %v3896 = vld [vmem:[%s3889 + $0x18] sm:$0xf]
    %v3897 = vld [vmem:[%s3889 + $0x1c] sm:$0xf]
    %v3898 = vld [vmem:[%s3889 + $0x20] sm:$0xf]
    %v3899 = vld [vmem:[%s3889 + $0x24] sm:$0xf]
    %v3900 = vld [vmem:[%s3889 + $0x28] sm:$0xf]
    %v3901 = vld [vmem:[%s3889 + $0x2c] sm:$0xf]
    %v3902 = vld [vmem:[%s3889 + $0x30] sm:$0xf]
    %v3903 = vld [vmem:[%s3889 + $0x34] sm:$0xf]
    %v3904 = vld [vmem:[%s3889 + $0x38] sm:$0xf]
    %v3905 = vld [vmem:[%s3889 + $0x3c] sm:$0xf]
    %v3906 = vld [vmem:[%s3889 + $0x40] sm:$0xf]
    %v3907 = vld [vmem:[%s3889 + $0x44] sm:$0xf]
    %v3908 = vld [vmem:[%s3889 + $0x48] sm:$0xf]
    %v3909 = vld [vmem:[%s3889 + $0x4c] sm:$0xf]
    %v3910 = vld [vmem:[%s3889 + $0x50] sm:$0xf]
    %v3911 = vld [vmem:[%s3889 + $0x54] sm:$0xf]
    %v3912 = vld [vmem:[%s3889 + $0x58] sm:$0xf]
    %v3913 = vld [vmem:[%s3889 + $0x5c] sm:$0xf]
    %v3914 = vld [vmem:[%s3889 + $0x60] sm:$0xf]
    %v3915 = vld [vmem:[%s3889 + $0x64] sm:$0xf]
    %v3916 = vld [vmem:[%s3889 + $0x68] sm:$0xf]
    %v3917 = vld [vmem:[%s3889 + $0x6c] sm:$0xf]
    %v3918 = vld [vmem:[%s3889 + $0x70] sm:$0xf]
    %v3919 = vld [vmem:[%s3889 + $0x74] sm:$0xf]
    %v3920 = vld [vmem:[%s3889 + $0x78] sm:$0xf]
    %v3921 = vld [vmem:[%s3889 + $0x7c] sm:$0xf]
    %v3954 = vunpack.c.l.b16 %v3890
    %v3955 = vunpack.c.l.b16 %v3891
    %v3956 = vunpack.c.l.b16 %v3892
    %v3957 = vunpack.c.l.b16 %v3893
    %v3958 = vunpack.c.l.b16 %v3894
    %v3959 = vunpack.c.l.b16 %v3895
    %v3960 = vunpack.c.l.b16 %v3896
    %v3961 = vunpack.c.l.b16 %v3897
    %v3962 = vunpack.c.l.b16 %v3898
    %v3963 = vunpack.c.l.b16 %v3899
    %v3964 = vunpack.c.l.b16 %v3900
    %v3965 = vunpack.c.l.b16 %v3901
    %v3966 = vunpack.c.l.b16 %v3902
    %v3967 = vunpack.c.l.b16 %v3903
    %v3968 = vunpack.c.l.b16 %v3904
    %v3969 = vunpack.c.l.b16 %v3905
    %v3970 = vunpack.c.l.b16 %v3906
    %v3971 = vunpack.c.l.b16 %v3907
    %v3972 = vunpack.c.l.b16 %v3908
    %v3973 = vunpack.c.l.b16 %v3909
    %v3974 = vunpack.c.l.b16 %v3910
    %v3975 = vunpack.c.l.b16 %v3911
    %v3976 = vunpack.c.l.b16 %v3912
    %v3977 = vunpack.c.l.b16 %v3913
    %v3978 = vunpack.c.l.b16 %v3914
    %v3979 = vunpack.c.l.b16 %v3915
    %v3980 = vunpack.c.l.b16 %v3916
    %v3981 = vunpack.c.l.b16 %v3917
    %v3982 = vunpack.c.l.b16 %v3918
    %v3983 = vunpack.c.l.b16 %v3919
    %v3984 = vunpack.c.l.b16 %v3920
    %v3985 = vunpack.c.l.b16 %v3921
    %v3986 = vpack.c.b16 %v3955, %v3954
    %v3987 = vpack.c.b16 %v3957, %v3956
    %v3988 = vpack.c.b16 %v3959, %v3958
    %v3989 = vpack.c.b16 %v3961, %v3960
    %v3990 = vpack.c.b16 %v3963, %v3962
    %v3991 = vpack.c.b16 %v3965, %v3964
    %v3992 = vpack.c.b16 %v3967, %v3966
    %v3993 = vpack.c.b16 %v3969, %v3968
    %v3994 = vpack.c.b16 %v3971, %v3970
    %v3995 = vpack.c.b16 %v3973, %v3972
    %v3996 = vpack.c.b16 %v3975, %v3974
    %v3997 = vpack.c.b16 %v3977, %v3976
    %v3998 = vpack.c.b16 %v3979, %v3978
    %v3999 = vpack.c.b16 %v3981, %v3980
    %v4000 = vpack.c.b16 %v3983, %v3982
    %v4001 = vpack.c.b16 %v3985, %v3984
    %4018 = vmatprep.subr.bf16.mxu0 0
    %4019 = vmatpush1.bf16.msra.mxu0 %v3993
    %4020 = vmatprep.subr.bf16.mxu0 0
    %4021 = vmatpush1.bf16.msra.mxu0 %v3992
    %4022 = vmatprep.subr.bf16.mxu0 0
    %4023 = vmatpush1.bf16.msra.mxu0 %v3991
    %4024 = vmatprep.subr.bf16.mxu0 0
    %4025 = vmatpush1.bf16.msra.mxu0 %v3990
    %4026 = vmatprep.subr.bf16.mxu0 0
    %4027 = vmatpush1.bf16.msra.mxu0 %v3989
    %4028 = vmatprep.subr.bf16.mxu0 0
    %4029 = vmatpush1.bf16.msra.mxu0 %v3988
    %4030 = vmatprep.subr.bf16.mxu0 0
    %4031 = vmatpush1.bf16.msra.mxu0 %v3987
    %4032 = vmatprep.subr.bf16.mxu0 0
    %4033 = vmatpush1.bf16.msra.mxu0 %v3986
    %4034 = vmatprep.subr.bf16.mxu0 0
    %4035 = vmatpush2.bf16.msra.mxu0 %v4001
    %4036 = vmatprep.subr.bf16.mxu0 0
    %4037 = vmatpush2.bf16.msra.mxu0 %v4000
    %4038 = vmatprep.subr.bf16.mxu0 0
    %4039 = vmatpush2.bf16.msra.mxu0 %v3999
    %4040 = vmatprep.subr.bf16.mxu0 0
    %4041 = vmatpush2.bf16.msra.mxu0 %v3998
    %4042 = vmatprep.subr.bf16.mxu0 0
    %4043 = vmatpush2.bf16.msra.mxu0 %v3997
    %4044 = vmatprep.subr.bf16.mxu0 0
    %4045 = vmatpush2.bf16.msra.mxu0 %v3996
    %4046 = vmatprep.subr.bf16.mxu0 0
    %4047 = vmatpush2.bf16.msra.mxu0 %v3995
    %4048 = vmatprep.subr.bf16.mxu0 0
    %4049 = vmatpush2.bf16.msra.mxu0 %v3994
    %4050 = vmatprep.mubr.bf16.mxu0 %v3719
    %4051 = vmatmul.mubr.bf16.gmra.mxu0 %v3718
    %v4052 = vpop.f32.mrf.mxu0
    %v4053 = vadd.f32 0.0, %v4052
    %v4054 = vpop.f32.mrf.mxu0
    %v4055 = vpop.f32.mrf.mxu0
    %v4056 = vadd.f32 0.0, %v4055
    %v4057 = vpop.f32.mrf.mxu0
    %4058 = vdwg.mxu0
    %v4060 = vsel %vm840, %v4056, 0
    %4062 = vmatprep.subr.mxu0 0.0
    %4063 = vmatpush1.msra.mxu0 0.0
    %4064 = vmatprep.subr.mxu0 0.0
    %4065 = vmatpush1.msra.mxu0 0.0
    %4066 = vmatprep.subr.mxu0 0.0
    %4067 = vmatpush1.msra.mxu0 0.0
    %4068 = vmatprep.subr.mxu0 0.0
    %4069 = vmatpush1.msra.mxu0 0.0
    %4070 = vmatprep.subr.mxu0 0.0
    %4071 = vmatpush1.msra.mxu0 0.0
    %4072 = vmatprep.subr.mxu0 0.0
    %4073 = vmatpush1.msra.mxu0 0.0
    %4074 = vmatprep.subr.mxu0 0.0
    %4075 = vmatpush1.msra.mxu0 0.0
    %4076 = vmatprep.subr.mxu0 0.0
    %4077 = vmatpush1.msra.mxu0 0.0
    %4078 = vmatprep.subr.mxu0 0.0
    %4079 = vmatpush1.msra.mxu0 0.0
    %4080 = vmatprep.subr.mxu0 0.0
    %4081 = vmatpush1.msra.mxu0 0.0
    %4082 = vmatprep.subr.mxu0 0.0
    %4083 = vmatpush1.msra.mxu0 0.0
    %4084 = vmatprep.subr.mxu0 0.0
    %4085 = vmatpush1.msra.mxu0 0.0
    %4086 = vmatprep.subr.mxu0 0.0
    %4087 = vmatpush1.msra.mxu0 0.0
    %4088 = vmatprep.subr.mxu0 0.0
    %4089 = vmatpush1.msra.mxu0 0.0
    %4090 = vmatprep.subr.mxu0 0.0
    %4091 = vmatpush1.msra.mxu0 %v4060
    %4092 = vmatprep.subr.mxu0 0.0
    %4093 = vmatpush1.msra.mxu0 %v4053
    %4094 = vmatprep.subr.mxu0 0.0
    %4095 = vmatpush2.msra.mxu0 0.0
    %4096 = vmatprep.subr.mxu0 0.0
    %4097 = vmatpush2.msra.mxu0 0.0
    %4098 = vmatprep.subr.mxu0 0.0
    %4099 = vmatpush2.msra.mxu0 0.0
    %4100 = vmatprep.subr.mxu0 0.0
    %4101 = vmatpush2.msra.mxu0 0.0
    %4102 = vmatprep.subr.mxu0 0.0
    %4103 = vmatpush2.msra.mxu0 0.0
    %4104 = vmatprep.subr.mxu0 0.0
    %4105 = vmatpush2.msra.mxu0 0.0
    %4106 = vmatprep.subr.mxu0 0.0
    %4107 = vmatpush2.msra.mxu0 0.0
    %4108 = vmatprep.subr.mxu0 0.0
    %4109 = vmatpush2.msra.mxu0 0.0
    %4110 = vmatprep.subr.mxu0 0.0
    %4111 = vmatpush2.msra.mxu0 0.0
    %4112 = vmatprep.subr.mxu0 0.0
    %4113 = vmatpush2.msra.mxu0 0.0
    %4114 = vmatprep.subr.mxu0 0.0
    %4115 = vmatpush2.msra.mxu0 0.0
    %4116 = vmatprep.subr.mxu0 0.0
    %4117 = vmatpush2.msra.mxu0 0.0
    %4118 = vmatprep.subr.mxu0 0.0
    %4119 = vmatpush2.msra.mxu0 0.0
    %4120 = vmatprep.subr.mxu0 0.0
    %4121 = vmatpush2.msra.mxu0 0.0
    %4122 = vmatprep.subr.mxu0 0.0
    %4123 = vmatpush2.msra.mxu0 0.0
    %4124 = vmatprep.subr.mxu0 0.0
    %4125 = vmatpush2.msra.mxu0 0.0
    %4126 = vmatprep.mubr.f32.mxu0 0.0
    %4127 = vmatmul.mubr.f32.gmra.mxu0 %v2550
    %v4128 = vpop.f32.mrf.mxu0
    %v4129 = vadd.f32 0.0, %v4128
    %v4130 = vpop.f32.mrf.mxu0
    %4131 = vmatprep.mubr.f32.mxu0 0.0
    %4132 = vmatmul.mubr.f32.gmra.mxu0 %v2553
    %v4133 = vpop.f32.mrf.mxu0
    %v4134 = vadd.f32 0.0, %v4133
    %v4135 = vpop.f32.mrf.mxu0
    %4136 = vdwg.mxu0
    %v4138 = vsel %vm840, %v3886, 0
    %4140 = vmatprep.subr.mxu0 0.0
    %4141 = vmatpush1.msra.mxu0 0.0
    %4142 = vmatprep.subr.mxu0 0.0
    %4143 = vmatpush1.msra.mxu0 0.0
    %4144 = vmatprep.subr.mxu0 0.0
    %4145 = vmatpush1.msra.mxu0 0.0
    %4146 = vmatprep.subr.mxu0 0.0
    %4147 = vmatpush1.msra.mxu0 0.0
    %4148 = vmatprep.subr.mxu0 0.0
    %4149 = vmatpush1.msra.mxu0 0.0
    %4150 = vmatprep.subr.mxu0 0.0
    %4151 = vmatpush1.msra.mxu0 0.0
    %4152 = vmatprep.subr.mxu0 0.0
    %4153 = vmatpush1.msra.mxu0 0.0
    %4154 = vmatprep.subr.mxu0 0.0
    %4155 = vmatpush1.msra.mxu0 0.0
    %4156 = vmatprep.subr.mxu0 0.0
    %4157 = vmatpush1.msra.mxu0 0.0
    %4158 = vmatprep.subr.mxu0 0.0
    %4159 = vmatpush1.msra.mxu0 0.0
    %4160 = vmatprep.subr.mxu0 0.0
    %4161 = vmatpush1.msra.mxu0 0.0
    %4162 = vmatprep.subr.mxu0 0.0
    %4163 = vmatpush1.msra.mxu0 0.0
    %4164 = vmatprep.subr.mxu0 0.0
    %4165 = vmatpush1.msra.mxu0 0.0
    %4166 = vmatprep.subr.mxu0 0.0
    %4167 = vmatpush1.msra.mxu0 0.0
    %4168 = vmatprep.subr.mxu0 0.0
    %4169 = vmatpush1.msra.mxu0 %v4138
    %4170 = vmatprep.subr.mxu0 0.0
    %4171 = vmatpush1.msra.mxu0 %v3883
    %4172 = vmatprep.subr.mxu0 0.0
    %4173 = vmatpush2.msra.mxu0 0.0
    %4174 = vmatprep.subr.mxu0 0.0
    %4175 = vmatpush2.msra.mxu0 0.0
    %4176 = vmatprep.subr.mxu0 0.0
    %4177 = vmatpush2.msra.mxu0 0.0
    %4178 = vmatprep.subr.mxu0 0.0
    %4179 = vmatpush2.msra.mxu0 0.0
    %4180 = vmatprep.subr.mxu0 0.0
    %4181 = vmatpush2.msra.mxu0 0.0
    %4182 = vmatprep.subr.mxu0 0.0
    %4183 = vmatpush2.msra.mxu0 0.0
    %4184 = vmatprep.subr.mxu0 0.0
    %4185 = vmatpush2.msra.mxu0 0.0
    %4186 = vmatprep.subr.mxu0 0.0
    %4187 = vmatpush2.msra.mxu0 0.0
    %4188 = vmatprep.subr.mxu0 0.0
    %4189 = vmatpush2.msra.mxu0 0.0
    %4190 = vmatprep.subr.mxu0 0.0
    %4191 = vmatpush2.msra.mxu0 0.0
    %4192 = vmatprep.subr.mxu0 0.0
    %4193 = vmatpush2.msra.mxu0 0.0
    %4194 = vmatprep.subr.mxu0 0.0
    %4195 = vmatpush2.msra.mxu0 0.0
    %4196 = vmatprep.subr.mxu0 0.0
    %4197 = vmatpush2.msra.mxu0 0.0
    %4198 = vmatprep.subr.mxu0 0.0
    %4199 = vmatpush2.msra.mxu0 0.0
    %4200 = vmatprep.subr.mxu0 0.0
    %4201 = vmatpush2.msra.mxu0 0.0
    %4202 = vmatprep.subr.mxu0 0.0
    %4203 = vmatpush2.msra.mxu0 0.0
    %4204 = vmatprep.mubr.f32.mxu0 0.0
    %4205 = vmatmul.mubr.f32.gmra.mxu0 %v2639
    %v4206 = vpop.f32.mrf.mxu0
    %v4207 = vadd.f32 %v4129, %v4206
    %v4208 = vpop.f32.mrf.mxu0
    %4209 = vmatprep.mubr.f32.mxu0 0.0
    %4210 = vmatmul.mubr.f32.gmra.mxu0 %v2642
    %v4211 = vpop.f32.mrf.mxu0
    %v4212 = vadd.f32 %v4134, %v4211
    %v4213 = vpop.f32.mrf.mxu0
    %4214 = vdwg.mxu0
    %s4215 = scalar_lea.vmem [#allocation4], 256
    %v4216 = vld [vmem:[%s4215] sm:$0xf]
    %v4217 = vld [vmem:[%s4215 + $0x4] sm:$0xf]
    %v4218 = vld [vmem:[%s4215 + $0x8] sm:$0xf]
    %v4219 = vld [vmem:[%s4215 + $0xc] sm:$0xf]
    %v4220 = vld [vmem:[%s4215 + $0x10] sm:$0xf]
    %v4221 = vld [vmem:[%s4215 + $0x14] sm:$0xf]
    %v4222 = vld [vmem:[%s4215 + $0x18] sm:$0xf]
    %v4223 = vld [vmem:[%s4215 + $0x1c] sm:$0xf]
    %v4224 = vld [vmem:[%s4215 + $0x20] sm:$0xf]
    %v4225 = vld [vmem:[%s4215 + $0x24] sm:$0xf]
    %v4226 = vld [vmem:[%s4215 + $0x28] sm:$0xf]
    %v4227 = vld [vmem:[%s4215 + $0x2c] sm:$0xf]
    %v4228 = vld [vmem:[%s4215 + $0x30] sm:$0xf]
    %v4229 = vld [vmem:[%s4215 + $0x34] sm:$0xf]
    %v4230 = vld [vmem:[%s4215 + $0x38] sm:$0xf]
    %v4231 = vld [vmem:[%s4215 + $0x3c] sm:$0xf]
    %v4232 = vld [vmem:[%s4215 + $0x40] sm:$0xf]
    %v4233 = vld [vmem:[%s4215 + $0x44] sm:$0xf]
    %v4234 = vld [vmem:[%s4215 + $0x48] sm:$0xf]
    %v4235 = vld [vmem:[%s4215 + $0x4c] sm:$0xf]
    %v4236 = vld [vmem:[%s4215 + $0x50] sm:$0xf]
    %v4237 = vld [vmem:[%s4215 + $0x54] sm:$0xf]
    %v4238 = vld [vmem:[%s4215 + $0x58] sm:$0xf]
    %v4239 = vld [vmem:[%s4215 + $0x5c] sm:$0xf]
    %v4240 = vld [vmem:[%s4215 + $0x60] sm:$0xf]
    %v4241 = vld [vmem:[%s4215 + $0x64] sm:$0xf]
    %v4242 = vld [vmem:[%s4215 + $0x68] sm:$0xf]
    %v4243 = vld [vmem:[%s4215 + $0x6c] sm:$0xf]
    %v4244 = vld [vmem:[%s4215 + $0x70] sm:$0xf]
    %v4245 = vld [vmem:[%s4215 + $0x74] sm:$0xf]
    %v4246 = vld [vmem:[%s4215 + $0x78] sm:$0xf]
    %v4247 = vld [vmem:[%s4215 + $0x7c] sm:$0xf]
    %v4280 = vunpack.c.l.b16 %v4216
    %v4281 = vunpack.c.l.b16 %v4217
    %v4282 = vunpack.c.l.b16 %v4218
    %v4283 = vunpack.c.l.b16 %v4219
    %v4284 = vunpack.c.l.b16 %v4220
    %v4285 = vunpack.c.l.b16 %v4221
    %v4286 = vunpack.c.l.b16 %v4222
    %v4287 = vunpack.c.l.b16 %v4223
    %v4288 = vunpack.c.l.b16 %v4224
    %v4289 = vunpack.c.l.b16 %v4225
    %v4290 = vunpack.c.l.b16 %v4226
    %v4291 = vunpack.c.l.b16 %v4227
    %v4292 = vunpack.c.l.b16 %v4228
    %v4293 = vunpack.c.l.b16 %v4229
    %v4294 = vunpack.c.l.b16 %v4230
    %v4295 = vunpack.c.l.b16 %v4231
    %v4296 = vunpack.c.l.b16 %v4232
    %v4297 = vunpack.c.l.b16 %v4233
    %v4298 = vunpack.c.l.b16 %v4234
    %v4299 = vunpack.c.l.b16 %v4235
    %v4300 = vunpack.c.l.b16 %v4236
    %v4301 = vunpack.c.l.b16 %v4237
    %v4302 = vunpack.c.l.b16 %v4238
    %v4303 = vunpack.c.l.b16 %v4239
    %v4304 = vunpack.c.l.b16 %v4240
    %v4305 = vunpack.c.l.b16 %v4241
    %v4306 = vunpack.c.l.b16 %v4242
    %v4307 = vunpack.c.l.b16 %v4243
    %v4308 = vunpack.c.l.b16 %v4244
    %v4309 = vunpack.c.l.b16 %v4245
    %v4310 = vunpack.c.l.b16 %v4246
    %v4311 = vunpack.c.l.b16 %v4247
    %v4312 = vpack.c.b16 %v4281, %v4280
    %v4313 = vpack.c.b16 %v4283, %v4282
    %v4314 = vpack.c.b16 %v4285, %v4284
    %v4315 = vpack.c.b16 %v4287, %v4286
    %v4316 = vpack.c.b16 %v4289, %v4288
    %v4317 = vpack.c.b16 %v4291, %v4290
    %v4318 = vpack.c.b16 %v4293, %v4292
    %v4319 = vpack.c.b16 %v4295, %v4294
    %v4320 = vpack.c.b16 %v4297, %v4296
    %v4321 = vpack.c.b16 %v4299, %v4298
    %v4322 = vpack.c.b16 %v4301, %v4300
    %v4323 = vpack.c.b16 %v4303, %v4302
    %v4324 = vpack.c.b16 %v4305, %v4304
    %v4325 = vpack.c.b16 %v4307, %v4306
    %v4326 = vpack.c.b16 %v4309, %v4308
    %v4327 = vpack.c.b16 %v4311, %v4310
    %4344 = vmatprep.subr.bf16.mxu0 0
    %4345 = vmatpush1.bf16.msra.mxu0 %v4319
    %4346 = vmatprep.subr.bf16.mxu0 0
    %4347 = vmatpush1.bf16.msra.mxu0 %v4318
    %4348 = vmatprep.subr.bf16.mxu0 0
    %4349 = vmatpush1.bf16.msra.mxu0 %v4317
    %4350 = vmatprep.subr.bf16.mxu0 0
    %4351 = vmatpush1.bf16.msra.mxu0 %v4316
    %4352 = vmatprep.subr.bf16.mxu0 0
    %4353 = vmatpush1.bf16.msra.mxu0 %v4315
    %4354 = vmatprep.subr.bf16.mxu0 0
    %4355 = vmatpush1.bf16.msra.mxu0 %v4314
    %4356 = vmatprep.subr.bf16.mxu0 0
    %4357 = vmatpush1.bf16.msra.mxu0 %v4313
    %4358 = vmatprep.subr.bf16.mxu0 0
    %4359 = vmatpush1.bf16.msra.mxu0 %v4312
    %4360 = vmatprep.subr.bf16.mxu0 0
    %4361 = vmatpush2.bf16.msra.mxu0 %v4327
    %4362 = vmatprep.subr.bf16.mxu0 0
    %4363 = vmatpush2.bf16.msra.mxu0 %v4326
    %4364 = vmatprep.subr.bf16.mxu0 0
    %4365 = vmatpush2.bf16.msra.mxu0 %v4325
    %4366 = vmatprep.subr.bf16.mxu0 0
    %4367 = vmatpush2.bf16.msra.mxu0 %v4324
    %4368 = vmatprep.subr.bf16.mxu0 0
    %4369 = vmatpush2.bf16.msra.mxu0 %v4323
    %4370 = vmatprep.subr.bf16.mxu0 0
    %4371 = vmatpush2.bf16.msra.mxu0 %v4322
    %4372 = vmatprep.subr.bf16.mxu0 0
    %4373 = vmatpush2.bf16.msra.mxu0 %v4321
    %4374 = vmatprep.subr.bf16.mxu0 0
    %4375 = vmatpush2.bf16.msra.mxu0 %v4320
    %4376 = vmatprep.mubr.bf16.mxu0 %v3719
    %4377 = vmatmul.mubr.bf16.gmra.mxu0 %v3718
    %v4378 = vpop.f32.mrf.mxu0
    %v4379 = vadd.f32 0.0, %v4378
    %v4380 = vpop.f32.mrf.mxu0
    %v4381 = vpop.f32.mrf.mxu0
    %v4382 = vadd.f32 0.0, %v4381
    %v4383 = vpop.f32.mrf.mxu0
    %4384 = vdwg.mxu0
    %v4386 = vsel %vm840, %v4382, 0
    %4388 = vmatprep.subr.mxu0 0.0
    %4389 = vmatpush1.msra.mxu0 0.0
    %4390 = vmatprep.subr.mxu0 0.0
    %4391 = vmatpush1.msra.mxu0 0.0
    %4392 = vmatprep.subr.mxu0 0.0
    %4393 = vmatpush1.msra.mxu0 0.0
    %4394 = vmatprep.subr.mxu0 0.0
    %4395 = vmatpush1.msra.mxu0 0.0
    %4396 = vmatprep.subr.mxu0 0.0
    %4397 = vmatpush1.msra.mxu0 0.0
    %4398 = vmatprep.subr.mxu0 0.0
    %4399 = vmatpush1.msra.mxu0 0.0
    %4400 = vmatprep.subr.mxu0 0.0
    %4401 = vmatpush1.msra.mxu0 0.0
    %4402 = vmatprep.subr.mxu0 0.0
    %4403 = vmatpush1.msra.mxu0 0.0
    %4404 = vmatprep.subr.mxu0 0.0
    %4405 = vmatpush1.msra.mxu0 0.0
    %4406 = vmatprep.subr.mxu0 0.0
    %4407 = vmatpush1.msra.mxu0 0.0
    %4408 = vmatprep.subr.mxu0 0.0
    %4409 = vmatpush1.msra.mxu0 0.0
    %4410 = vmatprep.subr.mxu0 0.0
    %4411 = vmatpush1.msra.mxu0 0.0
    %4412 = vmatprep.subr.mxu0 0.0
    %4413 = vmatpush1.msra.mxu0 0.0
    %4414 = vmatprep.subr.mxu0 0.0
    %4415 = vmatpush1.msra.mxu0 0.0
    %4416 = vmatprep.subr.mxu0 0.0
    %4417 = vmatpush1.msra.mxu0 %v4386
    %4418 = vmatprep.subr.mxu0 0.0
    %4419 = vmatpush1.msra.mxu0 %v4379
    %4420 = vmatprep.subr.mxu0 0.0
    %4421 = vmatpush2.msra.mxu0 0.0
    %4422 = vmatprep.subr.mxu0 0.0
    %4423 = vmatpush2.msra.mxu0 0.0
    %4424 = vmatprep.subr.mxu0 0.0
    %4425 = vmatpush2.msra.mxu0 0.0
    %4426 = vmatprep.subr.mxu0 0.0
    %4427 = vmatpush2.msra.mxu0 0.0
    %4428 = vmatprep.subr.mxu0 0.0
    %4429 = vmatpush2.msra.mxu0 0.0
    %4430 = vmatprep.subr.mxu0 0.0
    %4431 = vmatpush2.msra.mxu0 0.0
    %4432 = vmatprep.subr.mxu0 0.0
    %4433 = vmatpush2.msra.mxu0 0.0
    %4434 = vmatprep.subr.mxu0 0.0
    %4435 = vmatpush2.msra.mxu0 0.0
    %4436 = vmatprep.subr.mxu0 0.0
    %4437 = vmatpush2.msra.mxu0 0.0
    %4438 = vmatprep.subr.mxu0 0.0
    %4439 = vmatpush2.msra.mxu0 0.0
    %4440 = vmatprep.subr.mxu0 0.0
    %4441 = vmatpush2.msra.mxu0 0.0
    %4442 = vmatprep.subr.mxu0 0.0
    %4443 = vmatpush2.msra.mxu0 0.0
    %4444 = vmatprep.subr.mxu0 0.0
    %4445 = vmatpush2.msra.mxu0 0.0
    %4446 = vmatprep.subr.mxu0 0.0
    %4447 = vmatpush2.msra.mxu0 0.0
    %4448 = vmatprep.subr.mxu0 0.0
    %4449 = vmatpush2.msra.mxu0 0.0
    %4450 = vmatprep.subr.mxu0 0.0
    %4451 = vmatpush2.msra.mxu0 0.0
    %4452 = vmatprep.mubr.f32.mxu0 0.0
    %4453 = vmatmul.mubr.f32.gmra.mxu0 %v3202
    %v4454 = vpop.f32.mrf.mxu0
    %v4455 = vadd.f32 0.0, %v4454
    %v4456 = vpop.f32.mrf.mxu0
    %4457 = vmatprep.mubr.f32.mxu0 0.0
    %4458 = vmatmul.mubr.f32.gmra.mxu0 %v3205
    %v4459 = vpop.f32.mrf.mxu0
    %v4460 = vadd.f32 0.0, %v4459
    %v4461 = vpop.f32.mrf.mxu0
    %4462 = vdwg.mxu0
    %v4463 = vadd.f32 %v4207, %v4455
    %v4464 = vadd.f32 %v4212, %v4460
    %v4465 = vld [vmem:[%s12] sm:$0xff]
    %v4466 = vld [vmem:[%s12 + $0x8] sm:$0xff]
    %v4467 = vld [vmem:[%s12 + $0x10] sm:$0xff]
    %v4468 = vld [vmem:[%s12 + $0x18] sm:$0xff]
    %v4469 = vld [vmem:[%s12 + $0x20] sm:$0xff]
    %v4470 = vld [vmem:[%s12 + $0x28] sm:$0xff]
    %v4471 = vld [vmem:[%s12 + $0x30] sm:$0xff]
    %v4472 = vld [vmem:[%s12 + $0x38] sm:$0xff]
    %v4473 = vld [vmem:[%s12 + $0x40] sm:$0xff]
    %v4474 = vld [vmem:[%s12 + $0x48] sm:$0xff]
    %v4475 = vld [vmem:[%s12 + $0x50] sm:$0xff]
    %v4476 = vld [vmem:[%s12 + $0x58] sm:$0xff]
    %v4477 = vld [vmem:[%s12 + $0x60] sm:$0xff]
    %v4478 = vld [vmem:[%s12 + $0x68] sm:$0xff]
    %v4479 = vld [vmem:[%s12 + $0x70] sm:$0xff]
    %v4480 = vld [vmem:[%s12 + $0x78] sm:$0xff]
    %v4481 = vld [vmem:[%s13] sm:$0xff]
    %v4482 = vld [vmem:[%s14] sm:$0x1]
    %v4483 = vld [vmem:[%s14 + $0x1] sm:$0x1]
    %v4484 = vsel %vm840, %v4464, 0.0
    %v4485 = vadd.f32 %v4463, %v4484
    %v4486 = vrot.slane %v4485, 4
    %v4487 = vadd.f32 %v4485, %v4486
    %v4488 = vrot.slane %v4487, 2
    %v4489 = vadd.f32 %v4487, %v4488
    %v4490 = vrot.slane %v4489, 1
    %v4491 = vadd.f32 %v4489, %v4490
    %4492 = vmatprep.subr.mxu0 0.0
    %4493 = vmatpush1.msra.mxu0 %v4480
    %4494 = vmatprep.subr.mxu0 0.0
    %4495 = vmatpush1.msra.mxu0 %v4479
    %4496 = vmatprep.subr.mxu0 0.0
    %4497 = vmatpush1.msra.mxu0 %v4478
    %4498 = vmatprep.subr.mxu0 0.0
    %4499 = vmatpush1.msra.mxu0 %v4477
    %4500 = vmatprep.subr.mxu0 0.0
    %4501 = vmatpush1.msra.mxu0 %v4476
    %4502 = vmatprep.subr.mxu0 0.0
    %4503 = vmatpush1.msra.mxu0 %v4475
    %4504 = vmatprep.subr.mxu0 0.0
    %4505 = vmatpush1.msra.mxu0 %v4474
    %4506 = vmatprep.subr.mxu0 0.0
    %4507 = vmatpush1.msra.mxu0 %v4473
    %4508 = vmatprep.subr.mxu0 0.0
    %4509 = vmatpush1.msra.mxu0 %v4472
    %4510 = vmatprep.subr.mxu0 0.0
    %4511 = vmatpush1.msra.mxu0 %v4471
    %4512 = vmatprep.subr.mxu0 0.0
    %4513 = vmatpush1.msra.mxu0 %v4470
    %4514 = vmatprep.subr.mxu0 0.0
    %4515 = vmatpush1.msra.mxu0 %v4469
    %4516 = vmatprep.subr.mxu0 0.0
    %4517 = vmatpush1.msra.mxu0 %v4468
    %4518 = vmatprep.subr.mxu0 0.0
    %4519 = vmatpush1.msra.mxu0 %v4467
    %4520 = vmatprep.subr.mxu0 0.0
    %4521 = vmatpush1.msra.mxu0 %v4466
    %4522 = vmatprep.subr.mxu0 0.0
    %4523 = vmatpush1.msra.mxu0 %v4465
    %4524 = vmatprep.subr.mxu0 0.0
    %4525 = vmatpush2.msra.mxu0 0.0
    %4526 = vmatprep.subr.mxu0 0.0
    %4527 = vmatpush2.msra.mxu0 0.0
    %4528 = vmatprep.subr.mxu0 0.0
    %4529 = vmatpush2.msra.mxu0 0.0
    %4530 = vmatprep.subr.mxu0 0.0
    %4531 = vmatpush2.msra.mxu0 0.0
    %4532 = vmatprep.subr.mxu0 0.0
    %4533 = vmatpush2.msra.mxu0 0.0
    %4534 = vmatprep.subr.mxu0 0.0
    %4535 = vmatpush2.msra.mxu0 0.0
    %4536 = vmatprep.subr.mxu0 0.0
    %4537 = vmatpush2.msra.mxu0 0.0
    %4538 = vmatprep.subr.mxu0 0.0
    %4539 = vmatpush2.msra.mxu0 0.0
    %4540 = vmatprep.subr.mxu0 0.0
    %4541 = vmatpush2.msra.mxu0 0.0
    %4542 = vmatprep.subr.mxu0 0.0
    %4543 = vmatpush2.msra.mxu0 0.0
    %4544 = vmatprep.subr.mxu0 0.0
    %4545 = vmatpush2.msra.mxu0 0.0
    %4546 = vmatprep.subr.mxu0 0.0
    %4547 = vmatpush2.msra.mxu0 0.0
    %4548 = vmatprep.subr.mxu0 0.0
    %4549 = vmatpush2.msra.mxu0 0.0
    %4550 = vmatprep.subr.mxu0 0.0
    %4551 = vmatpush2.msra.mxu0 0.0
    %4552 = vmatprep.subr.mxu0 0.0
    %4553 = vmatpush2.msra.mxu0 0.0
    %4554 = vmatprep.subr.mxu0 0.0
    %4555 = vmatpush2.msra.mxu0 0.0
    %4556 = vmatprep.mubr.f32.mxu0 0.0
    %4557 = vmatmul.mubr.f32.gmra.mxu0 %v4491
    %v4558 = vpop.f32.mrf.mxu0
    %v4559 = vadd.f32 0.0, %v4558
    %v4560 = vpop.f32.mrf.mxu0
    %4561 = vdwg.mxu0
    %v4562 = vmul.f32 %v4559, 0.0052083335
    %vm4563 = vcmask 64512
    %v4565 = vsel %vm4563, %v4562, 0
    %4567 = vmatprep.subr.mxu0 0.0
    %4568 = vmatpush1.msra.mxu0 0.0
    %4569 = vmatprep.subr.mxu0 0.0
    %4570 = vmatpush1.msra.mxu0 0.0
    %4571 = vmatprep.subr.mxu0 0.0
    %4572 = vmatpush1.msra.mxu0 0.0
    %4573 = vmatprep.subr.mxu0 0.0
    %4574 = vmatpush1.msra.mxu0 0.0
    %4575 = vmatprep.subr.mxu0 0.0
    %4576 = vmatpush1.msra.mxu0 0.0
    %4577 = vmatprep.subr.mxu0 0.0
    %4578 = vmatpush1.msra.mxu0 0.0
    %4579 = vmatprep.subr.mxu0 0.0
    %4580 = vmatpush1.msra.mxu0 0.0
    %4581 = vmatprep.subr.mxu0 0.0
    %4582 = vmatpush1.msra.mxu0 0.0
    %4583 = vmatprep.subr.mxu0 0.0
    %4584 = vmatpush1.msra.mxu0 0.0
    %4585 = vmatprep.subr.mxu0 0.0
    %4586 = vmatpush1.msra.mxu0 0.0
    %4587 = vmatprep.subr.mxu0 0.0
    %4588 = vmatpush1.msra.mxu0 0.0
    %4589 = vmatprep.subr.mxu0 0.0
    %4590 = vmatpush1.msra.mxu0 0.0
    %4591 = vmatprep.subr.mxu0 0.0
    %4592 = vmatpush1.msra.mxu0 0.0
    %4593 = vmatprep.subr.mxu0 0.0
    %4594 = vmatpush1.msra.mxu0 0.0
    %4595 = vmatprep.subr.mxu0 0.0
    %4596 = vmatpush1.msra.mxu0 0.0
    %4597 = vmatprep.subr.mxu0 0.0
    %4598 = vmatpush1.msra.mxu0 %v4481
    %4599 = vmatprep.subr.mxu0 0.0
    %4600 = vmatpush2.msra.mxu0 0.0
    %4601 = vmatprep.subr.mxu0 0.0
    %4602 = vmatpush2.msra.mxu0 0.0
    %4603 = vmatprep.subr.mxu0 0.0
    %4604 = vmatpush2.msra.mxu0 0.0
    %4605 = vmatprep.subr.mxu0 0.0
    %4606 = vmatpush2.msra.mxu0 0.0
    %4607 = vmatprep.subr.mxu0 0.0
    %4608 = vmatpush2.msra.mxu0 0.0
    %4609 = vmatprep.subr.mxu0 0.0
    %4610 = vmatpush2.msra.mxu0 0.0
    %4611 = vmatprep.subr.mxu0 0.0
    %4612 = vmatpush2.msra.mxu0 0.0
    %4613 = vmatprep.subr.mxu0 0.0
    %4614 = vmatpush2.msra.mxu0 0.0
    %4615 = vmatprep.subr.mxu0 0.0
    %4616 = vmatpush2.msra.mxu0 0.0
    %4617 = vmatprep.subr.mxu0 0.0
    %4618 = vmatpush2.msra.mxu0 0.0
    %4619 = vmatprep.subr.mxu0 0.0
    %4620 = vmatpush2.msra.mxu0 0.0
    %4621 = vmatprep.subr.mxu0 0.0
    %4622 = vmatpush2.msra.mxu0 0.0
    %4623 = vmatprep.subr.mxu0 0.0
    %4624 = vmatpush2.msra.mxu0 0.0
    %4625 = vmatprep.subr.mxu0 0.0
    %4626 = vmatpush2.msra.mxu0 0.0
    %4627 = vmatprep.subr.mxu0 0.0
    %4628 = vmatpush2.msra.mxu0 0.0
    %4629 = vmatprep.subr.mxu0 0.0
    %4630 = vmatpush2.msra.mxu0 0.0
    %4631 = vmatprep.mubr.f32.mxu0 0.0
    %4632 = vmatmul.mubr.f32.gmra.mxu0 %v4565
    %v4633 = vpop.f32.mrf.mxu0
    %v4634 = vadd.f32 0.0, %v4633
    %v4635 = vpop.f32.mrf.mxu0
    %4636 = vdwg.mxu0
    %v4637 = vlaneseq
    %v4638 = vshrl.u32 %v4637, 7
    %v4639 = vsub.s32 0, %v4638
    %v4640 = vrot.slane %v4634, %v4639
    %v4641 = vsub.f32 %v4463, %v4640
    %v4642 = vsub.f32 %v4464, %v4640
    %v4643 = vmul.f32 %v4641, %v4641
    %v4644 = vmul.f32 %v4642, %v4642
    %v4645 = vsel %vm840, %v4644, 0.0
    %v4646 = vadd.f32 %v4643, %v4645
    %v4647 = vrot.slane %v4646, 4
    %v4648 = vadd.f32 %v4646, %v4647
    %v4649 = vrot.slane %v4648, 2
    %v4650 = vadd.f32 %v4648, %v4649
    %v4651 = vrot.slane %v4650, 1
    %v4652 = vadd.f32 %v4650, %v4651
    %4653 = vmatprep.subr.mxu0 0.0
    %4654 = vmatpush1.msra.mxu0 %v4480
    %4655 = vmatprep.subr.mxu0 0.0
    %4656 = vmatpush1.msra.mxu0 %v4479
    %4657 = vmatprep.subr.mxu0 0.0
    %4658 = vmatpush1.msra.mxu0 %v4478
    %4659 = vmatprep.subr.mxu0 0.0
    %4660 = vmatpush1.msra.mxu0 %v4477
    %4661 = vmatprep.subr.mxu0 0.0
    %4662 = vmatpush1.msra.mxu0 %v4476
    %4663 = vmatprep.subr.mxu0 0.0
    %4664 = vmatpush1.msra.mxu0 %v4475
    %4665 = vmatprep.subr.mxu0 0.0
    %4666 = vmatpush1.msra.mxu0 %v4474
    %4667 = vmatprep.subr.mxu0 0.0
    %4668 = vmatpush1.msra.mxu0 %v4473
    %4669 = vmatprep.subr.mxu0 0.0
    %4670 = vmatpush1.msra.mxu0 %v4472
    %4671 = vmatprep.subr.mxu0 0.0
    %4672 = vmatpush1.msra.mxu0 %v4471
    %4673 = vmatprep.subr.mxu0 0.0
    %4674 = vmatpush1.msra.mxu0 %v4470
    %4675 = vmatprep.subr.mxu0 0.0
    %4676 = vmatpush1.msra.mxu0 %v4469
    %4677 = vmatprep.subr.mxu0 0.0
    %4678 = vmatpush1.msra.mxu0 %v4468
    %4679 = vmatprep.subr.mxu0 0.0
    %4680 = vmatpush1.msra.mxu0 %v4467
    %4681 = vmatprep.subr.mxu0 0.0
    %4682 = vmatpush1.msra.mxu0 %v4466
    %4683 = vmatprep.subr.mxu0 0.0
    %4684 = vmatpush1.msra.mxu0 %v4465
    %4685 = vmatprep.subr.mxu0 0.0
    %4686 = vmatpush2.msra.mxu0 0.0
    %4687 = vmatprep.subr.mxu0 0.0
    %4688 = vmatpush2.msra.mxu0 0.0
    %4689 = vmatprep.subr.mxu0 0.0
    %4690 = vmatpush2.msra.mxu0 0.0
    %4691 = vmatprep.subr.mxu0 0.0
    %4692 = vmatpush2.msra.mxu0 0.0
    %4693 = vmatprep.subr.mxu0 0.0
    %4694 = vmatpush2.msra.mxu0 0.0
    %4695 = vmatprep.subr.mxu0 0.0
    %4696 = vmatpush2.msra.mxu0 0.0
    %4697 = vmatprep.subr.mxu0 0.0
    %4698 = vmatpush2.msra.mxu0 0.0
    %4699 = vmatprep.subr.mxu0 0.0
    %4700 = vmatpush2.msra.mxu0 0.0
    %4701 = vmatprep.subr.mxu0 0.0
    %4702 = vmatpush2.msra.mxu0 0.0
    %4703 = vmatprep.subr.mxu0 0.0
    %4704 = vmatpush2.msra.mxu0 0.0
    %4705 = vmatprep.subr.mxu0 0.0
    %4706 = vmatpush2.msra.mxu0 0.0
    %4707 = vmatprep.subr.mxu0 0.0
    %4708 = vmatpush2.msra.mxu0 0.0
    %4709 = vmatprep.subr.mxu0 0.0
    %4710 = vmatpush2.msra.mxu0 0.0
    %4711 = vmatprep.subr.mxu0 0.0
    %4712 = vmatpush2.msra.mxu0 0.0
    %4713 = vmatprep.subr.mxu0 0.0
    %4714 = vmatpush2.msra.mxu0 0.0
    %4715 = vmatprep.subr.mxu0 0.0
    %4716 = vmatpush2.msra.mxu0 0.0
    %4717 = vmatprep.mubr.f32.mxu0 0.0
    %4718 = vmatmul.mubr.f32.gmra.mxu0 %v4652
    %v4719 = vpop.f32.mrf.mxu0
    %v4720 = vadd.f32 0.0, %v4719
    %v4721 = vpop.f32.mrf.mxu0
    %4722 = vdwg.mxu0
    %v4723 = vmul.f32 %v4720, 0.0052083335
    %v4724 = vadd.f32 %v4723, 1e-05
    %v4725 = vrsqrt.pop %v4724
    %v4727 = vsel %vm4563, %v4725, 0
    %4729 = vmatprep.subr.mxu0 0.0
    %4730 = vmatpush1.msra.mxu0 0.0
    %4731 = vmatprep.subr.mxu0 0.0
    %4732 = vmatpush1.msra.mxu0 0.0
    %4733 = vmatprep.subr.mxu0 0.0
    %4734 = vmatpush1.msra.mxu0 0.0
    %4735 = vmatprep.subr.mxu0 0.0
    %4736 = vmatpush1.msra.mxu0 0.0
    %4737 = vmatprep.subr.mxu0 0.0
    %4738 = vmatpush1.msra.mxu0 0.0
    %4739 = vmatprep.subr.mxu0 0.0
    %4740 = vmatpush1.msra.mxu0 0.0
    %4741 = vmatprep.subr.mxu0 0.0
    %4742 = vmatpush1.msra.mxu0 0.0
    %4743 = vmatprep.subr.mxu0 0.0
    %4744 = vmatpush1.msra.mxu0 0.0
    %4745 = vmatprep.subr.mxu0 0.0
    %4746 = vmatpush1.msra.mxu0 0.0
    %4747 = vmatprep.subr.mxu0 0.0
    %4748 = vmatpush1.msra.mxu0 0.0
    %4749 = vmatprep.subr.mxu0 0.0
    %4750 = vmatpush1.msra.mxu0 0.0
    %4751 = vmatprep.subr.mxu0 0.0
    %4752 = vmatpush1.msra.mxu0 0.0
    %4753 = vmatprep.subr.mxu0 0.0
    %4754 = vmatpush1.msra.mxu0 0.0
    %4755 = vmatprep.subr.mxu0 0.0
    %4756 = vmatpush1.msra.mxu0 0.0
    %4757 = vmatprep.subr.mxu0 0.0
    %4758 = vmatpush1.msra.mxu0 0.0
    %4759 = vmatprep.subr.mxu0 0.0
    %4760 = vmatpush1.msra.mxu0 %v4481
    %4761 = vmatprep.subr.mxu0 0.0
    %4762 = vmatpush2.msra.mxu0 0.0
    %4763 = vmatprep.subr.mxu0 0.0
    %4764 = vmatpush2.msra.mxu0 0.0
    %4765 = vmatprep.subr.mxu0 0.0
    %4766 = vmatpush2.msra.mxu0 0.0
    %4767 = vmatprep.subr.mxu0 0.0
    %4768 = vmatpush2.msra.mxu0 0.0
    %4769 = vmatprep.subr.mxu0 0.0
    %4770 = vmatpush2.msra.mxu0 0.0
    %4771 = vmatprep.subr.mxu0 0.0
    %4772 = vmatpush2.msra.mxu0 0.0
    %4773 = vmatprep.subr.mxu0 0.0
    %4774 = vmatpush2.msra.mxu0 0.0
    %4775 = vmatprep.subr.mxu0 0.0
    %4776 = vmatpush2.msra.mxu0 0.0
    %4777 = vmatprep.subr.mxu0 0.0
    %4778 = vmatpush2.msra.mxu0 0.0
    %4779 = vmatprep.subr.mxu0 0.0
    %4780 = vmatpush2.msra.mxu0 0.0
    %4781 = vmatprep.subr.mxu0 0.0
    %4782 = vmatpush2.msra.mxu0 0.0
    %4783 = vmatprep.subr.mxu0 0.0
    %4784 = vmatpush2.msra.mxu0 0.0
    %4785 = vmatprep.subr.mxu0 0.0
    %4786 = vmatpush2.msra.mxu0 0.0
    %4787 = vmatprep.subr.mxu0 0.0
    %4788 = vmatpush2.msra.mxu0 0.0
    %4789 = vmatprep.subr.mxu0 0.0
    %4790 = vmatpush2.msra.mxu0 0.0
    %4791 = vmatprep.subr.mxu0 0.0
    %4792 = vmatpush2.msra.mxu0 0.0
    %4793 = vmatprep.mubr.f32.mxu0 0.0
    %4794 = vmatmul.mubr.f32.gmra.mxu0 %v4727
    %v4795 = vpop.f32.mrf.mxu0
    %v4796 = vadd.f32 0.0, %v4795
    %v4797 = vpop.f32.mrf.mxu0
    %4798 = vdwg.mxu0
    %v4799 = vmul.f32 %v4796, %v4482
    %v4800 = vlaneseq
    %v4801 = vshrl.u32 %v4800, 7
    %v4802 = vsub.s32 0, %v4801
    %v4803 = vrot.slane %v4799, %v4802
    %v4804 = vmul.f32 %v4641, %v4803
    %v4805 = vmul.f32 %v4642, %v4803
    %v4806 = vlaneseq
    %v4807 = vshrl.u32 %v4806, 7
    %v4808 = vsub.s32 0, %v4807
    %v4809 = vrot.slane %v4483, %v4808
    %v4810 = vadd.f32 %v4804, %v4809
    %v4811 = vadd.f32 %v4805, %v4809
    %v4812 = vmax.f32 %v4810, 0.0
    %v4813 = vmax.f32 %v4811, 0.0
    %v4814 = vpack.c.bf16 %v4813, %v4812
    %v4815 = vld [vmem:[%s4] sm:$0xf]
    %v4816 = vld [vmem:[%s4 + $0x4] sm:$0xf]
    %v4817 = vld [vmem:[%s4 + $0x8] sm:$0xf]
    %v4818 = vld [vmem:[%s4 + $0xc] sm:$0xf]
    %v4819 = vld [vmem:[%s4 + $0x10] sm:$0xf]
    %v4820 = vld [vmem:[%s4 + $0x14] sm:$0xf]
    %v4821 = vld [vmem:[%s4 + $0x18] sm:$0xf]
    %v4822 = vld [vmem:[%s4 + $0x1c] sm:$0xf]
    %v4823 = vld [vmem:[%s4 + $0x20] sm:$0xf]
    %v4824 = vld [vmem:[%s4 + $0x24] sm:$0xf]
    %v4825 = vld [vmem:[%s4 + $0x28] sm:$0xf]
    %v4826 = vld [vmem:[%s4 + $0x2c] sm:$0xf]
    %v4827 = vld [vmem:[%s4 + $0x30] sm:$0xf]
    %v4828 = vld [vmem:[%s4 + $0x34] sm:$0xf]
    %v4829 = vld [vmem:[%s4 + $0x38] sm:$0xf]
    %v4830 = vld [vmem:[%s4 + $0x3c] sm:$0xf]
    %v4847 = vunpack.c.l.b16 %v4815
    %v4848 = vunpack.c.l.b16 %v4816
    %v4849 = vunpack.c.l.b16 %v4817
    %v4850 = vunpack.c.l.b16 %v4818
    %v4851 = vunpack.c.l.b16 %v4819
    %v4852 = vunpack.c.l.b16 %v4820
    %v4853 = vunpack.c.l.b16 %v4821
    %v4854 = vunpack.c.l.b16 %v4822
    %v4855 = vunpack.c.l.b16 %v4823
    %v4856 = vunpack.c.l.b16 %v4824
    %v4857 = vunpack.c.l.b16 %v4825
    %v4858 = vunpack.c.l.b16 %v4826
    %v4859 = vunpack.c.l.b16 %v4827
    %v4860 = vunpack.c.l.b16 %v4828
    %v4861 = vunpack.c.l.b16 %v4829
    %v4862 = vunpack.c.l.b16 %v4830
    %v4863 = vpack.c.b16 %v4848, %v4847
    %v4864 = vpack.c.b16 %v4850, %v4849
    %v4865 = vpack.c.b16 %v4852, %v4851
    %v4866 = vpack.c.b16 %v4854, %v4853
    %v4867 = vpack.c.b16 %v4856, %v4855
    %v4868 = vpack.c.b16 %v4858, %v4857
    %v4869 = vpack.c.b16 %v4860, %v4859
    %v4870 = vpack.c.b16 %v4862, %v4861
    %4879 = vmatprep.subr.bf16.mxu0 0
    %4880 = vmatpush1.bf16.msra.mxu0 %v4870
    %4881 = vmatprep.subr.bf16.mxu0 0
    %4882 = vmatpush1.bf16.msra.mxu0 %v4869
    %4883 = vmatprep.subr.bf16.mxu0 0
    %4884 = vmatpush1.bf16.msra.mxu0 %v4868
    %4885 = vmatprep.subr.bf16.mxu0 0
    %4886 = vmatpush1.bf16.msra.mxu0 %v4867
    %4887 = vmatprep.subr.bf16.mxu0 0
    %4888 = vmatpush1.bf16.msra.mxu0 %v4866
    %4889 = vmatprep.subr.bf16.mxu0 0
    %4890 = vmatpush1.bf16.msra.mxu0 %v4865
    %4891 = vmatprep.subr.bf16.mxu0 0
    %4892 = vmatpush1.bf16.msra.mxu0 %v4864
    %4893 = vmatprep.subr.bf16.mxu0 0
    %4894 = vmatpush1.bf16.msra.mxu0 %v4863
    %4895 = vmatprep.subr.bf16.mxu0 0
    %4896 = vmatpush2.bf16.msra.mxu0 0
    %4897 = vmatprep.subr.bf16.mxu0 0
    %4898 = vmatpush2.bf16.msra.mxu0 0
    %4899 = vmatprep.subr.bf16.mxu0 0
    %4900 = vmatpush2.bf16.msra.mxu0 0
    %4901 = vmatprep.subr.bf16.mxu0 0
    %4902 = vmatpush2.bf16.msra.mxu0 0
    %4903 = vmatprep.subr.bf16.mxu0 0
    %4904 = vmatpush2.bf16.msra.mxu0 0
    %4905 = vmatprep.subr.bf16.mxu0 0
    %4906 = vmatpush2.bf16.msra.mxu0 0
    %4907 = vmatprep.subr.bf16.mxu0 0
    %4908 = vmatpush2.bf16.msra.mxu0 0
    %4909 = vmatprep.subr.bf16.mxu0 0
    %4910 = vmatpush2.bf16.msra.mxu0 0
    %4911 = vmatprep.mubr.bf16.mxu0 0
    %4912 = vmatmul.mubr.bf16.gmra.mxu0 %v4814
    %v4913 = vpop.f32.mrf.mxu0
    %v4914 = vadd.f32 0.0, %v4913
    %v4915 = vpop.f32.mrf.mxu0
    %v4916 = vpop.f32.mrf.mxu0
    %v4917 = vadd.f32 0.0, %v4916
    %v4918 = vpop.f32.mrf.mxu0
    %4919 = vdwg.mxu0
    %s4920 = scalar_lea.vmem %s4, 64
    %v4921 = vld [vmem:[%s4920] sm:$0xf]
    %v4922 = vld [vmem:[%s4920 + $0x4] sm:$0xf]
    %v4923 = vld [vmem:[%s4920 + $0x8] sm:$0xf]
    %v4924 = vld [vmem:[%s4920 + $0xc] sm:$0xf]
    %v4925 = vld [vmem:[%s4920 + $0x10] sm:$0xf]
    %v4926 = vld [vmem:[%s4920 + $0x14] sm:$0xf]
    %v4927 = vld [vmem:[%s4920 + $0x18] sm:$0xf]
    %v4928 = vld [vmem:[%s4920 + $0x1c] sm:$0xf]
    %v4929 = vld [vmem:[%s4920 + $0x20] sm:$0xf]
    %v4930 = vld [vmem:[%s4920 + $0x24] sm:$0xf]
    %v4931 = vld [vmem:[%s4920 + $0x28] sm:$0xf]
    %v4932 = vld [vmem:[%s4920 + $0x2c] sm:$0xf]
    %v4933 = vld [vmem:[%s4920 + $0x30] sm:$0xf]
    %v4934 = vld [vmem:[%s4920 + $0x34] sm:$0xf]
    %v4935 = vld [vmem:[%s4920 + $0x38] sm:$0xf]
    %v4936 = vld [vmem:[%s4920 + $0x3c] sm:$0xf]
    %v4953 = vunpack.c.l.b16 %v4921
    %v4954 = vunpack.c.l.b16 %v4922
    %v4955 = vunpack.c.l.b16 %v4923
    %v4956 = vunpack.c.l.b16 %v4924
    %v4957 = vunpack.c.l.b16 %v4925
    %v4958 = vunpack.c.l.b16 %v4926
    %v4959 = vunpack.c.l.b16 %v4927
    %v4960 = vunpack.c.l.b16 %v4928
    %v4961 = vunpack.c.l.b16 %v4929
    %v4962 = vunpack.c.l.b16 %v4930
    %v4963 = vunpack.c.l.b16 %v4931
    %v4964 = vunpack.c.l.b16 %v4932
    %v4965 = vunpack.c.l.b16 %v4933
    %v4966 = vunpack.c.l.b16 %v4934
    %v4967 = vunpack.c.l.b16 %v4935
    %v4968 = vunpack.c.l.b16 %v4936
    %v4969 = vpack.c.b16 %v4954, %v4953
    %v4970 = vpack.c.b16 %v4956, %v4955
    %v4971 = vpack.c.b16 %v4958, %v4957
    %v4972 = vpack.c.b16 %v4960, %v4959
    %v4973 = vpack.c.b16 %v4962, %v4961
    %v4974 = vpack.c.b16 %v4964, %v4963
    %v4975 = vpack.c.b16 %v4966, %v4965
    %v4976 = vpack.c.b16 %v4968, %v4967
    %4985 = vmatprep.subr.bf16.mxu0 0
    %4986 = vmatpush1.bf16.msra.mxu0 %v4976
    %4987 = vmatprep.subr.bf16.mxu0 0
    %4988 = vmatpush1.bf16.msra.mxu0 %v4975
    %4989 = vmatprep.subr.bf16.mxu0 0
    %4990 = vmatpush1.bf16.msra.mxu0 %v4974
    %4991 = vmatprep.subr.bf16.mxu0 0
    %4992 = vmatpush1.bf16.msra.mxu0 %v4973
    %4993 = vmatprep.subr.bf16.mxu0 0
    %4994 = vmatpush1.bf16.msra.mxu0 %v4972
    %4995 = vmatprep.subr.bf16.mxu0 0
    %4996 = vmatpush1.bf16.msra.mxu0 %v4971
    %4997 = vmatprep.subr.bf16.mxu0 0
    %4998 = vmatpush1.bf16.msra.mxu0 %v4970
    %4999 = vmatprep.subr.bf16.mxu0 0
    %5000 = vmatpush1.bf16.msra.mxu0 %v4969
    %5001 = vmatprep.subr.bf16.mxu0 0
    %5002 = vmatpush2.bf16.msra.mxu0 0
    %5003 = vmatprep.subr.bf16.mxu0 0
    %5004 = vmatpush2.bf16.msra.mxu0 0
    %5005 = vmatprep.subr.bf16.mxu0 0
    %5006 = vmatpush2.bf16.msra.mxu0 0
    %5007 = vmatprep.subr.bf16.mxu0 0
    %5008 = vmatpush2.bf16.msra.mxu0 0
    %5009 = vmatprep.subr.bf16.mxu0 0
    %5010 = vmatpush2.bf16.msra.mxu0 0
    %5011 = vmatprep.subr.bf16.mxu0 0
    %5012 = vmatpush2.bf16.msra.mxu0 0
    %5013 = vmatprep.subr.bf16.mxu0 0
    %5014 = vmatpush2.bf16.msra.mxu0 0
    %5015 = vmatprep.subr.bf16.mxu0 0
    %5016 = vmatpush2.bf16.msra.mxu0 0
    %5017 = vmatprep.mubr.bf16.mxu0 0
    %5018 = vmatmul.mubr.bf16.gmra.mxu0 %v4814
    %v5019 = vpop.f32.mrf.mxu0
    %v5020 = vadd.f32 0.0, %v5019
    %v5021 = vpop.f32.mrf.mxu0
    %v5022 = vpop.f32.mrf.mxu0
    %v5023 = vadd.f32 0.0, %v5022
    %v5024 = vpop.f32.mrf.mxu0
    %5025 = vdwg.mxu0
    %v5027 = vsel %vm840, %v5023, 0
    %5029 = vmatprep.subr.mxu0 0.0
    %5030 = vmatpush1.msra.mxu0 0.0
    %5031 = vmatprep.subr.mxu0 0.0
    %5032 = vmatpush1.msra.mxu0 0.0
    %5033 = vmatprep.subr.mxu0 0.0
    %5034 = vmatpush1.msra.mxu0 0.0
    %5035 = vmatprep.subr.mxu0 0.0
    %5036 = vmatpush1.msra.mxu0 0.0
    %5037 = vmatprep.subr.mxu0 0.0
    %5038 = vmatpush1.msra.mxu0 0.0
    %5039 = vmatprep.subr.mxu0 0.0
    %5040 = vmatpush1.msra.mxu0 0.0
    %5041 = vmatprep.subr.mxu0 0.0
    %5042 = vmatpush1.msra.mxu0 0.0
    %5043 = vmatprep.subr.mxu0 0.0
    %5044 = vmatpush1.msra.mxu0 0.0
    %5045 = vmatprep.subr.mxu0 0.0
    %5046 = vmatpush1.msra.mxu0 0.0
    %5047 = vmatprep.subr.mxu0 0.0
    %5048 = vmatpush1.msra.mxu0 0.0
    %5049 = vmatprep.subr.mxu0 0.0
    %5050 = vmatpush1.msra.mxu0 0.0
    %5051 = vmatprep.subr.mxu0 0.0
    %5052 = vmatpush1.msra.mxu0 0.0
    %5053 = vmatprep.subr.mxu0 0.0
    %5054 = vmatpush1.msra.mxu0 0.0
    %5055 = vmatprep.subr.mxu0 0.0
    %5056 = vmatpush1.msra.mxu0 0.0
    %5057 = vmatprep.subr.mxu0 0.0
    %5058 = vmatpush1.msra.mxu0 %v5027
    %5059 = vmatprep.subr.mxu0 0.0
    %5060 = vmatpush1.msra.mxu0 %v5020
    %5061 = vmatprep.subr.mxu0 0.0
    %5062 = vmatpush2.msra.mxu0 0.0
    %5063 = vmatprep.subr.mxu0 0.0
    %5064 = vmatpush2.msra.mxu0 0.0
    %5065 = vmatprep.subr.mxu0 0.0
    %5066 = vmatpush2.msra.mxu0 0.0
    %5067 = vmatprep.subr.mxu0 0.0
    %5068 = vmatpush2.msra.mxu0 0.0
    %5069 = vmatprep.subr.mxu0 0.0
    %5070 = vmatpush2.msra.mxu0 0.0
    %5071 = vmatprep.subr.mxu0 0.0
    %5072 = vmatpush2.msra.mxu0 0.0
    %5073 = vmatprep.subr.mxu0 0.0
    %5074 = vmatpush2.msra.mxu0 0.0
    %5075 = vmatprep.subr.mxu0 0.0
    %5076 = vmatpush2.msra.mxu0 0.0
    %5077 = vmatprep.subr.mxu0 0.0
    %5078 = vmatpush2.msra.mxu0 0.0
    %5079 = vmatprep.subr.mxu0 0.0
    %5080 = vmatpush2.msra.mxu0 0.0
    %5081 = vmatprep.subr.mxu0 0.0
    %5082 = vmatpush2.msra.mxu0 0.0
    %5083 = vmatprep.subr.mxu0 0.0
    %5084 = vmatpush2.msra.mxu0 0.0
    %5085 = vmatprep.subr.mxu0 0.0
    %5086 = vmatpush2.msra.mxu0 0.0
    %5087 = vmatprep.subr.mxu0 0.0
    %5088 = vmatpush2.msra.mxu0 0.0
    %5089 = vmatprep.subr.mxu0 0.0
    %5090 = vmatpush2.msra.mxu0 0.0
    %5091 = vmatprep.subr.mxu0 0.0
    %5092 = vmatpush2.msra.mxu0 0.0
    %5093 = vmatprep.mubr.f32.mxu0 0.0
    %5094 = vmatmul.mubr.f32.gmra.mxu0 %v2550
    %v5095 = vpop.f32.mrf.mxu0
    %v5096 = vadd.f32 0.0, %v5095
    %v5097 = vpop.f32.mrf.mxu0
    %5098 = vmatprep.mubr.f32.mxu0 0.0
    %5099 = vmatmul.mubr.f32.gmra.mxu0 %v2553
    %v5100 = vpop.f32.mrf.mxu0
    %v5101 = vadd.f32 0.0, %v5100
    %v5102 = vpop.f32.mrf.mxu0
    %5103 = vdwg.mxu0
    %v5105 = vsel %vm840, %v4917, 0
    %5107 = vmatprep.subr.mxu0 0.0
    %5108 = vmatpush1.msra.mxu0 0.0
    %5109 = vmatprep.subr.mxu0 0.0
    %5110 = vmatpush1.msra.mxu0 0.0
    %5111 = vmatprep.subr.mxu0 0.0
    %5112 = vmatpush1.msra.mxu0 0.0
    %5113 = vmatprep.subr.mxu0 0.0
    %5114 = vmatpush1.msra.mxu0 0.0
    %5115 = vmatprep.subr.mxu0 0.0
    %5116 = vmatpush1.msra.mxu0 0.0
    %5117 = vmatprep.subr.mxu0 0.0
    %5118 = vmatpush1.msra.mxu0 0.0
    %5119 = vmatprep.subr.mxu0 0.0
    %5120 = vmatpush1.msra.mxu0 0.0
    %5121 = vmatprep.subr.mxu0 0.0
    %5122 = vmatpush1.msra.mxu0 0.0
    %5123 = vmatprep.subr.mxu0 0.0
    %5124 = vmatpush1.msra.mxu0 0.0
    %5125 = vmatprep.subr.mxu0 0.0
    %5126 = vmatpush1.msra.mxu0 0.0
    %5127 = vmatprep.subr.mxu0 0.0
    %5128 = vmatpush1.msra.mxu0 0.0
    %5129 = vmatprep.subr.mxu0 0.0
    %5130 = vmatpush1.msra.mxu0 0.0
    %5131 = vmatprep.subr.mxu0 0.0
    %5132 = vmatpush1.msra.mxu0 0.0
    %5133 = vmatprep.subr.mxu0 0.0
    %5134 = vmatpush1.msra.mxu0 0.0
    %5135 = vmatprep.subr.mxu0 0.0
    %5136 = vmatpush1.msra.mxu0 %v5105
    %5137 = vmatprep.subr.mxu0 0.0
    %5138 = vmatpush1.msra.mxu0 %v4914
    %5139 = vmatprep.subr.mxu0 0.0
    %5140 = vmatpush2.msra.mxu0 0.0
    %5141 = vmatprep.subr.mxu0 0.0
    %5142 = vmatpush2.msra.mxu0 0.0
    %5143 = vmatprep.subr.mxu0 0.0
    %5144 = vmatpush2.msra.mxu0 0.0
    %5145 = vmatprep.subr.mxu0 0.0
    %5146 = vmatpush2.msra.mxu0 0.0
    %5147 = vmatprep.subr.mxu0 0.0
    %5148 = vmatpush2.msra.mxu0 0.0
    %5149 = vmatprep.subr.mxu0 0.0
    %5150 = vmatpush2.msra.mxu0 0.0
    %5151 = vmatprep.subr.mxu0 0.0
    %5152 = vmatpush2.msra.mxu0 0.0
    %5153 = vmatprep.subr.mxu0 0.0
    %5154 = vmatpush2.msra.mxu0 0.0
    %5155 = vmatprep.subr.mxu0 0.0
    %5156 = vmatpush2.msra.mxu0 0.0
    %5157 = vmatprep.subr.mxu0 0.0
    %5158 = vmatpush2.msra.mxu0 0.0
    %5159 = vmatprep.subr.mxu0 0.0
    %5160 = vmatpush2.msra.mxu0 0.0
    %5161 = vmatprep.subr.mxu0 0.0
    %5162 = vmatpush2.msra.mxu0 0.0
    %5163 = vmatprep.subr.mxu0 0.0
    %5164 = vmatpush2.msra.mxu0 0.0
    %5165 = vmatprep.subr.mxu0 0.0
    %5166 = vmatpush2.msra.mxu0 0.0
    %5167 = vmatprep.subr.mxu0 0.0
    %5168 = vmatpush2.msra.mxu0 0.0
    %5169 = vmatprep.subr.mxu0 0.0
    %5170 = vmatpush2.msra.mxu0 0.0
    %5171 = vmatprep.mubr.f32.mxu0 0.0
    %5172 = vmatmul.mubr.f32.gmra.mxu0 %v2639
    %v5173 = vpop.f32.mrf.mxu0
    %v5174 = vadd.f32 %v5096, %v5173
    %v5175 = vpop.f32.mrf.mxu0
    %5176 = vmatprep.mubr.f32.mxu0 0.0
    %5177 = vmatmul.mubr.f32.gmra.mxu0 %v2642
    %v5178 = vpop.f32.mrf.mxu0
    %v5179 = vadd.f32 %v5101, %v5178
    %v5180 = vpop.f32.mrf.mxu0
    %5181 = vdwg.mxu0
    %s5182 = scalar_lea.vmem %s4, 128
    %v5183 = vld [vmem:[%s5182] sm:$0xf]
    %v5184 = vld [vmem:[%s5182 + $0x4] sm:$0xf]
    %v5185 = vld [vmem:[%s5182 + $0x8] sm:$0xf]
    %v5186 = vld [vmem:[%s5182 + $0xc] sm:$0xf]
    %v5187 = vld [vmem:[%s5182 + $0x10] sm:$0xf]
    %v5188 = vld [vmem:[%s5182 + $0x14] sm:$0xf]
    %v5189 = vld [vmem:[%s5182 + $0x18] sm:$0xf]
    %v5190 = vld [vmem:[%s5182 + $0x1c] sm:$0xf]
    %v5191 = vld [vmem:[%s5182 + $0x20] sm:$0xf]
    %v5192 = vld [vmem:[%s5182 + $0x24] sm:$0xf]
    %v5193 = vld [vmem:[%s5182 + $0x28] sm:$0xf]
    %v5194 = vld [vmem:[%s5182 + $0x2c] sm:$0xf]
    %v5195 = vld [vmem:[%s5182 + $0x30] sm:$0xf]
    %v5196 = vld [vmem:[%s5182 + $0x34] sm:$0xf]
    %v5197 = vld [vmem:[%s5182 + $0x38] sm:$0xf]
    %v5198 = vld [vmem:[%s5182 + $0x3c] sm:$0xf]
    %v5215 = vunpack.c.l.b16 %v5183
    %v5216 = vunpack.c.l.b16 %v5184
    %v5217 = vunpack.c.l.b16 %v5185
    %v5218 = vunpack.c.l.b16 %v5186
    %v5219 = vunpack.c.l.b16 %v5187
    %v5220 = vunpack.c.l.b16 %v5188
    %v5221 = vunpack.c.l.b16 %v5189
    %v5222 = vunpack.c.l.b16 %v5190
    %v5223 = vunpack.c.l.b16 %v5191
    %v5224 = vunpack.c.l.b16 %v5192
    %v5225 = vunpack.c.l.b16 %v5193
    %v5226 = vunpack.c.l.b16 %v5194
    %v5227 = vunpack.c.l.b16 %v5195
    %v5228 = vunpack.c.l.b16 %v5196
    %v5229 = vunpack.c.l.b16 %v5197
    %v5230 = vunpack.c.l.b16 %v5198
    %v5231 = vpack.c.b16 %v5216, %v5215
    %v5232 = vpack.c.b16 %v5218, %v5217
    %v5233 = vpack.c.b16 %v5220, %v5219
    %v5234 = vpack.c.b16 %v5222, %v5221
    %v5235 = vpack.c.b16 %v5224, %v5223
    %v5236 = vpack.c.b16 %v5226, %v5225
    %v5237 = vpack.c.b16 %v5228, %v5227
    %v5238 = vpack.c.b16 %v5230, %v5229
    %5247 = vmatprep.subr.bf16.mxu0 0
    %5248 = vmatpush1.bf16.msra.mxu0 %v5238
    %5249 = vmatprep.subr.bf16.mxu0 0
    %5250 = vmatpush1.bf16.msra.mxu0 %v5237
    %5251 = vmatprep.subr.bf16.mxu0 0
    %5252 = vmatpush1.bf16.msra.mxu0 %v5236
    %5253 = vmatprep.subr.bf16.mxu0 0
    %5254 = vmatpush1.bf16.msra.mxu0 %v5235
    %5255 = vmatprep.subr.bf16.mxu0 0
    %5256 = vmatpush1.bf16.msra.mxu0 %v5234
    %5257 = vmatprep.subr.bf16.mxu0 0
    %5258 = vmatpush1.bf16.msra.mxu0 %v5233
    %5259 = vmatprep.subr.bf16.mxu0 0
    %5260 = vmatpush1.bf16.msra.mxu0 %v5232
    %5261 = vmatprep.subr.bf16.mxu0 0
    %5262 = vmatpush1.bf16.msra.mxu0 %v5231
    %5263 = vmatprep.subr.bf16.mxu0 0
    %5264 = vmatpush2.bf16.msra.mxu0 0
    %5265 = vmatprep.subr.bf16.mxu0 0
    %5266 = vmatpush2.bf16.msra.mxu0 0
    %5267 = vmatprep.subr.bf16.mxu0 0
    %5268 = vmatpush2.bf16.msra.mxu0 0
    %5269 = vmatprep.subr.bf16.mxu0 0
    %5270 = vmatpush2.bf16.msra.mxu0 0
    %5271 = vmatprep.subr.bf16.mxu0 0
    %5272 = vmatpush2.bf16.msra.mxu0 0
    %5273 = vmatprep.subr.bf16.mxu0 0
    %5274 = vmatpush2.bf16.msra.mxu0 0
    %5275 = vmatprep.subr.bf16.mxu0 0
    %5276 = vmatpush2.bf16.msra.mxu0 0
    %5277 = vmatprep.subr.bf16.mxu0 0
    %5278 = vmatpush2.bf16.msra.mxu0 0
    %5279 = vmatprep.mubr.bf16.mxu0 0
    %5280 = vmatmul.mubr.bf16.gmra.mxu0 %v4814
    %v5281 = vpop.f32.mrf.mxu0
    %v5282 = vadd.f32 0.0, %v5281
    %v5283 = vpop.f32.mrf.mxu0
    %v5284 = vpop.f32.mrf.mxu0
    %v5285 = vadd.f32 0.0, %v5284
    %v5286 = vpop.f32.mrf.mxu0
    %5287 = vdwg.mxu0
    %v5289 = vsel %vm840, %v5285, 0
    %5291 = vmatprep.subr.mxu0 0.0
    %5292 = vmatpush1.msra.mxu0 0.0
    %5293 = vmatprep.subr.mxu0 0.0
    %5294 = vmatpush1.msra.mxu0 0.0
    %5295 = vmatprep.subr.mxu0 0.0
    %5296 = vmatpush1.msra.mxu0 0.0
    %5297 = vmatprep.subr.mxu0 0.0
    %5298 = vmatpush1.msra.mxu0 0.0
    %5299 = vmatprep.subr.mxu0 0.0
    %5300 = vmatpush1.msra.mxu0 0.0
    %5301 = vmatprep.subr.mxu0 0.0
    %5302 = vmatpush1.msra.mxu0 0.0
    %5303 = vmatprep.subr.mxu0 0.0
    %5304 = vmatpush1.msra.mxu0 0.0
    %5305 = vmatprep.subr.mxu0 0.0
    %5306 = vmatpush1.msra.mxu0 0.0
    %5307 = vmatprep.subr.mxu0 0.0
    %5308 = vmatpush1.msra.mxu0 0.0
    %5309 = vmatprep.subr.mxu0 0.0
    %5310 = vmatpush1.msra.mxu0 0.0
    %5311 = vmatprep.subr.mxu0 0.0
    %5312 = vmatpush1.msra.mxu0 0.0
    %5313 = vmatprep.subr.mxu0 0.0
    %5314 = vmatpush1.msra.mxu0 0.0
    %5315 = vmatprep.subr.mxu0 0.0
    %5316 = vmatpush1.msra.mxu0 0.0
    %5317 = vmatprep.subr.mxu0 0.0
    %5318 = vmatpush1.msra.mxu0 0.0
    %5319 = vmatprep.subr.mxu0 0.0
    %5320 = vmatpush1.msra.mxu0 %v5289
    %5321 = vmatprep.subr.mxu0 0.0
    %5322 = vmatpush1.msra.mxu0 %v5282
    %5323 = vmatprep.subr.mxu0 0.0
    %5324 = vmatpush2.msra.mxu0 0.0
    %5325 = vmatprep.subr.mxu0 0.0
    %5326 = vmatpush2.msra.mxu0 0.0
    %5327 = vmatprep.subr.mxu0 0.0
    %5328 = vmatpush2.msra.mxu0 0.0
    %5329 = vmatprep.subr.mxu0 0.0
    %5330 = vmatpush2.msra.mxu0 0.0
    %5331 = vmatprep.subr.mxu0 0.0
    %5332 = vmatpush2.msra.mxu0 0.0
    %5333 = vmatprep.subr.mxu0 0.0
    %5334 = vmatpush2.msra.mxu0 0.0
    %5335 = vmatprep.subr.mxu0 0.0
    %5336 = vmatpush2.msra.mxu0 0.0
    %5337 = vmatprep.subr.mxu0 0.0
    %5338 = vmatpush2.msra.mxu0 0.0
    %5339 = vmatprep.subr.mxu0 0.0
    %5340 = vmatpush2.msra.mxu0 0.0
    %5341 = vmatprep.subr.mxu0 0.0
    %5342 = vmatpush2.msra.mxu0 0.0
    %5343 = vmatprep.subr.mxu0 0.0
    %5344 = vmatpush2.msra.mxu0 0.0
    %5345 = vmatprep.subr.mxu0 0.0
    %5346 = vmatpush2.msra.mxu0 0.0
    %5347 = vmatprep.subr.mxu0 0.0
    %5348 = vmatpush2.msra.mxu0 0.0
    %5349 = vmatprep.subr.mxu0 0.0
    %5350 = vmatpush2.msra.mxu0 0.0
    %5351 = vmatprep.subr.mxu0 0.0
    %5352 = vmatpush2.msra.mxu0 0.0
    %5353 = vmatprep.subr.mxu0 0.0
    %5354 = vmatpush2.msra.mxu0 0.0
    %5355 = vmatprep.mubr.f32.mxu0 0.0
    %5356 = vmatmul.mubr.f32.gmra.mxu0 %v3202
    %v5357 = vpop.f32.mrf.mxu0
    %v5358 = vadd.f32 0.0, %v5357
    %v5359 = vpop.f32.mrf.mxu0
    %5360 = vmatprep.mubr.f32.mxu0 0.0
    %5361 = vmatmul.mubr.f32.gmra.mxu0 %v3205
    %v5362 = vpop.f32.mrf.mxu0
    %v5363 = vadd.f32 0.0, %v5362
    %v5364 = vpop.f32.mrf.mxu0
    %5365 = vdwg.mxu0
    %v5366 = vadd.f32 %v5174, %v5358
    %v5367 = vadd.f32 %v5179, %v5363
    %v5368 = vld [vmem:[%s15] sm:$0x1]
    %v5370 = vlaneseq
    %v5371 = vshrl.u32 %v5370, 7
    %v5372 = vsub.s32 0, %v5371
    %v5373 = vrot.slane %v5368, %v5372
    %v5375 = vadd.f32 %v5366, %v5373
    %v5376 = vadd.f32 %v5367, %v5373
    %5377 = vst.msk [vmem:[%s16] sm:$0xff] %vm3420, %v5375
    %vm5378 = vcmask 125952
    %5379 = vst.msk [vmem:[%s16 + $0x8] sm:$0xf] %vm5378, %v5376
    // Predicated region
    $region74: #{cnn_note_forward.1} parent=1 // pred_check
      _
    $region75: #{cnn_note_forward.1} parent=1 // pred_check_branch
      %5381 = sbr.rel (0) target = $region77
    $region76: #{cnn_note_forward.1} parent=1 // pred_region
      _
    $region77: #{cnn_note_forward.1} parent=1 // pred_fallthru
      _
    // Predicated region
    $region78: #{cnn_note_forward.1} parent=1 // pred_check
      _
    $region79: #{cnn_note_forward.1} parent=1 // pred_check_branch
      %5383 = sbr.rel (0) target = $region81
    $region80: #{cnn_note_forward.1} parent=1 // pred_region
      _
    $region81: #{cnn_note_forward.1} parent=1 // pred_fallthru
      _
    %5384 = vsyncpa [#allocation3], 1
    %5385 = vsyncpa [#allocation5], 1

</llo_original>
